<compile_context>
chip_gen: v6e
topology: v6e:2x2x1
jax: 0.10.0
libtpu: 0.0.40
codegen_flags: <defaults>
</compile_context>

<pallas_src>
import jax
import jax.numpy as jnp
from jax.experimental import pallas as pl
from jax.experimental.pallas import tpu as pltpu

H1, H2, L1, L2 = 50, 64, 32, 16   # logical sizes (match the PyTorch module)
GP = 128                          # one 128-lane slot per gate / hidden state
G4 = 4 * GP                       # padded 4-gate width


def _lstm_baseline_kernel(x_ref,
                          w_ih1_ref, w_hh1_ref, b1_ref,
                          w2_ref, b2_ref,
                          w_l1_ref, b_l1_ref,
                          w_l2_ref, b_l2_ref,
                          w_out_ref, b_out_ref,
                          out_ref,
                          xp_ref):
    T, TB, E = x_ref.shape

    # ---- Precompute LSTM1's input projection for ALL timesteps: one MXU
    # call (T*TB, E) @ (E, 4*GP) + b1, stored in VMEM scratch.  The serial
    # recurrence below then only carries the h @ W_hh matmuls.
    x2d = x_ref[...].reshape(T * TB, E).astype(jnp.bfloat16)
    xp_ref[...] = (
        jnp.dot(x2d, w_ih1_ref[...], preferred_element_type=jnp.float32)
        + b1_ref[...])

    # Hoist the LSTM2 bias broadcast out of the loop.
    b2b = jnp.broadcast_to(b2_ref[...], (TB, G4))

    def gates(g):
        # PyTorch gate order: input, forget, cell(g), output.
        # 128-lane-aligned slices == whole vregs (no cross-lane shuffles).
        i = jax.nn.sigmoid(g[:, 0 * GP:1 * GP])
        f = jax.nn.sigmoid(g[:, 1 * GP:2 * GP])
        c = jnp.tanh(g[:, 2 * GP:3 * GP])
        o = jax.nn.sigmoid(g[:, 3 * GP:4 * GP])
        return i, f, c, o

    h1 = jnp.zeros((TB, GP), jnp.float32)
    c1 = jnp.zeros((TB, GP), jnp.float32)
    h2 = jnp.zeros((TB, GP), jnp.float32)
    c2 = jnp.zeros((TB, GP), jnp.float32)

    # Static Python loop == full unroll: static (sublane-aligned) slices into
    # xp_ref and LSTM1/LSTM2 work of one step can co-issue across units.
    for t in range(T):
        # ---- LSTM1: recurrent matmul only (input part precomputed above).
        g1 = (xp_ref[t * TB:(t + 1) * TB, :]
              + jnp.dot(h1.astype(jnp.bfloat16), w_hh1_ref[...],
                        preferred_element_type=jnp.float32))
        i1, f1, gg1, o1 = gates(g1)
        c1 = f1 * c1 + i1 * gg1
        h1 = o1 * jnp.tanh(c1)

        # ---- LSTM2: fused ih+hh -> single MXU push on [h1_new, h2_old].
        hcat = jnp.concatenate([h1, h2], axis=-1).astype(jnp.bfloat16)
        g2 = (jnp.dot(hcat, w2_ref[...], preferred_element_type=jnp.float32)
              + b2b)
        i2, f2, gg2, o2 = gates(g2)
        c2 = f2 * c2 + i2 * gg2
        h2 = o2 * jnp.tanh(c2)

    # ---- MLP head on the final hidden state of lstm2 (h_n in PyTorch).
    z = jnp.dot(h2.astype(jnp.bfloat16), w_l1_ref[...],
                preferred_element_type=jnp.float32) + b_l1_ref[...]
    z = jnp.maximum(z, 0.0)
    z = jnp.dot(z.astype(jnp.bfloat16), w_l2_ref[...],
                preferred_element_type=jnp.float32) + b_l2_ref[...]
    z = jnp.maximum(z, 0.0)
    out_ref[...] = (jnp.dot(z.astype(jnp.bfloat16), w_out_ref[...],
                            preferred_element_type=jnp.float32)
                    + b_out_ref[...])


def lstm_baseline_forward(x, kparams):
    """x: (B, T, E) float32, batch_first like the PyTorch module.
    kparams: output of prepare_params().  Returns (1, B, out_dim)."""
    B, T, E = x.shape
    out_dim = kparams["b_out"].shape[-1]

    # Batch tile: multiple of 8 sublanes; >1 tile lets v7x split batch on its
    # two TensorCores via the "parallel" grid axis.
    TB = min(128, pl.cdiv(B, 8) * 8)
    B_pad = pl.cdiv(B, TB) * TB

    x = x.astype(jnp.float32)
    if B_pad != B:
        x = jnp.pad(x, ((0, B_pad - B), (0, 0), (0, 0)))
    # Time-major so each step is a static leading-dim slice inside the kernel.
    # TODO(synk): for large T*B*E, stream x by gridding over T chunks (with
    # h/c carried in scratch) instead of full-VMEM residency (64 MiB on v7x).
    x_tm = jnp.transpose(x, (1, 0, 2))          # (T, B_pad, E)

    def wspec(shape):                           # grid-invariant weight block
        return pl.BlockSpec(shape, lambda i, _n=len(shape): (0,) * _n)

    out = pl.pallas_call(
        _lstm_baseline_kernel,
        out_shape=jax.ShapeDtypeStruct((B_pad, out_dim), jnp.float32),
        grid_spec=pltpu.PrefetchScalarGridSpec(
            num_scalar_prefetch=0,
            grid=(B_pad // TB,),
            in_specs=[
                pl.BlockSpec((T, TB, E), lambda i: (0, i, 0)),   # x (time-major)
                wspec((E, G4)),                                  # w_ih1
                wspec((GP, G4)),                                 # w_hh1
                wspec((1, G4)),                                  # b1 (ih+hh)
                wspec((2 * GP, G4)),                             # [w_ih2; w_hh2]
                wspec((1, G4)),                                  # b2 (ih+hh)
                wspec((GP, GP)),                                 # w_l1
                wspec((1, GP)),                                  # b_l1
                wspec((GP, GP)),                                 # w_l2
                wspec((1, GP)),                                  # b_l2
                wspec((GP, out_dim)),                            # w_out
                wspec((1, out_dim)),                             # b_out
            ],
            out_specs=pl.BlockSpec((TB, out_dim), lambda i: (i, 0)),
            scratch_shapes=[pltpu.VMEM((T * TB, G4), jnp.float32)],
        ),
        compiler_params=pltpu.CompilerParams(
            dimension_semantics=("parallel",)),
    )(x_tm,
      kparams["w_ih1"], kparams["w_hh1"], kparams["b1"],
      kparams["w2"], kparams["b2"],
      kparams["w_l1"], kparams["b_l1"],
      kparams["w_l2"], kparams["b_l2"],
      kparams["w_out"], kparams["b_out"])

    return out[None, :B, :]   # (1, B, out_dim), matching h_n's leading dim


def init_params(key, embed_dim, out_dim):
    """Logical params matching PyTorch defaults: U(-1/sqrt(fan), 1/sqrt(fan)),
    LSTM weights stored transposed as (in, 4*hid) in PyTorch i,f,g,o gate
    order; ih/hh biases pre-summed."""
    ks = jax.random.split(key, 14)

    def u(k, shape, bound):
        return jax.random.uniform(k, shape, jnp.float32, -bound, bound)

    k1 = 1.0 / float(H1) ** 0.5
    k2 = 1.0 / float(H2) ** 0.5
    kl1 = 1.0 / float(H2) ** 0.5
    kl2 = 1.0 / float(L1) ** 0.5
    ko = 1.0 / float(L2) ** 0.5

    return dict(
        w_ih1=u(ks[0], (embed_dim, 4 * H1), k1),
        w_hh1=u(ks[1], (H1, 4 * H1), k1),
        b1=u(ks[2], (1, 4 * H1), k1) + u(ks[3], (1, 4 * H1), k1),
        w_ih2=u(ks[4], (H1, 4 * H2), k2),
        w_hh2=u(ks[5], (H2, 4 * H2), k2),
        b2=u(ks[6], (1, 4 * H2), k2) + u(ks[7], (1, 4 * H2), k2),
        w_l1=u(ks[8], (H2, L1), kl1),
        b_l1=u(ks[9], (1, L1), kl1),
        w_l2=u(ks[10], (L1, L2), kl2),
        b_l2=u(ks[11], (1, L2), kl2),
        w_out=u(ks[12], (L2, out_dim), ko),
        b_out=u(ks[13], (1, out_dim), ko),
    )


def prepare_params(p):
    """Pad logical params to the lane-aligned kernel layout (each gate in its
    own 128-lane slot, hidden/feature rows padded to 128) and cast matmul
    weights to bf16.  All padding is zeros so padded lanes stay inert."""
    out_dim = p["b_out"].shape[-1]

    def gate_pad(w, hid):
        # (in, 4*hid) -> (in, 4*GP): gate k -> lanes [k*GP, k*GP+hid), rest 0.
        out = jnp.zeros((w.shape[0], G4), jnp.float32)
        for k in range(4):
            out = out.at[:, k * GP:k * GP + hid].set(w[:, k * hid:(k + 1) * hid])
        return out

    def row_pad(w, rows):
        return jnp.pad(w, ((0, rows - w.shape[0]), (0, 0)))

    def pad2(w, rows, cols):
        return jnp.pad(w, ((0, rows - w.shape[0]), (0, cols - w.shape[1])))

    bf = lambda a: a.astype(jnp.bfloat16)

    w_ih2 = row_pad(gate_pad(p["w_ih2"], H2), GP)   # rows = padded h1 slot
    w_hh2 = row_pad(gate_pad(p["w_hh2"], H2), GP)   # rows = padded h2 slot

    return dict(
        w_ih1=bf(gate_pad(p["w_ih1"], H1)),                  # (E, 512)
        w_hh1=bf(row_pad(gate_pad(p["w_hh1"], H1), GP)),     # (128, 512)
        b1=gate_pad(p["b1"], H1),                            # (1, 512) f32
        w2=bf(jnp.concatenate([w_ih2, w_hh2], axis=0)),      # (256, 512)
        b2=gate_pad(p["b2"], H2),                            # (1, 512) f32
        w_l1=bf(pad2(p["w_l1"], GP, GP)),                    # (128, 128)
        b_l1=pad2(p["b_l1"], 1, GP),                         # (1, 128) f32
        w_l2=bf(pad2(p["w_l2"], GP, GP)),                    # (128, 128)
        b_l2=pad2(p["b_l2"], 1, GP),                         # (1, 128) f32
        w_out=bf(pad2(p["w_out"], GP, out_dim)),             # (128, out_dim)
        b_out=p["b_out"],                                    # (1, out_dim) f32
    )


if __name__ == "__main__":
    key = jax.random.PRNGKey(0)
    kx, kp = jax.random.split(key)

    B, T, E, OUT = 2, 8, 8, 4
    x = jax.random.normal(kx, (B, T, E), jnp.float32)
    kparams = prepare_params(init_params(kp, E, OUT))

    y = lstm_baseline_forward(x, kparams)
    jax.block_until_ready(y)
    assert y.shape == (1, B, OUT), y.shape
    print("KERNEL_OK")
</pallas_src>

<mosaic_0001>
module attributes {stable_mosaic.version = 11 : i64} {
  func.func @_lstm_baseline_kernel(%arg0: i32, %arg1: memref<8x8x8xf32, #tpu.memory_space<vmem>>, %arg2: memref<8x512xbf16, #tpu.memory_space<vmem>>, %arg3: memref<128x512xbf16, #tpu.memory_space<vmem>>, %arg4: memref<1x512xf32, #tpu.memory_space<vmem>>, %arg5: memref<256x512xbf16, #tpu.memory_space<vmem>>, %arg6: memref<1x512xf32, #tpu.memory_space<vmem>>, %arg7: memref<128x128xbf16, #tpu.memory_space<vmem>>, %arg8: memref<1x128xf32, #tpu.memory_space<vmem>>, %arg9: memref<128x128xbf16, #tpu.memory_space<vmem>>, %arg10: memref<1x128xf32, #tpu.memory_space<vmem>>, %arg11: memref<128x4xbf16, #tpu.memory_space<vmem>>, %arg12: memref<1x4xf32, #tpu.memory_space<vmem>>, %arg13: memref<8x4xf32, #tpu.memory_space<vmem>>, %arg14: memref<64x512xf32, #tpu.memory_space<vmem>>) attributes {dimension_semantics = [#tpu.dimension_semantics<parallel>], iteration_bounds = array<i64: 1>, scalar_prefetch = 0 : i64, scratch_operands = 1 : i64, tpu.core_type = #tpu.core_type<tc>, window_params = [{transform_indices = @transform_0, window_bounds = array<i64: 8, 8, 8>}, {pipeline_mode = #tpu.pipeline_mode<synchronous>, transform_indices = @transform_1, window_bounds = array<i64: 8, 512>}, {pipeline_mode = #tpu.pipeline_mode<synchronous>, transform_indices = @transform_2, window_bounds = array<i64: 128, 512>}, {pipeline_mode = #tpu.pipeline_mode<synchronous>, transform_indices = @transform_3, window_bounds = array<i64: 1, 512>}, {pipeline_mode = #tpu.pipeline_mode<synchronous>, transform_indices = @transform_4, window_bounds = array<i64: 256, 512>}, {pipeline_mode = #tpu.pipeline_mode<synchronous>, transform_indices = @transform_5, window_bounds = array<i64: 1, 512>}, {pipeline_mode = #tpu.pipeline_mode<synchronous>, transform_indices = @transform_6, window_bounds = array<i64: 128, 128>}, {pipeline_mode = #tpu.pipeline_mode<synchronous>, transform_indices = @transform_7, window_bounds = array<i64: 1, 128>}, {pipeline_mode = #tpu.pipeline_mode<synchronous>, transform_indices = @transform_8, window_bounds = array<i64: 128, 128>}, {pipeline_mode = #tpu.pipeline_mode<synchronous>, transform_indices = @transform_9, window_bounds = array<i64: 1, 128>}, {pipeline_mode = #tpu.pipeline_mode<synchronous>, transform_indices = @transform_10, window_bounds = array<i64: 128, 4>}, {pipeline_mode = #tpu.pipeline_mode<synchronous>, transform_indices = @transform_11, window_bounds = array<i64: 1, 4>}, {transform_indices = @transform_12, window_bounds = array<i64: 8, 4>}]} {
    %c0 = arith.constant 0 : index
    %c0_0 = arith.constant 0 : index
    %c0_1 = arith.constant 0 : index
    %0 = vector.load %arg1[%c0, %c0_0, %c0_1] : memref<8x8x8xf32, #tpu.memory_space<vmem>>, vector<8x8x8xf32>
    %1 = vector.shape_cast %0 : vector<8x8x8xf32> to vector<64x8xf32>
    %2 = arith.truncf %1 : vector<64x8xf32> to vector<64x8xbf16>
    %c0_2 = arith.constant 0 : index
    %c0_3 = arith.constant 0 : index
    %3 = vector.load %arg2[%c0_2, %c0_3] : memref<8x512xbf16, #tpu.memory_space<vmem>>, vector<8x512xbf16>
    %cst = arith.constant dense<0.000000e+00> : vector<64x512xf32>
    %4 = tpu.matmul %2, %3, %cst {dimension_numbers = #tpu.dot_dimension_numbers<[1], [0], [0], [1], [0, 0, 1, 1], [], []>} : vector<64x8xbf16>, vector<8x512xbf16>, vector<64x512xf32> -> vector<64x512xf32>
    %c0_4 = arith.constant 0 : index
    %c0_5 = arith.constant 0 : index
    %5 = vector.load %arg4[%c0_4, %c0_5] : memref<1x512xf32, #tpu.memory_space<vmem>>, vector<1x512xf32>
    %6 = vector.broadcast %5 : vector<1x512xf32> to vector<64x512xf32>
    %7 = arith.addf %4, %6 : vector<64x512xf32>
    %c0_6 = arith.constant 0 : index
    %c0_7 = arith.constant 0 : index
    %8 = vector.load %arg14[%c0_6, %c0_7] : memref<64x512xf32, #tpu.memory_space<vmem>>, vector<64x512xf32>
    tpu.vector_store %arg14[%c0_6, %c0_7], %7 {strides = array<i32>} : memref<64x512xf32, #tpu.memory_space<vmem>>, vector<64x512xf32>,
    %c0_8 = arith.constant 0 : index
    %c0_9 = arith.constant 0 : index
    %9 = vector.load %arg6[%c0_8, %c0_9] : memref<1x512xf32, #tpu.memory_space<vmem>>, vector<1x512xf32>
    %10 = vector.shape_cast %9 : vector<1x512xf32> to vector<1x512xf32>
    %11 = vector.broadcast %10 : vector<1x512xf32> to vector<8x512xf32>
    %cst_10 = arith.constant 0.000000e+00 : f32
    %12 = vector.broadcast %cst_10 : f32 to vector<8x128xf32>
    %cst_11 = arith.constant 0.000000e+00 : f32
    %13 = vector.broadcast %cst_11 : f32 to vector<8x128xf32>
    %cst_12 = arith.constant 0.000000e+00 : f32
    %14 = vector.broadcast %cst_12 : f32 to vector<8x128xf32>
    %cst_13 = arith.constant 0.000000e+00 : f32
    %15 = vector.broadcast %cst_13 : f32 to vector<8x128xf32>
    %c0_14 = arith.constant 0 : index
    %c0_15 = arith.constant 0 : index
    %16 = vector.load %arg14[%c0_14, %c0_15] : memref<64x512xf32, #tpu.memory_space<vmem>>, vector<8x512xf32>
    %17 = arith.truncf %12 : vector<8x128xf32> to vector<8x128xbf16>
    %c0_16 = arith.constant 0 : index
    %c0_17 = arith.constant 0 : index
    %18 = vector.load %arg3[%c0_16, %c0_17] : memref<128x512xbf16, #tpu.memory_space<vmem>>, vector<128x512xbf16>
    %cst_18 = arith.constant dense<0.000000e+00> : vector<8x512xf32>
    %19 = tpu.matmul %17, %18, %cst_18 {dimension_numbers = #tpu.dot_dimension_numbers<[1], [0], [0], [1], [0, 0, 1, 1], [], []>} : vector<8x128xbf16>, vector<128x512xbf16>, vector<8x512xf32> -> vector<8x512xf32>
    %20 = arith.addf %16, %19 : vector<8x512xf32>
    %21 = vector.extract_strided_slice %20 {offsets = [0, 0], sizes = [8, 128], strides = [1, 1]} : vector<8x512xf32> to vector<8x128xf32>
    %22 = arith.negf %21 : vector<8x128xf32>
    %23 = math.exp %22 : vector<8x128xf32>
    %cst_19 = arith.constant 1.000000e+00 : f32
    %24 = vector.broadcast %cst_19 : f32 to vector<8x128xf32>
    %25 = arith.addf %24, %23 : vector<8x128xf32>
    %26 = arith.divf %24, %25 : vector<8x128xf32>
    %27 = vector.extract_strided_slice %20 {offsets = [0, 128], sizes = [8, 128], strides = [1, 1]} : vector<8x512xf32> to vector<8x128xf32>
    %28 = arith.negf %27 : vector<8x128xf32>
    %29 = math.exp %28 : vector<8x128xf32>
    %cst_20 = arith.constant 1.000000e+00 : f32
    %30 = vector.broadcast %cst_20 : f32 to vector<8x128xf32>
    %31 = arith.addf %30, %29 : vector<8x128xf32>
    %32 = arith.divf %30, %31 : vector<8x128xf32>
    %33 = vector.extract_strided_slice %20 {offsets = [0, 256], sizes = [8, 128], strides = [1, 1]} : vector<8x512xf32> to vector<8x128xf32>
    %34 = math.tanh %33 : vector<8x128xf32>
    %35 = vector.extract_strided_slice %20 {offsets = [0, 384], sizes = [8, 128], strides = [1, 1]} : vector<8x512xf32> to vector<8x128xf32>
    %36 = arith.negf %35 : vector<8x128xf32>
    %37 = math.exp %36 : vector<8x128xf32>
    %cst_21 = arith.constant 1.000000e+00 : f32
    %38 = vector.broadcast %cst_21 : f32 to vector<8x128xf32>
    %39 = arith.addf %38, %37 : vector<8x128xf32>
    %40 = arith.divf %38, %39 : vector<8x128xf32>
    %41 = arith.mulf %32, %13 : vector<8x128xf32>
    %42 = arith.mulf %26, %34 : vector<8x128xf32>
    %43 = arith.addf %41, %42 : vector<8x128xf32>
    %44 = math.tanh %43 : vector<8x128xf32>
    %45 = arith.mulf %40, %44 : vector<8x128xf32>
    %46 = tpu.concatenate %45, %14 in 1 : vector<8x128xf32>, vector<8x128xf32> -> vector<8x256xf32>
    %47 = arith.truncf %46 : vector<8x256xf32> to vector<8x256xbf16>
    %c0_22 = arith.constant 0 : index
    %c0_23 = arith.constant 0 : index
    %48 = vector.load %arg5[%c0_22, %c0_23] : memref<256x512xbf16, #tpu.memory_space<vmem>>, vector<256x512xbf16>
    %cst_24 = arith.constant dense<0.000000e+00> : vector<8x512xf32>
    %49 = tpu.matmul %47, %48, %cst_24 {dimension_numbers = #tpu.dot_dimension_numbers<[1], [0], [0], [1], [0, 0, 1, 1], [], []>} : vector<8x256xbf16>, vector<256x512xbf16>, vector<8x512xf32> -> vector<8x512xf32>
    %50 = arith.addf %49, %11 : vector<8x512xf32>
    %51 = vector.extract_strided_slice %50 {offsets = [0, 0], sizes = [8, 128], strides = [1, 1]} : vector<8x512xf32> to vector<8x128xf32>
    %52 = arith.negf %51 : vector<8x128xf32>
    %53 = math.exp %52 : vector<8x128xf32>
    %cst_25 = arith.constant 1.000000e+00 : f32
    %54 = vector.broadcast %cst_25 : f32 to vector<8x128xf32>
    %55 = arith.addf %54, %53 : vector<8x128xf32>
    %56 = arith.divf %54, %55 : vector<8x128xf32>
    %57 = vector.extract_strided_slice %50 {offsets = [0, 128], sizes = [8, 128], strides = [1, 1]} : vector<8x512xf32> to vector<8x128xf32>
    %58 = arith.negf %57 : vector<8x128xf32>
    %59 = math.exp %58 : vector<8x128xf32>
    %cst_26 = arith.constant 1.000000e+00 : f32
    %60 = vector.broadcast %cst_26 : f32 to vector<8x128xf32>
    %61 = arith.addf %60, %59 : vector<8x128xf32>
    %62 = arith.divf %60, %61 : vector<8x128xf32>
    %63 = vector.extract_strided_slice %50 {offsets = [0, 256], sizes = [8, 128], strides = [1, 1]} : vector<8x512xf32> to vector<8x128xf32>
    %64 = math.tanh %63 : vector<8x128xf32>
    %65 = vector.extract_strided_slice %50 {offsets = [0, 384], sizes = [8, 128], strides = [1, 1]} : vector<8x512xf32> to vector<8x128xf32>
    %66 = arith.negf %65 : vector<8x128xf32>
    %67 = math.exp %66 : vector<8x128xf32>
    %cst_27 = arith.constant 1.000000e+00 : f32
    %68 = vector.broadcast %cst_27 : f32 to vector<8x128xf32>
    %69 = arith.addf %68, %67 : vector<8x128xf32>
    %70 = arith.divf %68, %69 : vector<8x128xf32>
    %71 = arith.mulf %62, %15 : vector<8x128xf32>
    %72 = arith.mulf %56, %64 : vector<8x128xf32>
    %73 = arith.addf %71, %72 : vector<8x128xf32>
    %74 = math.tanh %73 : vector<8x128xf32>
    %75 = arith.mulf %70, %74 : vector<8x128xf32>
    %c8 = arith.constant 8 : index
    %c0_28 = arith.constant 0 : index
    %76 = vector.load %arg14[%c8, %c0_28] : memref<64x512xf32, #tpu.memory_space<vmem>>, vector<8x512xf32>
    %77 = arith.truncf %45 : vector<8x128xf32> to vector<8x128xbf16>
    %c0_29 = arith.constant 0 : index
    %c0_30 = arith.constant 0 : index
    %78 = vector.load %arg3[%c0_29, %c0_30] : memref<128x512xbf16, #tpu.memory_space<vmem>>, vector<128x512xbf16>
    %cst_31 = arith.constant dense<0.000000e+00> : vector<8x512xf32>
    %79 = tpu.matmul %77, %78, %cst_31 {dimension_numbers = #tpu.dot_dimension_numbers<[1], [0], [0], [1], [0, 0, 1, 1], [], []>} : vector<8x128xbf16>, vector<128x512xbf16>, vector<8x512xf32> -> vector<8x512xf32>
    %80 = arith.addf %76, %79 : vector<8x512xf32>
    %81 = vector.extract_strided_slice %80 {offsets = [0, 0], sizes = [8, 128], strides = [1, 1]} : vector<8x512xf32> to vector<8x128xf32>
    %82 = arith.negf %81 : vector<8x128xf32>
    %83 = math.exp %82 : vector<8x128xf32>
    %cst_32 = arith.constant 1.000000e+00 : f32
    %84 = vector.broadcast %cst_32 : f32 to vector<8x128xf32>
    %85 = arith.addf %84, %83 : vector<8x128xf32>
    %86 = arith.divf %84, %85 : vector<8x128xf32>
    %87 = vector.extract_strided_slice %80 {offsets = [0, 128], sizes = [8, 128], strides = [1, 1]} : vector<8x512xf32> to vector<8x128xf32>
    %88 = arith.negf %87 : vector<8x128xf32>
    %89 = math.exp %88 : vector<8x128xf32>
    %cst_33 = arith.constant 1.000000e+00 : f32
    %90 = vector.broadcast %cst_33 : f32 to vector<8x128xf32>
    %91 = arith.addf %90, %89 : vector<8x128xf32>
    %92 = arith.divf %90, %91 : vector<8x128xf32>
    %93 = vector.extract_strided_slice %80 {offsets = [0, 256], sizes = [8, 128], strides = [1, 1]} : vector<8x512xf32> to vector<8x128xf32>
    %94 = math.tanh %93 : vector<8x128xf32>
    %95 = vector.extract_strided_slice %80 {offsets = [0, 384], sizes = [8, 128], strides = [1, 1]} : vector<8x512xf32> to vector<8x128xf32>
    %96 = arith.negf %95 : vector<8x128xf32>
    %97 = math.exp %96 : vector<8x128xf32>
    %cst_34 = arith.constant 1.000000e+00 : f32
    %98 = vector.broadcast %cst_34 : f32 to vector<8x128xf32>
    %99 = arith.addf %98, %97 : vector<8x128xf32>
    %100 = arith.divf %98, %99 : vector<8x128xf32>
    %101 = arith.mulf %92, %43 : vector<8x128xf32>
    %102 = arith.mulf %86, %94 : vector<8x128xf32>
    %103 = arith.addf %101, %102 : vector<8x128xf32>
    %104 = math.tanh %103 : vector<8x128xf32>
    %105 = arith.mulf %100, %104 : vector<8x128xf32>
    %106 = tpu.concatenate %105, %75 in 1 : vector<8x128xf32>, vector<8x128xf32> -> vector<8x256xf32>
    %107 = arith.truncf %106 : vector<8x256xf32> to vector<8x256xbf16>
    %c0_35 = arith.constant 0 : index
    %c0_36 = arith.constant 0 : index
    %108 = vector.load %arg5[%c0_35, %c0_36] : memref<256x512xbf16, #tpu.memory_space<vmem>>, vector<256x512xbf16>
    %cst_37 = arith.constant dense<0.000000e+00> : vector<8x512xf32>
    %109 = tpu.matmul %107, %108, %cst_37 {dimension_numbers = #tpu.dot_dimension_numbers<[1], [0], [0], [1], [0, 0, 1, 1], [], []>} : vector<8x256xbf16>, vector<256x512xbf16>, vector<8x512xf32> -> vector<8x512xf32>
    %110 = arith.addf %109, %11 : vector<8x512xf32>
    %111 = vector.extract_strided_slice %110 {offsets = [0, 0], sizes = [8, 128], strides = [1, 1]} : vector<8x512xf32> to vector<8x128xf32>
    %112 = arith.negf %111 : vector<8x128xf32>
    %113 = math.exp %112 : vector<8x128xf32>
    %cst_38 = arith.constant 1.000000e+00 : f32
    %114 = vector.broadcast %cst_38 : f32 to vector<8x128xf32>
    %115 = arith.addf %114, %113 : vector<8x128xf32>
    %116 = arith.divf %114, %115 : vector<8x128xf32>
    %117 = vector.extract_strided_slice %110 {offsets = [0, 128], sizes = [8, 128], strides = [1, 1]} : vector<8x512xf32> to vector<8x128xf32>
    %118 = arith.negf %117 : vector<8x128xf32>
    %119 = math.exp %118 : vector<8x128xf32>
    %cst_39 = arith.constant 1.000000e+00 : f32
    %120 = vector.broadcast %cst_39 : f32 to vector<8x128xf32>
    %121 = arith.addf %120, %119 : vector<8x128xf32>
    %122 = arith.divf %120, %121 : vector<8x128xf32>
    %123 = vector.extract_strided_slice %110 {offsets = [0, 256], sizes = [8, 128], strides = [1, 1]} : vector<8x512xf32> to vector<8x128xf32>
    %124 = math.tanh %123 : vector<8x128xf32>
    %125 = vector.extract_strided_slice %110 {offsets = [0, 384], sizes = [8, 128], strides = [1, 1]} : vector<8x512xf32> to vector<8x128xf32>
    %126 = arith.negf %125 : vector<8x128xf32>
    %127 = math.exp %126 : vector<8x128xf32>
    %cst_40 = arith.constant 1.000000e+00 : f32
    %128 = vector.broadcast %cst_40 : f32 to vector<8x128xf32>
    %129 = arith.addf %128, %127 : vector<8x128xf32>
    %130 = arith.divf %128, %129 : vector<8x128xf32>
    %131 = arith.mulf %122, %73 : vector<8x128xf32>
    %132 = arith.mulf %116, %124 : vector<8x128xf32>
    %133 = arith.addf %131, %132 : vector<8x128xf32>
    %134 = math.tanh %133 : vector<8x128xf32>
    %135 = arith.mulf %130, %134 : vector<8x128xf32>
    %c16 = arith.constant 16 : index
    %c0_41 = arith.constant 0 : index
    %136 = vector.load %arg14[%c16, %c0_41] : memref<64x512xf32, #tpu.memory_space<vmem>>, vector<8x512xf32>
    %137 = arith.truncf %105 : vector<8x128xf32> to vector<8x128xbf16>
    %c0_42 = arith.constant 0 : index
    %c0_43 = arith.constant 0 : index
    %138 = vector.load %arg3[%c0_42, %c0_43] : memref<128x512xbf16, #tpu.memory_space<vmem>>, vector<128x512xbf16>
    %cst_44 = arith.constant dense<0.000000e+00> : vector<8x512xf32>
    %139 = tpu.matmul %137, %138, %cst_44 {dimension_numbers = #tpu.dot_dimension_numbers<[1], [0], [0], [1], [0, 0, 1, 1], [], []>} : vector<8x128xbf16>, vector<128x512xbf16>, vector<8x512xf32> -> vector<8x512xf32>
    %140 = arith.addf %136, %139 : vector<8x512xf32>
    %141 = vector.extract_strided_slice %140 {offsets = [0, 0], sizes = [8, 128], strides = [1, 1]} : vector<8x512xf32> to vector<8x128xf32>
    %142 = arith.negf %141 : vector<8x128xf32>
    %143 = math.exp %142 : vector<8x128xf32>
    %cst_45 = arith.constant 1.000000e+00 : f32
    %144 = vector.broadcast %cst_45 : f32 to vector<8x128xf32>
    %145 = arith.addf %144, %143 : vector<8x128xf32>
    %146 = arith.divf %144, %145 : vector<8x128xf32>
    %147 = vector.extract_strided_slice %140 {offsets = [0, 128], sizes = [8, 128], strides = [1, 1]} : vector<8x512xf32> to vector<8x128xf32>
    %148 = arith.negf %147 : vector<8x128xf32>
    %149 = math.exp %148 : vector<8x128xf32>
    %cst_46 = arith.constant 1.000000e+00 : f32
    %150 = vector.broadcast %cst_46 : f32 to vector<8x128xf32>
    %151 = arith.addf %150, %149 : vector<8x128xf32>
    %152 = arith.divf %150, %151 : vector<8x128xf32>
    %153 = vector.extract_strided_slice %140 {offsets = [0, 256], sizes = [8, 128], strides = [1, 1]} : vector<8x512xf32> to vector<8x128xf32>
    %154 = math.tanh %153 : vector<8x128xf32>
    %155 = vector.extract_strided_slice %140 {offsets = [0, 384], sizes = [8, 128], strides = [1, 1]} : vector<8x512xf32> to vector<8x128xf32>
    %156 = arith.negf %155 : vector<8x128xf32>
    %157 = math.exp %156 : vector<8x128xf32>
    %cst_47 = arith.constant 1.000000e+00 : f32
    %158 = vector.broadcast %cst_47 : f32 to vector<8x128xf32>
    %159 = arith.addf %158, %157 : vector<8x128xf32>
    %160 = arith.divf %158, %159 : vector<8x128xf32>
    %161 = arith.mulf %152, %103 : vector<8x128xf32>
    %162 = arith.mulf %146, %154 : vector<8x128xf32>
    %163 = arith.addf %161, %162 : vector<8x128xf32>
    %164 = math.tanh %163 : vector<8x128xf32>
    %165 = arith.mulf %160, %164 : vector<8x128xf32>
    %166 = tpu.concatenate %165, %135 in 1 : vector<8x128xf32>, vector<8x128xf32> -> vector<8x256xf32>
    %167 = arith.truncf %166 : vector<8x256xf32> to vector<8x256xbf16>
    %c0_48 = arith.constant 0 : index
    %c0_49 = arith.constant 0 : index
    %168 = vector.load %arg5[%c0_48, %c0_49] : memref<256x512xbf16, #tpu.memory_space<vmem>>, vector<256x512xbf16>
    %cst_50 = arith.constant dense<0.000000e+00> : vector<8x512xf32>
    %169 = tpu.matmul %167, %168, %cst_50 {dimension_numbers = #tpu.dot_dimension_numbers<[1], [0], [0], [1], [0, 0, 1, 1], [], []>} : vector<8x256xbf16>, vector<256x512xbf16>, vector<8x512xf32> -> vector<8x512xf32>
    %170 = arith.addf %169, %11 : vector<8x512xf32>
    %171 = vector.extract_strided_slice %170 {offsets = [0, 0], sizes = [8, 128], strides = [1, 1]} : vector<8x512xf32> to vector<8x128xf32>
    %172 = arith.negf %171 : vector<8x128xf32>
    %173 = math.exp %172 : vector<8x128xf32>
    %cst_51 = arith.constant 1.000000e+00 : f32
    %174 = vector.broadcast %cst_51 : f32 to vector<8x128xf32>
    %175 = arith.addf %174, %173 : vector<8x128xf32>
    %176 = arith.divf %174, %175 : vector<8x128xf32>
    %177 = vector.extract_strided_slice %170 {offsets = [0, 128], sizes = [8, 128], strides = [1, 1]} : vector<8x512xf32> to vector<8x128xf32>
    %178 = arith.negf %177 : vector<8x128xf32>
    %179 = math.exp %178 : vector<8x128xf32>
    %cst_52 = arith.constant 1.000000e+00 : f32
    %180 = vector.broadcast %cst_52 : f32 to vector<8x128xf32>
    %181 = arith.addf %180, %179 : vector<8x128xf32>
    %182 = arith.divf %180, %181 : vector<8x128xf32>
    %183 = vector.extract_strided_slice %170 {offsets = [0, 256], sizes = [8, 128], strides = [1, 1]} : vector<8x512xf32> to vector<8x128xf32>
    %184 = math.tanh %183 : vector<8x128xf32>
    %185 = vector.extract_strided_slice %170 {offsets = [0, 384], sizes = [8, 128], strides = [1, 1]} : vector<8x512xf32> to vector<8x128xf32>
    %186 = arith.negf %185 : vector<8x128xf32>
    %187 = math.exp %186 : vector<8x128xf32>
    %cst_53 = arith.constant 1.000000e+00 : f32
    %188 = vector.broadcast %cst_53 : f32 to vector<8x128xf32>
    %189 = arith.addf %188, %187 : vector<8x128xf32>
    %190 = arith.divf %188, %189 : vector<8x128xf32>
    %191 = arith.mulf %182, %133 : vector<8x128xf32>
    %192 = arith.mulf %176, %184 : vector<8x128xf32>
    %193 = arith.addf %191, %192 : vector<8x128xf32>
    %194 = math.tanh %193 : vector<8x128xf32>
    %195 = arith.mulf %190, %194 : vector<8x128xf32>
    %c24 = arith.constant 24 : index
    %c0_54 = arith.constant 0 : index
    %196 = vector.load %arg14[%c24, %c0_54] : memref<64x512xf32, #tpu.memory_space<vmem>>, vector<8x512xf32>
    %197 = arith.truncf %165 : vector<8x128xf32> to vector<8x128xbf16>
    %c0_55 = arith.constant 0 : index
    %c0_56 = arith.constant 0 : index
    %198 = vector.load %arg3[%c0_55, %c0_56] : memref<128x512xbf16, #tpu.memory_space<vmem>>, vector<128x512xbf16>
    %cst_57 = arith.constant dense<0.000000e+00> : vector<8x512xf32>
    %199 = tpu.matmul %197, %198, %cst_57 {dimension_numbers = #tpu.dot_dimension_numbers<[1], [0], [0], [1], [0, 0, 1, 1], [], []>} : vector<8x128xbf16>, vector<128x512xbf16>, vector<8x512xf32> -> vector<8x512xf32>
    %200 = arith.addf %196, %199 : vector<8x512xf32>
    %201 = vector.extract_strided_slice %200 {offsets = [0, 0], sizes = [8, 128], strides = [1, 1]} : vector<8x512xf32> to vector<8x128xf32>
    %202 = arith.negf %201 : vector<8x128xf32>
    %203 = math.exp %202 : vector<8x128xf32>
    %cst_58 = arith.constant 1.000000e+00 : f32
    %204 = vector.broadcast %cst_58 : f32 to vector<8x128xf32>
    %205 = arith.addf %204, %203 : vector<8x128xf32>
    %206 = arith.divf %204, %205 : vector<8x128xf32>
    %207 = vector.extract_strided_slice %200 {offsets = [0, 128], sizes = [8, 128], strides = [1, 1]} : vector<8x512xf32> to vector<8x128xf32>
    %208 = arith.negf %207 : vector<8x128xf32>
    %209 = math.exp %208 : vector<8x128xf32>
    %cst_59 = arith.constant 1.000000e+00 : f32
    %210 = vector.broadcast %cst_59 : f32 to vector<8x128xf32>
    %211 = arith.addf %210, %209 : vector<8x128xf32>
    %212 = arith.divf %210, %211 : vector<8x128xf32>
    %213 = vector.extract_strided_slice %200 {offsets = [0, 256], sizes = [8, 128], strides = [1, 1]} : vector<8x512xf32> to vector<8x128xf32>
    %214 = math.tanh %213 : vector<8x128xf32>
    %215 = vector.extract_strided_slice %200 {offsets = [0, 384], sizes = [8, 128], strides = [1, 1]} : vector<8x512xf32> to vector<8x128xf32>
    %216 = arith.negf %215 : vector<8x128xf32>
    %217 = math.exp %216 : vector<8x128xf32>
    %cst_60 = arith.constant 1.000000e+00 : f32
    %218 = vector.broadcast %cst_60 : f32 to vector<8x128xf32>
    %219 = arith.addf %218, %217 : vector<8x128xf32>
    %220 = arith.divf %218, %219 : vector<8x128xf32>
    %221 = arith.mulf %212, %163 : vector<8x128xf32>
    %222 = arith.mulf %206, %214 : vector<8x128xf32>
    %223 = arith.addf %221, %222 : vector<8x128xf32>
    %224 = math.tanh %223 : vector<8x128xf32>
    %225 = arith.mulf %220, %224 : vector<8x128xf32>
    %226 = tpu.concatenate %225, %195 in 1 : vector<8x128xf32>, vector<8x128xf32> -> vector<8x256xf32>
    %227 = arith.truncf %226 : vector<8x256xf32> to vector<8x256xbf16>
    %c0_61 = arith.constant 0 : index
    %c0_62 = arith.constant 0 : index
    %228 = vector.load %arg5[%c0_61, %c0_62] : memref<256x512xbf16, #tpu.memory_space<vmem>>, vector<256x512xbf16>
    %cst_63 = arith.constant dense<0.000000e+00> : vector<8x512xf32>
    %229 = tpu.matmul %227, %228, %cst_63 {dimension_numbers = #tpu.dot_dimension_numbers<[1], [0], [0], [1], [0, 0, 1, 1], [], []>} : vector<8x256xbf16>, vector<256x512xbf16>, vector<8x512xf32> -> vector<8x512xf32>
    %230 = arith.addf %229, %11 : vector<8x512xf32>
    %231 = vector.extract_strided_slice %230 {offsets = [0, 0], sizes = [8, 128], strides = [1, 1]} : vector<8x512xf32> to vector<8x128xf32>
    %232 = arith.negf %231 : vector<8x128xf32>
    %233 = math.exp %232 : vector<8x128xf32>
    %cst_64 = arith.constant 1.000000e+00 : f32
    %234 = vector.broadcast %cst_64 : f32 to vector<8x128xf32>
    %235 = arith.addf %234, %233 : vector<8x128xf32>
    %236 = arith.divf %234, %235 : vector<8x128xf32>
    %237 = vector.extract_strided_slice %230 {offsets = [0, 128], sizes = [8, 128], strides = [1, 1]} : vector<8x512xf32> to vector<8x128xf32>
    %238 = arith.negf %237 : vector<8x128xf32>
    %239 = math.exp %238 : vector<8x128xf32>
    %cst_65 = arith.constant 1.000000e+00 : f32
    %240 = vector.broadcast %cst_65 : f32 to vector<8x128xf32>
    %241 = arith.addf %240, %239 : vector<8x128xf32>
    %242 = arith.divf %240, %241 : vector<8x128xf32>
    %243 = vector.extract_strided_slice %230 {offsets = [0, 256], sizes = [8, 128], strides = [1, 1]} : vector<8x512xf32> to vector<8x128xf32>
    %244 = math.tanh %243 : vector<8x128xf32>
    %245 = vector.extract_strided_slice %230 {offsets = [0, 384], sizes = [8, 128], strides = [1, 1]} : vector<8x512xf32> to vector<8x128xf32>
    %246 = arith.negf %245 : vector<8x128xf32>
    %247 = math.exp %246 : vector<8x128xf32>
    %cst_66 = arith.constant 1.000000e+00 : f32
    %248 = vector.broadcast %cst_66 : f32 to vector<8x128xf32>
    %249 = arith.addf %248, %247 : vector<8x128xf32>
    %250 = arith.divf %248, %249 : vector<8x128xf32>
    %251 = arith.mulf %242, %193 : vector<8x128xf32>
    %252 = arith.mulf %236, %244 : vector<8x128xf32>
    %253 = arith.addf %251, %252 : vector<8x128xf32>
    %254 = math.tanh %253 : vector<8x128xf32>
    %255 = arith.mulf %250, %254 : vector<8x128xf32>
    %c32 = arith.constant 32 : index
    %c0_67 = arith.constant 0 : index
    %256 = vector.load %arg14[%c32, %c0_67] : memref<64x512xf32, #tpu.memory_space<vmem>>, vector<8x512xf32>
    %257 = arith.truncf %225 : vector<8x128xf32> to vector<8x128xbf16>
    %c0_68 = arith.constant 0 : index
    %c0_69 = arith.constant 0 : index
    %258 = vector.load %arg3[%c0_68, %c0_69] : memref<128x512xbf16, #tpu.memory_space<vmem>>, vector<128x512xbf16>
    %cst_70 = arith.constant dense<0.000000e+00> : vector<8x512xf32>
    %259 = tpu.matmul %257, %258, %cst_70 {dimension_numbers = #tpu.dot_dimension_numbers<[1], [0], [0], [1], [0, 0, 1, 1], [], []>} : vector<8x128xbf16>, vector<128x512xbf16>, vector<8x512xf32> -> vector<8x512xf32>
    %260 = arith.addf %256, %259 : vector<8x512xf32>
    %261 = vector.extract_strided_slice %260 {offsets = [0, 0], sizes = [8, 128], strides = [1, 1]} : vector<8x512xf32> to vector<8x128xf32>
    %262 = arith.negf %261 : vector<8x128xf32>
    %263 = math.exp %262 : vector<8x128xf32>
    %cst_71 = arith.constant 1.000000e+00 : f32
    %264 = vector.broadcast %cst_71 : f32 to vector<8x128xf32>
    %265 = arith.addf %264, %263 : vector<8x128xf32>
    %266 = arith.divf %264, %265 : vector<8x128xf32>
    %267 = vector.extract_strided_slice %260 {offsets = [0, 128], sizes = [8, 128], strides = [1, 1]} : vector<8x512xf32> to vector<8x128xf32>
    %268 = arith.negf %267 : vector<8x128xf32>
    %269 = math.exp %268 : vector<8x128xf32>
    %cst_72 = arith.constant 1.000000e+00 : f32
    %270 = vector.broadcast %cst_72 : f32 to vector<8x128xf32>
    %271 = arith.addf %270, %269 : vector<8x128xf32>
    %272 = arith.divf %270, %271 : vector<8x128xf32>
    %273 = vector.extract_strided_slice %260 {offsets = [0, 256], sizes = [8, 128], strides = [1, 1]} : vector<8x512xf32> to vector<8x128xf32>
    %274 = math.tanh %273 : vector<8x128xf32>
    %275 = vector.extract_strided_slice %260 {offsets = [0, 384], sizes = [8, 128], strides = [1, 1]} : vector<8x512xf32> to vector<8x128xf32>
    %276 = arith.negf %275 : vector<8x128xf32>
    %277 = math.exp %276 : vector<8x128xf32>
    %cst_73 = arith.constant 1.000000e+00 : f32
    %278 = vector.broadcast %cst_73 : f32 to vector<8x128xf32>
    %279 = arith.addf %278, %277 : vector<8x128xf32>
    %280 = arith.divf %278, %279 : vector<8x128xf32>
    %281 = arith.mulf %272, %223 : vector<8x128xf32>
    %282 = arith.mulf %266, %274 : vector<8x128xf32>
    %283 = arith.addf %281, %282 : vector<8x128xf32>
    %284 = math.tanh %283 : vector<8x128xf32>
    %285 = arith.mulf %280, %284 : vector<8x128xf32>
    %286 = tpu.concatenate %285, %255 in 1 : vector<8x128xf32>, vector<8x128xf32> -> vector<8x256xf32>
    %287 = arith.truncf %286 : vector<8x256xf32> to vector<8x256xbf16>
    %c0_74 = arith.constant 0 : index
    %c0_75 = arith.constant 0 : index
    %288 = vector.load %arg5[%c0_74, %c0_75] : memref<256x512xbf16, #tpu.memory_space<vmem>>, vector<256x512xbf16>
    %cst_76 = arith.constant dense<0.000000e+00> : vector<8x512xf32>
    %289 = tpu.matmul %287, %288, %cst_76 {dimension_numbers = #tpu.dot_dimension_numbers<[1], [0], [0], [1], [0, 0, 1, 1], [], []>} : vector<8x256xbf16>, vector<256x512xbf16>, vector<8x512xf32> -> vector<8x512xf32>
    %290 = arith.addf %289, %11 : vector<8x512xf32>
    %291 = vector.extract_strided_slice %290 {offsets = [0, 0], sizes = [8, 128], strides = [1, 1]} : vector<8x512xf32> to vector<8x128xf32>
    %292 = arith.negf %291 : vector<8x128xf32>
    %293 = math.exp %292 : vector<8x128xf32>
    %cst_77 = arith.constant 1.000000e+00 : f32
    %294 = vector.broadcast %cst_77 : f32 to vector<8x128xf32>
    %295 = arith.addf %294, %293 : vector<8x128xf32>
    %296 = arith.divf %294, %295 : vector<8x128xf32>
    %297 = vector.extract_strided_slice %290 {offsets = [0, 128], sizes = [8, 128], strides = [1, 1]} : vector<8x512xf32> to vector<8x128xf32>
    %298 = arith.negf %297 : vector<8x128xf32>
    %299 = math.exp %298 : vector<8x128xf32>
    %cst_78 = arith.constant 1.000000e+00 : f32
    %300 = vector.broadcast %cst_78 : f32 to vector<8x128xf32>
    %301 = arith.addf %300, %299 : vector<8x128xf32>
    %302 = arith.divf %300, %301 : vector<8x128xf32>
    %303 = vector.extract_strided_slice %290 {offsets = [0, 256], sizes = [8, 128], strides = [1, 1]} : vector<8x512xf32> to vector<8x128xf32>
    %304 = math.tanh %303 : vector<8x128xf32>
    %305 = vector.extract_strided_slice %290 {offsets = [0, 384], sizes = [8, 128], strides = [1, 1]} : vector<8x512xf32> to vector<8x128xf32>
    %306 = arith.negf %305 : vector<8x128xf32>
    %307 = math.exp %306 : vector<8x128xf32>
    %cst_79 = arith.constant 1.000000e+00 : f32
    %308 = vector.broadcast %cst_79 : f32 to vector<8x128xf32>
    %309 = arith.addf %308, %307 : vector<8x128xf32>
    %310 = arith.divf %308, %309 : vector<8x128xf32>
    %311 = arith.mulf %302, %253 : vector<8x128xf32>
    %312 = arith.mulf %296, %304 : vector<8x128xf32>
    %313 = arith.addf %311, %312 : vector<8x128xf32>
    %314 = math.tanh %313 : vector<8x128xf32>
    %315 = arith.mulf %310, %314 : vector<8x128xf32>
    %c40 = arith.constant 40 : index
    %c0_80 = arith.constant 0 : index
    %316 = vector.load %arg14[%c40, %c0_80] : memref<64x512xf32, #tpu.memory_space<vmem>>, vector<8x512xf32>
    %317 = arith.truncf %285 : vector<8x128xf32> to vector<8x128xbf16>
    %c0_81 = arith.constant 0 : index
    %c0_82 = arith.constant 0 : index
    %318 = vector.load %arg3[%c0_81, %c0_82] : memref<128x512xbf16, #tpu.memory_space<vmem>>, vector<128x512xbf16>
    %cst_83 = arith.constant dense<0.000000e+00> : vector<8x512xf32>
    %319 = tpu.matmul %317, %318, %cst_83 {dimension_numbers = #tpu.dot_dimension_numbers<[1], [0], [0], [1], [0, 0, 1, 1], [], []>} : vector<8x128xbf16>, vector<128x512xbf16>, vector<8x512xf32> -> vector<8x512xf32>
    %320 = arith.addf %316, %319 : vector<8x512xf32>
    %321 = vector.extract_strided_slice %320 {offsets = [0, 0], sizes = [8, 128], strides = [1, 1]} : vector<8x512xf32> to vector<8x128xf32>
    %322 = arith.negf %321 : vector<8x128xf32>
    %323 = math.exp %322 : vector<8x128xf32>
    %cst_84 = arith.constant 1.000000e+00 : f32
    %324 = vector.broadcast %cst_84 : f32 to vector<8x128xf32>
    %325 = arith.addf %324, %323 : vector<8x128xf32>
    %326 = arith.divf %324, %325 : vector<8x128xf32>
    %327 = vector.extract_strided_slice %320 {offsets = [0, 128], sizes = [8, 128], strides = [1, 1]} : vector<8x512xf32> to vector<8x128xf32>
    %328 = arith.negf %327 : vector<8x128xf32>
    %329 = math.exp %328 : vector<8x128xf32>
    %cst_85 = arith.constant 1.000000e+00 : f32
    %330 = vector.broadcast %cst_85 : f32 to vector<8x128xf32>
    %331 = arith.addf %330, %329 : vector<8x128xf32>
    %332 = arith.divf %330, %331 : vector<8x128xf32>
    %333 = vector.extract_strided_slice %320 {offsets = [0, 256], sizes = [8, 128], strides = [1, 1]} : vector<8x512xf32> to vector<8x128xf32>
    %334 = math.tanh %333 : vector<8x128xf32>
    %335 = vector.extract_strided_slice %320 {offsets = [0, 384], sizes = [8, 128], strides = [1, 1]} : vector<8x512xf32> to vector<8x128xf32>
    %336 = arith.negf %335 : vector<8x128xf32>
    %337 = math.exp %336 : vector<8x128xf32>
    %cst_86 = arith.constant 1.000000e+00 : f32
    %338 = vector.broadcast %cst_86 : f32 to vector<8x128xf32>
    %339 = arith.addf %338, %337 : vector<8x128xf32>
    %340 = arith.divf %338, %339 : vector<8x128xf32>
    %341 = arith.mulf %332, %283 : vector<8x128xf32>
    %342 = arith.mulf %326, %334 : vector<8x128xf32>
    %343 = arith.addf %341, %342 : vector<8x128xf32>
    %344 = math.tanh %343 : vector<8x128xf32>
    %345 = arith.mulf %340, %344 : vector<8x128xf32>
    %346 = tpu.concatenate %345, %315 in 1 : vector<8x128xf32>, vector<8x128xf32> -> vector<8x256xf32>
    %347 = arith.truncf %346 : vector<8x256xf32> to vector<8x256xbf16>
    %c0_87 = arith.constant 0 : index
    %c0_88 = arith.constant 0 : index
    %348 = vector.load %arg5[%c0_87, %c0_88] : memref<256x512xbf16, #tpu.memory_space<vmem>>, vector<256x512xbf16>
    %cst_89 = arith.constant dense<0.000000e+00> : vector<8x512xf32>
    %349 = tpu.matmul %347, %348, %cst_89 {dimension_numbers = #tpu.dot_dimension_numbers<[1], [0], [0], [1], [0, 0, 1, 1], [], []>} : vector<8x256xbf16>, vector<256x512xbf16>, vector<8x512xf32> -> vector<8x512xf32>
    %350 = arith.addf %349, %11 : vector<8x512xf32>
    %351 = vector.extract_strided_slice %350 {offsets = [0, 0], sizes = [8, 128], strides = [1, 1]} : vector<8x512xf32> to vector<8x128xf32>
    %352 = arith.negf %351 : vector<8x128xf32>
    %353 = math.exp %352 : vector<8x128xf32>
    %cst_90 = arith.constant 1.000000e+00 : f32
    %354 = vector.broadcast %cst_90 : f32 to vector<8x128xf32>
    %355 = arith.addf %354, %353 : vector<8x128xf32>
    %356 = arith.divf %354, %355 : vector<8x128xf32>
    %357 = vector.extract_strided_slice %350 {offsets = [0, 128], sizes = [8, 128], strides = [1, 1]} : vector<8x512xf32> to vector<8x128xf32>
    %358 = arith.negf %357 : vector<8x128xf32>
    %359 = math.exp %358 : vector<8x128xf32>
    %cst_91 = arith.constant 1.000000e+00 : f32
    %360 = vector.broadcast %cst_91 : f32 to vector<8x128xf32>
    %361 = arith.addf %360, %359 : vector<8x128xf32>
    %362 = arith.divf %360, %361 : vector<8x128xf32>
    %363 = vector.extract_strided_slice %350 {offsets = [0, 256], sizes = [8, 128], strides = [1, 1]} : vector<8x512xf32> to vector<8x128xf32>
    %364 = math.tanh %363 : vector<8x128xf32>
    %365 = vector.extract_strided_slice %350 {offsets = [0, 384], sizes = [8, 128], strides = [1, 1]} : vector<8x512xf32> to vector<8x128xf32>
    %366 = arith.negf %365 : vector<8x128xf32>
    %367 = math.exp %366 : vector<8x128xf32>
    %cst_92 = arith.constant 1.000000e+00 : f32
    %368 = vector.broadcast %cst_92 : f32 to vector<8x128xf32>
    %369 = arith.addf %368, %367 : vector<8x128xf32>
    %370 = arith.divf %368, %369 : vector<8x128xf32>
    %371 = arith.mulf %362, %313 : vector<8x128xf32>
    %372 = arith.mulf %356, %364 : vector<8x128xf32>
    %373 = arith.addf %371, %372 : vector<8x128xf32>
    %374 = math.tanh %373 : vector<8x128xf32>
    %375 = arith.mulf %370, %374 : vector<8x128xf32>
    %c48 = arith.constant 48 : index
    %c0_93 = arith.constant 0 : index
    %376 = vector.load %arg14[%c48, %c0_93] : memref<64x512xf32, #tpu.memory_space<vmem>>, vector<8x512xf32>
    %377 = arith.truncf %345 : vector<8x128xf32> to vector<8x128xbf16>
    %c0_94 = arith.constant 0 : index
    %c0_95 = arith.constant 0 : index
    %378 = vector.load %arg3[%c0_94, %c0_95] : memref<128x512xbf16, #tpu.memory_space<vmem>>, vector<128x512xbf16>
    %cst_96 = arith.constant dense<0.000000e+00> : vector<8x512xf32>
    %379 = tpu.matmul %377, %378, %cst_96 {dimension_numbers = #tpu.dot_dimension_numbers<[1], [0], [0], [1], [0, 0, 1, 1], [], []>} : vector<8x128xbf16>, vector<128x512xbf16>, vector<8x512xf32> -> vector<8x512xf32>
    %380 = arith.addf %376, %379 : vector<8x512xf32>
    %381 = vector.extract_strided_slice %380 {offsets = [0, 0], sizes = [8, 128], strides = [1, 1]} : vector<8x512xf32> to vector<8x128xf32>
    %382 = arith.negf %381 : vector<8x128xf32>
    %383 = math.exp %382 : vector<8x128xf32>
    %cst_97 = arith.constant 1.000000e+00 : f32
    %384 = vector.broadcast %cst_97 : f32 to vector<8x128xf32>
    %385 = arith.addf %384, %383 : vector<8x128xf32>
    %386 = arith.divf %384, %385 : vector<8x128xf32>
    %387 = vector.extract_strided_slice %380 {offsets = [0, 128], sizes = [8, 128], strides = [1, 1]} : vector<8x512xf32> to vector<8x128xf32>
    %388 = arith.negf %387 : vector<8x128xf32>
    %389 = math.exp %388 : vector<8x128xf32>
    %cst_98 = arith.constant 1.000000e+00 : f32
    %390 = vector.broadcast %cst_98 : f32 to vector<8x128xf32>
    %391 = arith.addf %390, %389 : vector<8x128xf32>
    %392 = arith.divf %390, %391 : vector<8x128xf32>
    %393 = vector.extract_strided_slice %380 {offsets = [0, 256], sizes = [8, 128], strides = [1, 1]} : vector<8x512xf32> to vector<8x128xf32>
    %394 = math.tanh %393 : vector<8x128xf32>
    %395 = vector.extract_strided_slice %380 {offsets = [0, 384], sizes = [8, 128], strides = [1, 1]} : vector<8x512xf32> to vector<8x128xf32>
    %396 = arith.negf %395 : vector<8x128xf32>
    %397 = math.exp %396 : vector<8x128xf32>
    %cst_99 = arith.constant 1.000000e+00 : f32
    %398 = vector.broadcast %cst_99 : f32 to vector<8x128xf32>
    %399 = arith.addf %398, %397 : vector<8x128xf32>
    %400 = arith.divf %398, %399 : vector<8x128xf32>
    %401 = arith.mulf %392, %343 : vector<8x128xf32>
    %402 = arith.mulf %386, %394 : vector<8x128xf32>
    %403 = arith.addf %401, %402 : vector<8x128xf32>
    %404 = math.tanh %403 : vector<8x128xf32>
    %405 = arith.mulf %400, %404 : vector<8x128xf32>
    %406 = tpu.concatenate %405, %375 in 1 : vector<8x128xf32>, vector<8x128xf32> -> vector<8x256xf32>
    %407 = arith.truncf %406 : vector<8x256xf32> to vector<8x256xbf16>
    %c0_100 = arith.constant 0 : index
    %c0_101 = arith.constant 0 : index
    %408 = vector.load %arg5[%c0_100, %c0_101] : memref<256x512xbf16, #tpu.memory_space<vmem>>, vector<256x512xbf16>
    %cst_102 = arith.constant dense<0.000000e+00> : vector<8x512xf32>
    %409 = tpu.matmul %407, %408, %cst_102 {dimension_numbers = #tpu.dot_dimension_numbers<[1], [0], [0], [1], [0, 0, 1, 1], [], []>} : vector<8x256xbf16>, vector<256x512xbf16>, vector<8x512xf32> -> vector<8x512xf32>
    %410 = arith.addf %409, %11 : vector<8x512xf32>
    %411 = vector.extract_strided_slice %410 {offsets = [0, 0], sizes = [8, 128], strides = [1, 1]} : vector<8x512xf32> to vector<8x128xf32>
    %412 = arith.negf %411 : vector<8x128xf32>
    %413 = math.exp %412 : vector<8x128xf32>
    %cst_103 = arith.constant 1.000000e+00 : f32
    %414 = vector.broadcast %cst_103 : f32 to vector<8x128xf32>
    %415 = arith.addf %414, %413 : vector<8x128xf32>
    %416 = arith.divf %414, %415 : vector<8x128xf32>
    %417 = vector.extract_strided_slice %410 {offsets = [0, 128], sizes = [8, 128], strides = [1, 1]} : vector<8x512xf32> to vector<8x128xf32>
    %418 = arith.negf %417 : vector<8x128xf32>
    %419 = math.exp %418 : vector<8x128xf32>
    %cst_104 = arith.constant 1.000000e+00 : f32
    %420 = vector.broadcast %cst_104 : f32 to vector<8x128xf32>
    %421 = arith.addf %420, %419 : vector<8x128xf32>
    %422 = arith.divf %420, %421 : vector<8x128xf32>
    %423 = vector.extract_strided_slice %410 {offsets = [0, 256], sizes = [8, 128], strides = [1, 1]} : vector<8x512xf32> to vector<8x128xf32>
    %424 = math.tanh %423 : vector<8x128xf32>
    %425 = vector.extract_strided_slice %410 {offsets = [0, 384], sizes = [8, 128], strides = [1, 1]} : vector<8x512xf32> to vector<8x128xf32>
    %426 = arith.negf %425 : vector<8x128xf32>
    %427 = math.exp %426 : vector<8x128xf32>
    %cst_105 = arith.constant 1.000000e+00 : f32
    %428 = vector.broadcast %cst_105 : f32 to vector<8x128xf32>
    %429 = arith.addf %428, %427 : vector<8x128xf32>
    %430 = arith.divf %428, %429 : vector<8x128xf32>
    %431 = arith.mulf %422, %373 : vector<8x128xf32>
    %432 = arith.mulf %416, %424 : vector<8x128xf32>
    %433 = arith.addf %431, %432 : vector<8x128xf32>
    %434 = math.tanh %433 : vector<8x128xf32>
    %435 = arith.mulf %430, %434 : vector<8x128xf32>
    %c56 = arith.constant 56 : index
    %c0_106 = arith.constant 0 : index
    %436 = vector.load %arg14[%c56, %c0_106] : memref<64x512xf32, #tpu.memory_space<vmem>>, vector<8x512xf32>
    %437 = arith.truncf %405 : vector<8x128xf32> to vector<8x128xbf16>
    %c0_107 = arith.constant 0 : index
    %c0_108 = arith.constant 0 : index
    %438 = vector.load %arg3[%c0_107, %c0_108] : memref<128x512xbf16, #tpu.memory_space<vmem>>, vector<128x512xbf16>
    %cst_109 = arith.constant dense<0.000000e+00> : vector<8x512xf32>
    %439 = tpu.matmul %437, %438, %cst_109 {dimension_numbers = #tpu.dot_dimension_numbers<[1], [0], [0], [1], [0, 0, 1, 1], [], []>} : vector<8x128xbf16>, vector<128x512xbf16>, vector<8x512xf32> -> vector<8x512xf32>
    %440 = arith.addf %436, %439 : vector<8x512xf32>
    %441 = vector.extract_strided_slice %440 {offsets = [0, 0], sizes = [8, 128], strides = [1, 1]} : vector<8x512xf32> to vector<8x128xf32>
    %442 = arith.negf %441 : vector<8x128xf32>
    %443 = math.exp %442 : vector<8x128xf32>
    %cst_110 = arith.constant 1.000000e+00 : f32
    %444 = vector.broadcast %cst_110 : f32 to vector<8x128xf32>
    %445 = arith.addf %444, %443 : vector<8x128xf32>
    %446 = arith.divf %444, %445 : vector<8x128xf32>
    %447 = vector.extract_strided_slice %440 {offsets = [0, 128], sizes = [8, 128], strides = [1, 1]} : vector<8x512xf32> to vector<8x128xf32>
    %448 = arith.negf %447 : vector<8x128xf32>
    %449 = math.exp %448 : vector<8x128xf32>
    %cst_111 = arith.constant 1.000000e+00 : f32
    %450 = vector.broadcast %cst_111 : f32 to vector<8x128xf32>
    %451 = arith.addf %450, %449 : vector<8x128xf32>
    %452 = arith.divf %450, %451 : vector<8x128xf32>
    %453 = vector.extract_strided_slice %440 {offsets = [0, 256], sizes = [8, 128], strides = [1, 1]} : vector<8x512xf32> to vector<8x128xf32>
    %454 = math.tanh %453 : vector<8x128xf32>
    %455 = vector.extract_strided_slice %440 {offsets = [0, 384], sizes = [8, 128], strides = [1, 1]} : vector<8x512xf32> to vector<8x128xf32>
    %456 = arith.negf %455 : vector<8x128xf32>
    %457 = math.exp %456 : vector<8x128xf32>
    %cst_112 = arith.constant 1.000000e+00 : f32
    %458 = vector.broadcast %cst_112 : f32 to vector<8x128xf32>
    %459 = arith.addf %458, %457 : vector<8x128xf32>
    %460 = arith.divf %458, %459 : vector<8x128xf32>
    %461 = arith.mulf %452, %403 : vector<8x128xf32>
    %462 = arith.mulf %446, %454 : vector<8x128xf32>
    %463 = arith.addf %461, %462 : vector<8x128xf32>
    %464 = math.tanh %463 : vector<8x128xf32>
    %465 = arith.mulf %460, %464 : vector<8x128xf32>
    %466 = tpu.concatenate %465, %435 in 1 : vector<8x128xf32>, vector<8x128xf32> -> vector<8x256xf32>
    %467 = arith.truncf %466 : vector<8x256xf32> to vector<8x256xbf16>
    %c0_113 = arith.constant 0 : index
    %c0_114 = arith.constant 0 : index
    %468 = vector.load %arg5[%c0_113, %c0_114] : memref<256x512xbf16, #tpu.memory_space<vmem>>, vector<256x512xbf16>
    %cst_115 = arith.constant dense<0.000000e+00> : vector<8x512xf32>
    %469 = tpu.matmul %467, %468, %cst_115 {dimension_numbers = #tpu.dot_dimension_numbers<[1], [0], [0], [1], [0, 0, 1, 1], [], []>} : vector<8x256xbf16>, vector<256x512xbf16>, vector<8x512xf32> -> vector<8x512xf32>
    %470 = arith.addf %469, %11 : vector<8x512xf32>
    %471 = vector.extract_strided_slice %470 {offsets = [0, 0], sizes = [8, 128], strides = [1, 1]} : vector<8x512xf32> to vector<8x128xf32>
    %472 = arith.negf %471 : vector<8x128xf32>
    %473 = math.exp %472 : vector<8x128xf32>
    %cst_116 = arith.constant 1.000000e+00 : f32
    %474 = vector.broadcast %cst_116 : f32 to vector<8x128xf32>
    %475 = arith.addf %474, %473 : vector<8x128xf32>
    %476 = arith.divf %474, %475 : vector<8x128xf32>
    %477 = vector.extract_strided_slice %470 {offsets = [0, 128], sizes = [8, 128], strides = [1, 1]} : vector<8x512xf32> to vector<8x128xf32>
    %478 = arith.negf %477 : vector<8x128xf32>
    %479 = math.exp %478 : vector<8x128xf32>
    %cst_117 = arith.constant 1.000000e+00 : f32
    %480 = vector.broadcast %cst_117 : f32 to vector<8x128xf32>
    %481 = arith.addf %480, %479 : vector<8x128xf32>
    %482 = arith.divf %480, %481 : vector<8x128xf32>
    %483 = vector.extract_strided_slice %470 {offsets = [0, 256], sizes = [8, 128], strides = [1, 1]} : vector<8x512xf32> to vector<8x128xf32>
    %484 = math.tanh %483 : vector<8x128xf32>
    %485 = vector.extract_strided_slice %470 {offsets = [0, 384], sizes = [8, 128], strides = [1, 1]} : vector<8x512xf32> to vector<8x128xf32>
    %486 = arith.negf %485 : vector<8x128xf32>
    %487 = math.exp %486 : vector<8x128xf32>
    %cst_118 = arith.constant 1.000000e+00 : f32
    %488 = vector.broadcast %cst_118 : f32 to vector<8x128xf32>
    %489 = arith.addf %488, %487 : vector<8x128xf32>
    %490 = arith.divf %488, %489 : vector<8x128xf32>
    %491 = arith.mulf %482, %433 : vector<8x128xf32>
    %492 = arith.mulf %476, %484 : vector<8x128xf32>
    %493 = arith.addf %491, %492 : vector<8x128xf32>
    %494 = math.tanh %493 : vector<8x128xf32>
    %495 = arith.mulf %490, %494 : vector<8x128xf32>
    %496 = arith.truncf %495 : vector<8x128xf32> to vector<8x128xbf16>
    %c0_119 = arith.constant 0 : index
    %c0_120 = arith.constant 0 : index
    %497 = vector.load %arg7[%c0_119, %c0_120] : memref<128x128xbf16, #tpu.memory_space<vmem>>, vector<128x128xbf16>
    %cst_121 = arith.constant dense<0.000000e+00> : vector<8x128xf32>
    %498 = tpu.matmul %496, %497, %cst_121 {dimension_numbers = #tpu.dot_dimension_numbers<[1], [0], [0], [1], [0, 0, 1, 1], [], []>} : vector<8x128xbf16>, vector<128x128xbf16>, vector<8x128xf32> -> vector<8x128xf32>
    %c0_122 = arith.constant 0 : index
    %c0_123 = arith.constant 0 : index
    %499 = vector.load %arg8[%c0_122, %c0_123] : memref<1x128xf32, #tpu.memory_space<vmem>>, vector<1x128xf32>
    %500 = vector.broadcast %499 : vector<1x128xf32> to vector<8x128xf32>
    %501 = arith.addf %498, %500 : vector<8x128xf32>
    %cst_124 = arith.constant 0.000000e+00 : f32
    %502 = vector.broadcast %cst_124 : f32 to vector<8x128xf32>
    %503 = arith.maximumf %501, %502 : vector<8x128xf32>
    %504 = arith.truncf %503 : vector<8x128xf32> to vector<8x128xbf16>
    %c0_125 = arith.constant 0 : index
    %c0_126 = arith.constant 0 : index
    %505 = vector.load %arg9[%c0_125, %c0_126] : memref<128x128xbf16, #tpu.memory_space<vmem>>, vector<128x128xbf16>
    %cst_127 = arith.constant dense<0.000000e+00> : vector<8x128xf32>
    %506 = tpu.matmul %504, %505, %cst_127 {dimension_numbers = #tpu.dot_dimension_numbers<[1], [0], [0], [1], [0, 0, 1, 1], [], []>} : vector<8x128xbf16>, vector<128x128xbf16>, vector<8x128xf32> -> vector<8x128xf32>
    %c0_128 = arith.constant 0 : index
    %c0_129 = arith.constant 0 : index
    %507 = vector.load %arg10[%c0_128, %c0_129] : memref<1x128xf32, #tpu.memory_space<vmem>>, vector<1x128xf32>
    %508 = vector.broadcast %507 : vector<1x128xf32> to vector<8x128xf32>
    %509 = arith.addf %506, %508 : vector<8x128xf32>
    %cst_130 = arith.constant 0.000000e+00 : f32
    %510 = vector.broadcast %cst_130 : f32 to vector<8x128xf32>
    %511 = arith.maximumf %509, %510 : vector<8x128xf32>
    %512 = arith.truncf %511 : vector<8x128xf32> to vector<8x128xbf16>
    %c0_131 = arith.constant 0 : index
    %c0_132 = arith.constant 0 : index
    %513 = vector.load %arg11[%c0_131, %c0_132] : memref<128x4xbf16, #tpu.memory_space<vmem>>, vector<128x4xbf16>
    %cst_133 = arith.constant dense<0.000000e+00> : vector<8x4xf32>
    %514 = tpu.matmul %512, %513, %cst_133 {dimension_numbers = #tpu.dot_dimension_numbers<[1], [0], [0], [1], [0, 0, 1, 1], [], []>} : vector<8x128xbf16>, vector<128x4xbf16>, vector<8x4xf32> -> vector<8x4xf32>
    %c0_134 = arith.constant 0 : index
    %c0_135 = arith.constant 0 : index
    %515 = vector.load %arg12[%c0_134, %c0_135] : memref<1x4xf32, #tpu.memory_space<vmem>>, vector<1x4xf32>
    %516 = vector.broadcast %515 : vector<1x4xf32> to vector<8x4xf32>
    %517 = arith.addf %514, %516 : vector<8x4xf32>
    %c0_136 = arith.constant 0 : index
    %c0_137 = arith.constant 0 : index
    %518 = vector.load %arg13[%c0_136, %c0_137] : memref<8x4xf32, #tpu.memory_space<vmem>>, vector<8x4xf32>
    tpu.vector_store %arg13[%c0_136, %c0_137], %517 {strides = array<i32>} : memref<8x4xf32, #tpu.memory_space<vmem>>, vector<8x4xf32>,
    return
  }
  func.func @transform_0(%arg0: i32) -> (i32, i32, i32) {
    %c0_i32 = arith.constant 0 : i32
    %c0_i32_0 = arith.constant 0 : i32
    %c0_i32_1 = arith.constant 0 : i32
    return %c0_i32, %arg0, %c0_i32_0 : i32, i32, i32
  }
  func.func @transform_1(%arg0: i32) -> (i32, i32) {
    %c0_i32 = arith.constant 0 : i32
    %c0_i32_0 = arith.constant 0 : i32
    %c0_i32_1 = arith.constant 0 : i32
    return %c0_i32, %c0_i32_0 : i32, i32
  }
  func.func @transform_2(%arg0: i32) -> (i32, i32) {
    %c0_i32 = arith.constant 0 : i32
    %c0_i32_0 = arith.constant 0 : i32
    %c0_i32_1 = arith.constant 0 : i32
    return %c0_i32, %c0_i32_0 : i32, i32
  }
  func.func @transform_3(%arg0: i32) -> (i32, i32) {
    %c0_i32 = arith.constant 0 : i32
    %c0_i32_0 = arith.constant 0 : i32
    %c0_i32_1 = arith.constant 0 : i32
    return %c0_i32, %c0_i32_0 : i32, i32
  }
  func.func @transform_4(%arg0: i32) -> (i32, i32) {
    %c0_i32 = arith.constant 0 : i32
    %c0_i32_0 = arith.constant 0 : i32
    %c0_i32_1 = arith.constant 0 : i32
    return %c0_i32, %c0_i32_0 : i32, i32
  }
  func.func @transform_5(%arg0: i32) -> (i32, i32) {
    %c0_i32 = arith.constant 0 : i32
    %c0_i32_0 = arith.constant 0 : i32
    %c0_i32_1 = arith.constant 0 : i32
    return %c0_i32, %c0_i32_0 : i32, i32
  }
  func.func @transform_6(%arg0: i32) -> (i32, i32) {
    %c0_i32 = arith.constant 0 : i32
    %c0_i32_0 = arith.constant 0 : i32
    %c0_i32_1 = arith.constant 0 : i32
    return %c0_i32, %c0_i32_0 : i32, i32
  }
  func.func @transform_7(%arg0: i32) -> (i32, i32) {
    %c0_i32 = arith.constant 0 : i32
    %c0_i32_0 = arith.constant 0 : i32
    %c0_i32_1 = arith.constant 0 : i32
    return %c0_i32, %c0_i32_0 : i32, i32
  }
  func.func @transform_8(%arg0: i32) -> (i32, i32) {
    %c0_i32 = arith.constant 0 : i32
    %c0_i32_0 = arith.constant 0 : i32
    %c0_i32_1 = arith.constant 0 : i32
    return %c0_i32, %c0_i32_0 : i32, i32
  }
  func.func @transform_9(%arg0: i32) -> (i32, i32) {
    %c0_i32 = arith.constant 0 : i32
    %c0_i32_0 = arith.constant 0 : i32
    %c0_i32_1 = arith.constant 0 : i32
    return %c0_i32, %c0_i32_0 : i32, i32
  }
  func.func @transform_10(%arg0: i32) -> (i32, i32) {
    %c0_i32 = arith.constant 0 : i32
    %c0_i32_0 = arith.constant 0 : i32
    %c0_i32_1 = arith.constant 0 : i32
    return %c0_i32, %c0_i32_0 : i32, i32
  }
  func.func @transform_11(%arg0: i32) -> (i32, i32) {
    %c0_i32 = arith.constant 0 : i32
    %c0_i32_0 = arith.constant 0 : i32
    %c0_i32_1 = arith.constant 0 : i32
    return %c0_i32, %c0_i32_0 : i32, i32
  }
  func.func @transform_12(%arg0: i32) -> (i32, i32) {
    %c0_i32 = arith.constant 0 : i32
    %c0_i32_0 = arith.constant 0 : i32
    return %arg0, %c0_i32 : i32, i32
  }
}

</mosaic_0001>

<llo_original>
// kernel: tpu_custom_call.1
$region0: #{tpu_custom_call.1}
  #allocation0 [shape = 'u32[]', space=smem, size = 0x4, offset = 0x4, fixed_abs, tag = 'smem constant byte address 0x4 - core index']
  #allocation1 [shape = 'u32[144,128]{1,0:T(1,128)}', space=vmem, size = 0x12000, scoped, tag = 'internal scratch']
  #allocation2 [shape = 'f32[64,512]{1,0:T(8,128)}', space=vmem, size = 0x20000, scoped, tag = 'scratch operand']
  %s0 = inlined_call_operand.vmem [shape: f32[8,8,8], index: 0, kind: input, shape index: {}]
  %s1 = inlined_call_operand.hbm [shape: bf16[8,512], index: 1, kind: input, shape index: {}]
  %s2 = inlined_call_operand.hbm [shape: bf16[128,512], index: 2, kind: input, shape index: {}]
  %s3 = inlined_call_operand.vmem [shape: f32[1,512], index: 3, kind: input, shape index: {}]
  %s4 = inlined_call_operand.hbm [shape: bf16[256,512], index: 4, kind: input, shape index: {}]
  %s5 = inlined_call_operand.vmem [shape: f32[1,512], index: 5, kind: input, shape index: {}]
  %s6 = inlined_call_operand.hbm [shape: bf16[128,128], index: 6, kind: input, shape index: {}]
  %s7 = inlined_call_operand.vmem [shape: f32[1,128], index: 7, kind: input, shape index: {}]
  %s8 = inlined_call_operand.hbm [shape: bf16[128,128], index: 8, kind: input, shape index: {}]
  %s9 = inlined_call_operand.vmem [shape: f32[1,128], index: 9, kind: input, shape index: {}]
  %s10 = inlined_call_operand.vmem [shape: bf16[128,4], index: 10, kind: input, shape index: {}]
  %s11 = inlined_call_operand.vmem [shape: f32[1,4], index: 11, kind: input, shape index: {}]
  %s12 = inlined_call_operand.vmem [shape: f32[8,4], index: 12, kind: output, shape index: {}]
  %s13 = sld [smem:[#allocation0]]
  $region78: #{tpu_custom_call.1} parent=0
    _
  %s15 = ssub.s32 1, %s13
  %s16 = scalar_select 0, %s15, %s13
  $region1: #{tpu_custom_call.1} parent=0
    #allocation3 [shape = 'u8[8192]{0}', space=vmem, size = 0x2000, scoped, tag = 'input window, operand 1, single buffered']
    #allocation4 [shape = 's32[1]{0}', space=sflag, size = 0x4, scoped, tag = 'scoped memory for tpu_custom_call.1']
    #allocation5 [shape = 'u8[131072]{0}', space=vmem, size = 0x20000, scoped, tag = 'input window, operand 2, single buffered']
    #allocation6 [shape = 's32[1]{0}', space=sflag, size = 0x4, scoped, tag = 'scoped memory for tpu_custom_call.1']
    #allocation7 [shape = 'u8[262144]{0}', space=vmem, size = 0x40000, scoped, tag = 'input window, operand 4, single buffered']
    #allocation8 [shape = 'u8[32768]{0}', space=vmem, size = 0x8000, scoped, tag = 'input window, operand 6, single buffered']
    #allocation9 [shape = 's32[1]{0}', space=sflag, size = 0x4, scoped, tag = 'scoped memory for tpu_custom_call.1']
    #allocation10 [shape = 'u8[32768]{0}', space=vmem, size = 0x8000, scoped, tag = 'input window, operand 8, single buffered']
    %17 = vsyncpa [#allocation4], 0
    %18 = vsyncpa [#allocation6], 0
    %19 = vsyncpa [#allocation9], 0
    // Predicated region
    $region2: #{tpu_custom_call.1} parent=1 // pred_check
      _
    $region3: #{tpu_custom_call.1} parent=1 // pred_check_branch
      %21 = sbr.rel (0) target = $region5
    $region4: #{tpu_custom_call.1} parent=1 // pred_region
      _
    $region5: #{tpu_custom_call.1} parent=1 // pred_fallthru
      _
    // Predicated region
    $region6: #{tpu_custom_call.1} parent=1 // pred_check
      _
    $region7: #{tpu_custom_call.1} parent=1 // pred_check_branch
      %23 = sbr.rel (0) target = $region9
    $region8: #{tpu_custom_call.1} parent=1 // pred_region
      %s25 = ssub.s32 256, 256
      %26 = vsyncadd [#allocation4], %s25
      %s28 = sshll.u32 [#allocation3], 4
      %s29 = int_to_ptr.vmem [resolvable:$true] %s28
      %31 = dma.hbm_to_vmem [thread:$0]  %s1, 256, %s29, [#allocation4]
    $region9: #{tpu_custom_call.1} parent=1 // pred_fallthru
      _
    // Predicated region
    $region10: #{tpu_custom_call.1} parent=1 // pred_check
      _
    $region11: #{tpu_custom_call.1} parent=1 // pred_check_branch
      %33 = sbr.rel (0) target = $region13
    $region12: #{tpu_custom_call.1} parent=1 // pred_region
      %s35 = ssub.s32 4096, 4096
      %36 = vsyncadd [#allocation6], %s35
      %s37 = sshll.u32 [#allocation5], 4
      %s38 = int_to_ptr.vmem [resolvable:$true] %s37
      %43 = dma.hbm_to_vmem [thread:$0]  %s2, 4096, %s38, [#allocation6], 256, 256, 16
    $region13: #{tpu_custom_call.1} parent=1 // pred_fallthru
      _
    // Predicated region
    $region14: #{tpu_custom_call.1} parent=1 // pred_check
      _
    $region15: #{tpu_custom_call.1} parent=1 // pred_check_branch
      %45 = sbr.rel (0) target = $region17
    $region16: #{tpu_custom_call.1} parent=1 // pred_region
      _
    $region17: #{tpu_custom_call.1} parent=1 // pred_fallthru
      _
    // Predicated region
    $region18: #{tpu_custom_call.1} parent=1 // pred_check
      _
    $region19: #{tpu_custom_call.1} parent=1 // pred_check_branch
      %47 = sbr.rel (0) target = $region21
    $region20: #{tpu_custom_call.1} parent=1 // pred_region
      %s49 = ssub.s32 8192, 8192
      %50 = vsyncadd [#allocation6], %s49
      %s51 = sshll.u32 [#allocation7], 4
      %s52 = int_to_ptr.vmem [resolvable:$true] %s51
      %57 = dma.hbm_to_vmem [thread:$0]  %s4, 8192, %s52, [#allocation6], 256, 256, 16
    $region21: #{tpu_custom_call.1} parent=1 // pred_fallthru
      _
    // Predicated region
    $region22: #{tpu_custom_call.1} parent=1 // pred_check
      _
    $region23: #{tpu_custom_call.1} parent=1 // pred_check_branch
      %59 = sbr.rel (0) target = $region25
    $region24: #{tpu_custom_call.1} parent=1 // pred_region
      _
    $region25: #{tpu_custom_call.1} parent=1 // pred_fallthru
      _
    // Predicated region
    $region26: #{tpu_custom_call.1} parent=1 // pred_check
      _
    $region27: #{tpu_custom_call.1} parent=1 // pred_check_branch
      %61 = sbr.rel (0) target = $region29
    $region28: #{tpu_custom_call.1} parent=1 // pred_region
      %s63 = ssub.s32 1024, 1024
      %64 = vsyncadd [#allocation9], %s63
      %s65 = sshll.u32 [#allocation8], 4
      %s66 = int_to_ptr.vmem [resolvable:$true] %s65
      %71 = dma.hbm_to_vmem [thread:$0]  %s6, 1024, %s66, [#allocation9], 64, 64, 4
    $region29: #{tpu_custom_call.1} parent=1 // pred_fallthru
      _
    // Predicated region
    $region30: #{tpu_custom_call.1} parent=1 // pred_check
      _
    $region31: #{tpu_custom_call.1} parent=1 // pred_check_branch
      %73 = sbr.rel (0) target = $region33
    $region32: #{tpu_custom_call.1} parent=1 // pred_region
      _
    $region33: #{tpu_custom_call.1} parent=1 // pred_fallthru
      _
    // Predicated region
    $region34: #{tpu_custom_call.1} parent=1 // pred_check
      _
    $region35: #{tpu_custom_call.1} parent=1 // pred_check_branch
      %75 = sbr.rel (0) target = $region37
    $region36: #{tpu_custom_call.1} parent=1 // pred_region
      %s77 = ssub.s32 1024, 1024
      %78 = vsyncadd [#allocation9], %s77
      %s79 = sshll.u32 [#allocation10], 4
      %s80 = int_to_ptr.vmem [resolvable:$true] %s79
      %85 = dma.hbm_to_vmem [thread:$0]  %s8, 1024, %s80, [#allocation9], 64, 64, 4
    $region37: #{tpu_custom_call.1} parent=1 // pred_fallthru
      _
    // Predicated region
    $region38: #{tpu_custom_call.1} parent=1 // pred_check
      _
    $region39: #{tpu_custom_call.1} parent=1 // pred_check_branch
      %87 = sbr.rel (0) target = $region41
    $region40: #{tpu_custom_call.1} parent=1 // pred_region
      _
    $region41: #{tpu_custom_call.1} parent=1 // pred_fallthru
      _
    // Predicated region
    $region42: #{tpu_custom_call.1} parent=1 // pred_check
      _
    $region43: #{tpu_custom_call.1} parent=1 // pred_check_branch
      %89 = sbr.rel (0) target = $region45
    $region44: #{tpu_custom_call.1} parent=1 // pred_region
      _
    $region45: #{tpu_custom_call.1} parent=1 // pred_fallthru
      _
    // Predicated region
    $region46: #{tpu_custom_call.1} parent=1 // pred_check
      _
    $region47: #{tpu_custom_call.1} parent=1 // pred_check_branch
      %91 = sbr.rel (0) target = $region49
    $region48: #{tpu_custom_call.1} parent=1 // pred_region
      _
    $region49: #{tpu_custom_call.1} parent=1 // pred_fallthru
      _
    // Predicated region
    $region50: #{tpu_custom_call.1} parent=1 // pred_check
      _
    $region51: #{tpu_custom_call.1} parent=1 // pred_check_branch
      %93 = sbr.rel (0) target = $region53
    $region52: #{tpu_custom_call.1} parent=1 // pred_region
      %94 = dma.done [#allocation4], 256
    $region53: #{tpu_custom_call.1} parent=1 // pred_fallthru
      _
    // Predicated region
    $region54: #{tpu_custom_call.1} parent=1 // pred_check
      _
    $region55: #{tpu_custom_call.1} parent=1 // pred_check_branch
      %96 = sbr.rel (0) target = $region57
    $region56: #{tpu_custom_call.1} parent=1 // pred_region
      %97 = dma.done [#allocation6], 4096
    $region57: #{tpu_custom_call.1} parent=1 // pred_fallthru
      _
    // Predicated region
    $region58: #{tpu_custom_call.1} parent=1 // pred_check
      _
    $region59: #{tpu_custom_call.1} parent=1 // pred_check_branch
      %99 = sbr.rel (0) target = $region61
    $region60: #{tpu_custom_call.1} parent=1 // pred_region
      %100 = dma.done [#allocation6], 8192
    $region61: #{tpu_custom_call.1} parent=1 // pred_fallthru
      _
    // Predicated region
    $region62: #{tpu_custom_call.1} parent=1 // pred_check
      _
    $region63: #{tpu_custom_call.1} parent=1 // pred_check_branch
      %102 = sbr.rel (0) target = $region65
    $region64: #{tpu_custom_call.1} parent=1 // pred_region
      %103 = dma.done [#allocation9], 1024
    $region65: #{tpu_custom_call.1} parent=1 // pred_fallthru
      _
    // Predicated region
    $region66: #{tpu_custom_call.1} parent=1 // pred_check
      _
    $region67: #{tpu_custom_call.1} parent=1 // pred_check_branch
      %105 = sbr.rel (0) target = $region69
    $region68: #{tpu_custom_call.1} parent=1 // pred_region
      %106 = dma.done [#allocation9], 1024
    $region69: #{tpu_custom_call.1} parent=1 // pred_fallthru
      _
    %v108 = vld [vmem:[%s0] sm:$0xff]
    %v109 = vld [vmem:[%s0 + $0x8] sm:$0xff]
    %v110 = vld [vmem:[%s0 + $0x10] sm:$0xff]
    %v111 = vld [vmem:[%s0 + $0x18] sm:$0xff]
    %v112 = vld [vmem:[%s0 + $0x20] sm:$0xff]
    %v113 = vld [vmem:[%s0 + $0x28] sm:$0xff]
    %v114 = vld [vmem:[%s0 + $0x30] sm:$0xff]
    %v115 = vld [vmem:[%s0 + $0x38] sm:$0xff]
    %v116 = vpack.c.bf16 %v109, %v108
    %v117 = vpack.c.bf16 %v111, %v110
    %v118 = vpack.c.bf16 %v113, %v112
    %v119 = vpack.c.bf16 %v115, %v114
    %v120 = vld [vmem:[#allocation3] sm:$0xff]
    %v121 = vld [vmem:[#allocation3 + $0x8] sm:$0xff]
    %v122 = vld [vmem:[%s3] sm:$0xf]
    %v124 = vlaneseq
    %v125 = vshrl.u32 %v124, 7
    %v126 = vsub.s32 0, %v125
    %v127 = vrot.slane %v122, %v126
    %v128 = vlaneseq
    %v129 = vshrl.u32 %v128, 7
    %v130 = vsub.s32 1, %v129
    %v131 = vrot.slane %v122, %v130
    %v132 = vlaneseq
    %v133 = vshrl.u32 %v132, 7
    %v134 = vsub.s32 2, %v133
    %v135 = vrot.slane %v122, %v134
    %v136 = vlaneseq
    %v137 = vshrl.u32 %v136, 7
    %v138 = vsub.s32 3, %v137
    %v139 = vrot.slane %v122, %v138
    %v146 = vunpack.c.l.b16 %v120
    %v147 = vunpack.c.h.b16 %v120
    %v148 = vunpack.c.l.b16 %v121
    %v149 = vunpack.c.h.b16 %v121
    %v150 = vpack.c.b16 %v146, %v146
    %v151 = vpack.c.b16 %v147, %v147
    %v152 = vpack.c.b16 %v148, %v148
    %v153 = vpack.c.b16 %v149, %v149
    %vm154 = vcmask 64512
    %v156 = vsel %vm154, %v116, 0
    %v159 = vsel %vm154, %v117, 0
    %v162 = vsel %vm154, %v118, 0
    %v165 = vsel %vm154, %v119, 0
    %vm167 = vcmask 1043456
    %v169 = vsel %vm167, %v150, 0
    %v172 = vsel %vm167, %v151, 0
    %v175 = vsel %vm167, %v152, 0
    %v178 = vsel %vm167, %v153, 0
    %180 = vmatprep.subr.bf16.mxu0 0
    %181 = vmatpush1.bf16.msra.mxu0 0
    %182 = vmatprep.subr.bf16.mxu0 0
    %183 = vmatpush1.bf16.msra.mxu0 0
    %184 = vmatprep.subr.bf16.mxu0 0
    %185 = vmatpush1.bf16.msra.mxu0 0
    %186 = vmatprep.subr.bf16.mxu0 0
    %187 = vmatpush1.bf16.msra.mxu0 0
    %188 = vmatprep.subr.bf16.mxu0 0
    %189 = vmatpush1.bf16.msra.mxu0 0
    %190 = vmatprep.subr.bf16.mxu0 0
    %191 = vmatpush1.bf16.msra.mxu0 0
    %192 = vmatprep.subr.bf16.mxu0 0
    %193 = vmatpush1.bf16.msra.mxu0 0
    %194 = vmatprep.subr.bf16.mxu0 %v172
    %195 = vmatpush1.bf16.msra.mxu0 %v169
    %196 = vmatprep.subr.bf16.mxu0 0
    %197 = vmatpush2.bf16.msra.mxu0 0
    %198 = vmatprep.subr.bf16.mxu0 0
    %199 = vmatpush2.bf16.msra.mxu0 0
    %200 = vmatprep.subr.bf16.mxu0 0
    %201 = vmatpush2.bf16.msra.mxu0 0
    %202 = vmatprep.subr.bf16.mxu0 0
    %203 = vmatpush2.bf16.msra.mxu0 0
    %204 = vmatprep.subr.bf16.mxu0 0
    %205 = vmatpush2.bf16.msra.mxu0 0
    %206 = vmatprep.subr.bf16.mxu0 0
    %207 = vmatpush2.bf16.msra.mxu0 0
    %208 = vmatprep.subr.bf16.mxu0 0
    %209 = vmatpush2.bf16.msra.mxu0 0
    %210 = vmatprep.subr.bf16.mxu0 0
    %211 = vmatpush2.bf16.msra.mxu0 0
    %212 = vmatprep.mubr.bf16.mxu0 0
    %213 = vmatmul.mubr.bf16.gmra.mxu0 %v156
    %v214 = vpop.f32.mrf.mxu0
    %v215 = vadd.f32 %v127, %v214
    %v216 = vpop.f32.mrf.mxu0
    %v217 = vadd.f32 %v131, %v216
    %v218 = vpop.f32.mrf.mxu0
    %v219 = vadd.f32 %v127, %v218
    %v220 = vpop.f32.mrf.mxu0
    %v221 = vadd.f32 %v131, %v220
    %222 = vmatprep.mubr.bf16.mxu0 0
    %223 = vmatmul.mubr.bf16.gmra.mxu0 %v159
    %v224 = vpop.f32.mrf.mxu0
    %v225 = vadd.f32 %v127, %v224
    %v226 = vpop.f32.mrf.mxu0
    %v227 = vadd.f32 %v131, %v226
    %v228 = vpop.f32.mrf.mxu0
    %v229 = vadd.f32 %v127, %v228
    %v230 = vpop.f32.mrf.mxu0
    %v231 = vadd.f32 %v131, %v230
    %232 = vmatprep.mubr.bf16.mxu0 0
    %233 = vmatmul.mubr.bf16.gmra.mxu0 %v162
    %v234 = vpop.f32.mrf.mxu0
    %v235 = vadd.f32 %v127, %v234
    %v236 = vpop.f32.mrf.mxu0
    %v237 = vadd.f32 %v131, %v236
    %v238 = vpop.f32.mrf.mxu0
    %v239 = vadd.f32 %v127, %v238
    %v240 = vpop.f32.mrf.mxu0
    %v241 = vadd.f32 %v131, %v240
    %242 = vmatprep.mubr.bf16.mxu0 0
    %243 = vmatmul.mubr.bf16.gmra.mxu0 %v165
    %v244 = vpop.f32.mrf.mxu0
    %v245 = vadd.f32 %v127, %v244
    %v246 = vpop.f32.mrf.mxu0
    %v247 = vadd.f32 %v131, %v246
    %v248 = vpop.f32.mrf.mxu0
    %v249 = vadd.f32 %v127, %v248
    %v250 = vpop.f32.mrf.mxu0
    %v251 = vadd.f32 %v131, %v250
    %252 = vdwg.mxu0
    %253 = vmatprep.subr.bf16.mxu0 0
    %254 = vmatpush1.bf16.msra.mxu0 0
    %255 = vmatprep.subr.bf16.mxu0 0
    %256 = vmatpush1.bf16.msra.mxu0 0
    %257 = vmatprep.subr.bf16.mxu0 0
    %258 = vmatpush1.bf16.msra.mxu0 0
    %259 = vmatprep.subr.bf16.mxu0 0
    %260 = vmatpush1.bf16.msra.mxu0 0
    %261 = vmatprep.subr.bf16.mxu0 0
    %262 = vmatpush1.bf16.msra.mxu0 0
    %263 = vmatprep.subr.bf16.mxu0 0
    %264 = vmatpush1.bf16.msra.mxu0 0
    %265 = vmatprep.subr.bf16.mxu0 0
    %266 = vmatpush1.bf16.msra.mxu0 0
    %267 = vmatprep.subr.bf16.mxu0 %v178
    %268 = vmatpush1.bf16.msra.mxu0 %v175
    %269 = vmatprep.subr.bf16.mxu0 0
    %270 = vmatpush2.bf16.msra.mxu0 0
    %271 = vmatprep.subr.bf16.mxu0 0
    %272 = vmatpush2.bf16.msra.mxu0 0
    %273 = vmatprep.subr.bf16.mxu0 0
    %274 = vmatpush2.bf16.msra.mxu0 0
    %275 = vmatprep.subr.bf16.mxu0 0
    %276 = vmatpush2.bf16.msra.mxu0 0
    %277 = vmatprep.subr.bf16.mxu0 0
    %278 = vmatpush2.bf16.msra.mxu0 0
    %279 = vmatprep.subr.bf16.mxu0 0
    %280 = vmatpush2.bf16.msra.mxu0 0
    %281 = vmatprep.subr.bf16.mxu0 0
    %282 = vmatpush2.bf16.msra.mxu0 0
    %283 = vmatprep.subr.bf16.mxu0 0
    %284 = vmatpush2.bf16.msra.mxu0 0
    %285 = vmatprep.mubr.bf16.mxu0 0
    %286 = vmatmul.mubr.bf16.gmra.mxu0 %v156
    %v287 = vpop.f32.mrf.mxu0
    %v288 = vadd.f32 %v135, %v287
    %v289 = vpop.f32.mrf.mxu0
    %v290 = vadd.f32 %v139, %v289
    %v291 = vpop.f32.mrf.mxu0
    %v292 = vadd.f32 %v135, %v291
    %v293 = vpop.f32.mrf.mxu0
    %v294 = vadd.f32 %v139, %v293
    %295 = vmatprep.mubr.bf16.mxu0 0
    %296 = vmatmul.mubr.bf16.gmra.mxu0 %v159
    %v297 = vpop.f32.mrf.mxu0
    %v298 = vadd.f32 %v135, %v297
    %v299 = vpop.f32.mrf.mxu0
    %v300 = vadd.f32 %v139, %v299
    %v301 = vpop.f32.mrf.mxu0
    %v302 = vadd.f32 %v135, %v301
    %v303 = vpop.f32.mrf.mxu0
    %v304 = vadd.f32 %v139, %v303
    %305 = vmatprep.mubr.bf16.mxu0 0
    %306 = vmatmul.mubr.bf16.gmra.mxu0 %v162
    %v307 = vpop.f32.mrf.mxu0
    %v308 = vadd.f32 %v135, %v307
    %v309 = vpop.f32.mrf.mxu0
    %v310 = vadd.f32 %v139, %v309
    %v311 = vpop.f32.mrf.mxu0
    %v312 = vadd.f32 %v135, %v311
    %v313 = vpop.f32.mrf.mxu0
    %v314 = vadd.f32 %v139, %v313
    %315 = vmatprep.mubr.bf16.mxu0 0
    %316 = vmatmul.mubr.bf16.gmra.mxu0 %v165
    %v317 = vpop.f32.mrf.mxu0
    %v318 = vadd.f32 %v135, %v317
    %v319 = vpop.f32.mrf.mxu0
    %v320 = vadd.f32 %v139, %v319
    %v321 = vpop.f32.mrf.mxu0
    %v322 = vadd.f32 %v135, %v321
    %v323 = vpop.f32.mrf.mxu0
    %v324 = vadd.f32 %v139, %v323
    %325 = vdwg.mxu0
    %326 = vst [vmem:[#allocation2] sm:$0xff] %v215
    %327 = vst [vmem:[#allocation2 + $0x8] sm:$0xff] %v217
    %328 = vst [vmem:[#allocation2 + $0x10] sm:$0xff] %v288
    %329 = vst [vmem:[#allocation2 + $0x18] sm:$0xff] %v290
    %330 = vst [vmem:[#allocation2 + $0x20] sm:$0xff] %v219
    %331 = vst [vmem:[#allocation2 + $0x28] sm:$0xff] %v221
    %332 = vst [vmem:[#allocation2 + $0x30] sm:$0xff] %v292
    %333 = vst [vmem:[#allocation2 + $0x38] sm:$0xff] %v294
    %334 = vst [vmem:[#allocation2 + $0x40] sm:$0xff] %v225
    %335 = vst [vmem:[#allocation2 + $0x48] sm:$0xff] %v227
    %336 = vst [vmem:[#allocation2 + $0x50] sm:$0xff] %v298
    %337 = vst [vmem:[#allocation2 + $0x58] sm:$0xff] %v300
    %338 = vst [vmem:[#allocation2 + $0x60] sm:$0xff] %v229
    %339 = vst [vmem:[#allocation2 + $0x68] sm:$0xff] %v231
    %340 = vst [vmem:[#allocation2 + $0x70] sm:$0xff] %v302
    %341 = vst [vmem:[#allocation2 + $0x78] sm:$0xff] %v304
    %342 = vst [vmem:[#allocation2 + $0x80] sm:$0xff] %v235
    %343 = vst [vmem:[#allocation2 + $0x88] sm:$0xff] %v237
    %344 = vst [vmem:[#allocation2 + $0x90] sm:$0xff] %v308
    %345 = vst [vmem:[#allocation2 + $0x98] sm:$0xff] %v310
    %346 = vst [vmem:[#allocation2 + $0xa0] sm:$0xff] %v239
    %347 = vst [vmem:[#allocation2 + $0xa8] sm:$0xff] %v241
    %348 = vst [vmem:[#allocation2 + $0xb0] sm:$0xff] %v312
    %349 = vst [vmem:[#allocation2 + $0xb8] sm:$0xff] %v314
    %350 = vst [vmem:[#allocation2 + $0xc0] sm:$0xff] %v245
    %351 = vst [vmem:[#allocation2 + $0xc8] sm:$0xff] %v247
    %352 = vst [vmem:[#allocation2 + $0xd0] sm:$0xff] %v318
    %353 = vst [vmem:[#allocation2 + $0xd8] sm:$0xff] %v320
    %354 = vst [vmem:[#allocation2 + $0xe0] sm:$0xff] %v249
    %355 = vst [vmem:[#allocation2 + $0xe8] sm:$0xff] %v251
    %356 = vst [vmem:[#allocation2 + $0xf0] sm:$0xff] %v322
    %357 = vst [vmem:[#allocation2 + $0xf8] sm:$0xff] %v324
    %v358 = vld [vmem:[%s5] sm:$0xf]
    %v360 = vlaneseq
    %v361 = vshrl.u32 %v360, 7
    %v362 = vsub.s32 0, %v361
    %v363 = vrot.slane %v358, %v362
    %v364 = vlaneseq
    %v365 = vshrl.u32 %v364, 7
    %v366 = vsub.s32 1, %v365
    %v367 = vrot.slane %v358, %v366
    %v368 = vlaneseq
    %v369 = vshrl.u32 %v368, 7
    %v370 = vsub.s32 2, %v369
    %v371 = vrot.slane %v358, %v370
    %v372 = vlaneseq
    %v373 = vshrl.u32 %v372, 7
    %v374 = vsub.s32 3, %v373
    %v375 = vrot.slane %v358, %v374
    %v380 = vld [vmem:[#allocation2] sm:$0xff]
    %v381 = vld [vmem:[#allocation2 + $0x8] sm:$0xff]
    %v382 = vld [vmem:[#allocation2 + $0x10] sm:$0xff]
    %v383 = vld [vmem:[#allocation2 + $0x18] sm:$0xff]
    %v384 = vld [vmem:[#allocation5] sm:$0xff]
    %v385 = vld [vmem:[#allocation5 + $0x8] sm:$0xff]
    %v386 = vld [vmem:[#allocation5 + $0x10] sm:$0xff]
    %v387 = vld [vmem:[#allocation5 + $0x18] sm:$0xff]
    %v388 = vld [vmem:[#allocation5 + $0x20] sm:$0xff]
    %v389 = vld [vmem:[#allocation5 + $0x28] sm:$0xff]
    %v390 = vld [vmem:[#allocation5 + $0x30] sm:$0xff]
    %v391 = vld [vmem:[#allocation5 + $0x38] sm:$0xff]
    %v392 = vld [vmem:[#allocation5 + $0x40] sm:$0xff]
    %v393 = vld [vmem:[#allocation5 + $0x48] sm:$0xff]
    %v394 = vld [vmem:[#allocation5 + $0x50] sm:$0xff]
    %v395 = vld [vmem:[#allocation5 + $0x58] sm:$0xff]
    %v396 = vld [vmem:[#allocation5 + $0x60] sm:$0xff]
    %v397 = vld [vmem:[#allocation5 + $0x68] sm:$0xff]
    %v398 = vld [vmem:[#allocation5 + $0x70] sm:$0xff]
    %v399 = vld [vmem:[#allocation5 + $0x78] sm:$0xff]
    %v400 = vld [vmem:[#allocation5 + $0x80] sm:$0xff]
    %v401 = vld [vmem:[#allocation5 + $0x88] sm:$0xff]
    %v402 = vld [vmem:[#allocation5 + $0x90] sm:$0xff]
    %v403 = vld [vmem:[#allocation5 + $0x98] sm:$0xff]
    %v404 = vld [vmem:[#allocation5 + $0xa0] sm:$0xff]
    %v405 = vld [vmem:[#allocation5 + $0xa8] sm:$0xff]
    %v406 = vld [vmem:[#allocation5 + $0xb0] sm:$0xff]
    %v407 = vld [vmem:[#allocation5 + $0xb8] sm:$0xff]
    %v408 = vld [vmem:[#allocation5 + $0xc0] sm:$0xff]
    %v409 = vld [vmem:[#allocation5 + $0xc8] sm:$0xff]
    %v410 = vld [vmem:[#allocation5 + $0xd0] sm:$0xff]
    %v411 = vld [vmem:[#allocation5 + $0xd8] sm:$0xff]
    %v412 = vld [vmem:[#allocation5 + $0xe0] sm:$0xff]
    %v413 = vld [vmem:[#allocation5 + $0xe8] sm:$0xff]
    %v414 = vld [vmem:[#allocation5 + $0xf0] sm:$0xff]
    %v415 = vld [vmem:[#allocation5 + $0xf8] sm:$0xff]
    %v448 = vunpack.c.l.b16 %v384
    %v449 = vunpack.c.h.b16 %v384
    %v450 = vunpack.c.l.b16 %v385
    %v451 = vunpack.c.h.b16 %v385
    %v452 = vunpack.c.l.b16 %v386
    %v453 = vunpack.c.h.b16 %v386
    %v454 = vunpack.c.l.b16 %v387
    %v455 = vunpack.c.h.b16 %v387
    %v456 = vunpack.c.l.b16 %v388
    %v457 = vunpack.c.h.b16 %v388
    %v458 = vunpack.c.l.b16 %v389
    %v459 = vunpack.c.h.b16 %v389
    %v460 = vunpack.c.l.b16 %v390
    %v461 = vunpack.c.h.b16 %v390
    %v462 = vunpack.c.l.b16 %v391
    %v463 = vunpack.c.h.b16 %v391
    %v464 = vunpack.c.l.b16 %v392
    %v465 = vunpack.c.h.b16 %v392
    %v466 = vunpack.c.l.b16 %v393
    %v467 = vunpack.c.h.b16 %v393
    %v468 = vunpack.c.l.b16 %v394
    %v469 = vunpack.c.h.b16 %v394
    %v470 = vunpack.c.l.b16 %v395
    %v471 = vunpack.c.h.b16 %v395
    %v472 = vunpack.c.l.b16 %v396
    %v473 = vunpack.c.h.b16 %v396
    %v474 = vunpack.c.l.b16 %v397
    %v475 = vunpack.c.h.b16 %v397
    %v476 = vunpack.c.l.b16 %v398
    %v477 = vunpack.c.h.b16 %v398
    %v478 = vunpack.c.l.b16 %v399
    %v479 = vunpack.c.h.b16 %v399
    %v480 = vunpack.c.l.b16 %v400
    %v481 = vunpack.c.h.b16 %v400
    %v482 = vunpack.c.l.b16 %v401
    %v483 = vunpack.c.h.b16 %v401
    %v484 = vunpack.c.l.b16 %v402
    %v485 = vunpack.c.h.b16 %v402
    %v486 = vunpack.c.l.b16 %v403
    %v487 = vunpack.c.h.b16 %v403
    %v488 = vunpack.c.l.b16 %v404
    %v489 = vunpack.c.h.b16 %v404
    %v490 = vunpack.c.l.b16 %v405
    %v491 = vunpack.c.h.b16 %v405
    %v492 = vunpack.c.l.b16 %v406
    %v493 = vunpack.c.h.b16 %v406
    %v494 = vunpack.c.l.b16 %v407
    %v495 = vunpack.c.h.b16 %v407
    %v496 = vunpack.c.l.b16 %v408
    %v497 = vunpack.c.h.b16 %v408
    %v498 = vunpack.c.l.b16 %v409
    %v499 = vunpack.c.h.b16 %v409
    %v500 = vunpack.c.l.b16 %v410
    %v501 = vunpack.c.h.b16 %v410
    %v502 = vunpack.c.l.b16 %v411
    %v503 = vunpack.c.h.b16 %v411
    %v504 = vunpack.c.l.b16 %v412
    %v505 = vunpack.c.h.b16 %v412
    %v506 = vunpack.c.l.b16 %v413
    %v507 = vunpack.c.h.b16 %v413
    %v508 = vunpack.c.l.b16 %v414
    %v509 = vunpack.c.h.b16 %v414
    %v510 = vunpack.c.l.b16 %v415
    %v511 = vunpack.c.h.b16 %v415
    %v512 = vpack.c.b16 %v452, %v448
    %v513 = vpack.c.b16 %v453, %v449
    %v514 = vpack.c.b16 %v454, %v450
    %v515 = vpack.c.b16 %v455, %v451
    %v516 = vpack.c.b16 %v460, %v456
    %v517 = vpack.c.b16 %v461, %v457
    %v518 = vpack.c.b16 %v462, %v458
    %v519 = vpack.c.b16 %v463, %v459
    %v520 = vpack.c.b16 %v468, %v464
    %v521 = vpack.c.b16 %v469, %v465
    %v522 = vpack.c.b16 %v470, %v466
    %v523 = vpack.c.b16 %v471, %v467
    %v524 = vpack.c.b16 %v476, %v472
    %v525 = vpack.c.b16 %v477, %v473
    %v526 = vpack.c.b16 %v478, %v474
    %v527 = vpack.c.b16 %v479, %v475
    %v528 = vpack.c.b16 %v484, %v480
    %v529 = vpack.c.b16 %v485, %v481
    %v530 = vpack.c.b16 %v486, %v482
    %v531 = vpack.c.b16 %v487, %v483
    %v532 = vpack.c.b16 %v492, %v488
    %v533 = vpack.c.b16 %v493, %v489
    %v534 = vpack.c.b16 %v494, %v490
    %v535 = vpack.c.b16 %v495, %v491
    %v536 = vpack.c.b16 %v500, %v496
    %v537 = vpack.c.b16 %v501, %v497
    %v538 = vpack.c.b16 %v502, %v498
    %v539 = vpack.c.b16 %v503, %v499
    %v540 = vpack.c.b16 %v508, %v504
    %v541 = vpack.c.b16 %v509, %v505
    %v542 = vpack.c.b16 %v510, %v506
    %v543 = vpack.c.b16 %v511, %v507
    %576 = vmatprep.subr.bf16.mxu0 %v541
    %577 = vmatpush1.bf16.msra.mxu0 %v540
    %578 = vmatprep.subr.bf16.mxu0 %v537
    %579 = vmatpush1.bf16.msra.mxu0 %v536
    %580 = vmatprep.subr.bf16.mxu0 %v533
    %581 = vmatpush1.bf16.msra.mxu0 %v532
    %582 = vmatprep.subr.bf16.mxu0 %v529
    %583 = vmatpush1.bf16.msra.mxu0 %v528
    %584 = vmatprep.subr.bf16.mxu0 %v525
    %585 = vmatpush1.bf16.msra.mxu0 %v524
    %586 = vmatprep.subr.bf16.mxu0 %v521
    %587 = vmatpush1.bf16.msra.mxu0 %v520
    %588 = vmatprep.subr.bf16.mxu0 %v517
    %589 = vmatpush1.bf16.msra.mxu0 %v516
    %590 = vmatprep.subr.bf16.mxu0 %v513
    %591 = vmatpush1.bf16.msra.mxu0 %v512
    %592 = vmatprep.subr.bf16.mxu0 0
    %593 = vmatpush2.bf16.msra.mxu0 0
    %594 = vmatprep.subr.bf16.mxu0 0
    %595 = vmatpush2.bf16.msra.mxu0 0
    %596 = vmatprep.subr.bf16.mxu0 0
    %597 = vmatpush2.bf16.msra.mxu0 0
    %598 = vmatprep.subr.bf16.mxu0 0
    %599 = vmatpush2.bf16.msra.mxu0 0
    %600 = vmatprep.subr.bf16.mxu0 0
    %601 = vmatpush2.bf16.msra.mxu0 0
    %602 = vmatprep.subr.bf16.mxu0 0
    %603 = vmatpush2.bf16.msra.mxu0 0
    %604 = vmatprep.subr.bf16.mxu0 0
    %605 = vmatpush2.bf16.msra.mxu0 0
    %606 = vmatprep.subr.bf16.mxu0 0
    %607 = vmatpush2.bf16.msra.mxu0 0
    %608 = vmatprep.mubr.bf16.mxu0 0
    %609 = vmatmul.mubr.bf16.gmra.mxu0 0
    %v610 = vpop.f32.mrf.mxu0
    %v611 = vadd.f32 0.0, %v610
    %v612 = vpop.f32.mrf.mxu0
    %v613 = vadd.f32 0.0, %v612
    %v614 = vpop.f32.mrf.mxu0
    %v615 = vpop.f32.mrf.mxu0
    %616 = vdwg.mxu0
    %617 = vmatprep.subr.bf16.mxu0 %v543
    %618 = vmatpush1.bf16.msra.mxu0 %v542
    %619 = vmatprep.subr.bf16.mxu0 %v539
    %620 = vmatpush1.bf16.msra.mxu0 %v538
    %621 = vmatprep.subr.bf16.mxu0 %v535
    %622 = vmatpush1.bf16.msra.mxu0 %v534
    %623 = vmatprep.subr.bf16.mxu0 %v531
    %624 = vmatpush1.bf16.msra.mxu0 %v530
    %625 = vmatprep.subr.bf16.mxu0 %v527
    %626 = vmatpush1.bf16.msra.mxu0 %v526
    %627 = vmatprep.subr.bf16.mxu0 %v523
    %628 = vmatpush1.bf16.msra.mxu0 %v522
    %629 = vmatprep.subr.bf16.mxu0 %v519
    %630 = vmatpush1.bf16.msra.mxu0 %v518
    %631 = vmatprep.subr.bf16.mxu0 %v515
    %632 = vmatpush1.bf16.msra.mxu0 %v514
    %633 = vmatprep.subr.bf16.mxu0 0
    %634 = vmatpush2.bf16.msra.mxu0 0
    %635 = vmatprep.subr.bf16.mxu0 0
    %636 = vmatpush2.bf16.msra.mxu0 0
    %637 = vmatprep.subr.bf16.mxu0 0
    %638 = vmatpush2.bf16.msra.mxu0 0
    %639 = vmatprep.subr.bf16.mxu0 0
    %640 = vmatpush2.bf16.msra.mxu0 0
    %641 = vmatprep.subr.bf16.mxu0 0
    %642 = vmatpush2.bf16.msra.mxu0 0
    %643 = vmatprep.subr.bf16.mxu0 0
    %644 = vmatpush2.bf16.msra.mxu0 0
    %645 = vmatprep.subr.bf16.mxu0 0
    %646 = vmatpush2.bf16.msra.mxu0 0
    %647 = vmatprep.subr.bf16.mxu0 0
    %648 = vmatpush2.bf16.msra.mxu0 0
    %649 = vmatprep.mubr.bf16.mxu0 0
    %650 = vmatmul.mubr.bf16.gmra.mxu0 0
    %v651 = vpop.f32.mrf.mxu0
    %v652 = vadd.f32 0.0, %v651
    %v653 = vpop.f32.mrf.mxu0
    %v654 = vadd.f32 0.0, %v653
    %v655 = vpop.f32.mrf.mxu0
    %v656 = vpop.f32.mrf.mxu0
    %657 = vdwg.mxu0
    %v658 = vadd.f32 %v380, %v611
    %v659 = vadd.f32 %v381, %v613
    %v660 = vadd.f32 %v382, %v652
    %v661 = vadd.f32 %v383, %v654
    %v662 = vxor.u32 %v658, 2147483648
    %v663 = vmul.f32 %v662, 1.442695
    %v664 = vpow.pop %v663
    %v665 = vadd.f32 %v664, 1.0
    %v666 = vrcp.pop %v665
    %v667 = vmul.f32 1.0, %v666
    %v668 = vxor.u32 %v659, 2147483648
    %v669 = vmul.f32 %v668, 1.442695
    %v670 = vpow.pop %v669
    %v671 = vadd.f32 %v670, 1.0
    %v672 = vrcp.pop %v671
    %v673 = vmul.f32 1.0, %v672
    %v674 = vtanh.pop %v660
    %v675 = vxor.u32 %v661, 2147483648
    %v676 = vmul.f32 %v675, 1.442695
    %v677 = vpow.pop %v676
    %v678 = vadd.f32 %v677, 1.0
    %v679 = vrcp.pop %v678
    %v680 = vmul.f32 1.0, %v679
    %v681 = vmul.f32 %v673, 0.0
    %v682 = vmul.f32 %v667, %v674
    %v683 = vadd.f32 %v681, %v682
    %v684 = vtanh.pop %v683
    %v685 = vmul.f32 %v680, %v684
    %v686 = vpack.c.bf16 %v685, %v685
    %v687 = vpack.c.bf16 0.0, 0.0
    %v688 = vld [vmem:[#allocation7] sm:$0xff]
    %v689 = vld [vmem:[#allocation7 + $0x8] sm:$0xff]
    %v690 = vld [vmem:[#allocation7 + $0x10] sm:$0xff]
    %v691 = vld [vmem:[#allocation7 + $0x18] sm:$0xff]
    %v692 = vld [vmem:[#allocation7 + $0x20] sm:$0xff]
    %v693 = vld [vmem:[#allocation7 + $0x28] sm:$0xff]
    %v694 = vld [vmem:[#allocation7 + $0x30] sm:$0xff]
    %v695 = vld [vmem:[#allocation7 + $0x38] sm:$0xff]
    %v696 = vld [vmem:[#allocation7 + $0x40] sm:$0xff]
    %v697 = vld [vmem:[#allocation7 + $0x48] sm:$0xff]
    %v698 = vld [vmem:[#allocation7 + $0x50] sm:$0xff]
    %v699 = vld [vmem:[#allocation7 + $0x58] sm:$0xff]
    %v700 = vld [vmem:[#allocation7 + $0x60] sm:$0xff]
    %v701 = vld [vmem:[#allocation7 + $0x68] sm:$0xff]
    %v702 = vld [vmem:[#allocation7 + $0x70] sm:$0xff]
    %v703 = vld [vmem:[#allocation7 + $0x78] sm:$0xff]
    %v704 = vld [vmem:[#allocation7 + $0x80] sm:$0xff]
    %v705 = vld [vmem:[#allocation7 + $0x88] sm:$0xff]
    %v706 = vld [vmem:[#allocation7 + $0x90] sm:$0xff]
    %v707 = vld [vmem:[#allocation7 + $0x98] sm:$0xff]
    %v708 = vld [vmem:[#allocation7 + $0xa0] sm:$0xff]
    %v709 = vld [vmem:[#allocation7 + $0xa8] sm:$0xff]
    %v710 = vld [vmem:[#allocation7 + $0xb0] sm:$0xff]
    %v711 = vld [vmem:[#allocation7 + $0xb8] sm:$0xff]
    %v712 = vld [vmem:[#allocation7 + $0xc0] sm:$0xff]
    %v713 = vld [vmem:[#allocation7 + $0xc8] sm:$0xff]
    %v714 = vld [vmem:[#allocation7 + $0xd0] sm:$0xff]
    %v715 = vld [vmem:[#allocation7 + $0xd8] sm:$0xff]
    %v716 = vld [vmem:[#allocation7 + $0xe0] sm:$0xff]
    %v717 = vld [vmem:[#allocation7 + $0xe8] sm:$0xff]
    %v718 = vld [vmem:[#allocation7 + $0xf0] sm:$0xff]
    %v719 = vld [vmem:[#allocation7 + $0xf8] sm:$0xff]
    %v720 = vld [vmem:[#allocation7 + $0x100] sm:$0xff]
    %v721 = vld [vmem:[#allocation7 + $0x108] sm:$0xff]
    %v722 = vld [vmem:[#allocation7 + $0x110] sm:$0xff]
    %v723 = vld [vmem:[#allocation7 + $0x118] sm:$0xff]
    %v724 = vld [vmem:[#allocation7 + $0x120] sm:$0xff]
    %v725 = vld [vmem:[#allocation7 + $0x128] sm:$0xff]
    %v726 = vld [vmem:[#allocation7 + $0x130] sm:$0xff]
    %v727 = vld [vmem:[#allocation7 + $0x138] sm:$0xff]
    %v728 = vld [vmem:[#allocation7 + $0x140] sm:$0xff]
    %v729 = vld [vmem:[#allocation7 + $0x148] sm:$0xff]
    %v730 = vld [vmem:[#allocation7 + $0x150] sm:$0xff]
    %v731 = vld [vmem:[#allocation7 + $0x158] sm:$0xff]
    %v732 = vld [vmem:[#allocation7 + $0x160] sm:$0xff]
    %v733 = vld [vmem:[#allocation7 + $0x168] sm:$0xff]
    %v734 = vld [vmem:[#allocation7 + $0x170] sm:$0xff]
    %v735 = vld [vmem:[#allocation7 + $0x178] sm:$0xff]
    %v736 = vld [vmem:[#allocation7 + $0x180] sm:$0xff]
    %v737 = vld [vmem:[#allocation7 + $0x188] sm:$0xff]
    %v738 = vld [vmem:[#allocation7 + $0x190] sm:$0xff]
    %v739 = vld [vmem:[#allocation7 + $0x198] sm:$0xff]
    %v740 = vld [vmem:[#allocation7 + $0x1a0] sm:$0xff]
    %v741 = vld [vmem:[#allocation7 + $0x1a8] sm:$0xff]
    %v742 = vld [vmem:[#allocation7 + $0x1b0] sm:$0xff]
    %v743 = vld [vmem:[#allocation7 + $0x1b8] sm:$0xff]
    %v744 = vld [vmem:[#allocation7 + $0x1c0] sm:$0xff]
    %v745 = vld [vmem:[#allocation7 + $0x1c8] sm:$0xff]
    %v746 = vld [vmem:[#allocation7 + $0x1d0] sm:$0xff]
    %v747 = vld [vmem:[#allocation7 + $0x1d8] sm:$0xff]
    %v748 = vld [vmem:[#allocation7 + $0x1e0] sm:$0xff]
    %v749 = vld [vmem:[#allocation7 + $0x1e8] sm:$0xff]
    %v750 = vld [vmem:[#allocation7 + $0x1f0] sm:$0xff]
    %v751 = vld [vmem:[#allocation7 + $0x1f8] sm:$0xff]
    %v816 = vunpack.c.l.b16 %v688
    %v817 = vunpack.c.h.b16 %v688
    %v818 = vunpack.c.l.b16 %v689
    %v819 = vunpack.c.h.b16 %v689
    %v820 = vunpack.c.l.b16 %v690
    %v821 = vunpack.c.h.b16 %v690
    %v822 = vunpack.c.l.b16 %v691
    %v823 = vunpack.c.h.b16 %v691
    %v824 = vunpack.c.l.b16 %v692
    %v825 = vunpack.c.h.b16 %v692
    %v826 = vunpack.c.l.b16 %v693
    %v827 = vunpack.c.h.b16 %v693
    %v828 = vunpack.c.l.b16 %v694
    %v829 = vunpack.c.h.b16 %v694
    %v830 = vunpack.c.l.b16 %v695
    %v831 = vunpack.c.h.b16 %v695
    %v832 = vunpack.c.l.b16 %v696
    %v833 = vunpack.c.h.b16 %v696
    %v834 = vunpack.c.l.b16 %v697
    %v835 = vunpack.c.h.b16 %v697
    %v836 = vunpack.c.l.b16 %v698
    %v837 = vunpack.c.h.b16 %v698
    %v838 = vunpack.c.l.b16 %v699
    %v839 = vunpack.c.h.b16 %v699
    %v840 = vunpack.c.l.b16 %v700
    %v841 = vunpack.c.h.b16 %v700
    %v842 = vunpack.c.l.b16 %v701
    %v843 = vunpack.c.h.b16 %v701
    %v844 = vunpack.c.l.b16 %v702
    %v845 = vunpack.c.h.b16 %v702
    %v846 = vunpack.c.l.b16 %v703
    %v847 = vunpack.c.h.b16 %v703
    %v848 = vunpack.c.l.b16 %v704
    %v849 = vunpack.c.h.b16 %v704
    %v850 = vunpack.c.l.b16 %v705
    %v851 = vunpack.c.h.b16 %v705
    %v852 = vunpack.c.l.b16 %v706
    %v853 = vunpack.c.h.b16 %v706
    %v854 = vunpack.c.l.b16 %v707
    %v855 = vunpack.c.h.b16 %v707
    %v856 = vunpack.c.l.b16 %v708
    %v857 = vunpack.c.h.b16 %v708
    %v858 = vunpack.c.l.b16 %v709
    %v859 = vunpack.c.h.b16 %v709
    %v860 = vunpack.c.l.b16 %v710
    %v861 = vunpack.c.h.b16 %v710
    %v862 = vunpack.c.l.b16 %v711
    %v863 = vunpack.c.h.b16 %v711
    %v864 = vunpack.c.l.b16 %v712
    %v865 = vunpack.c.h.b16 %v712
    %v866 = vunpack.c.l.b16 %v713
    %v867 = vunpack.c.h.b16 %v713
    %v868 = vunpack.c.l.b16 %v714
    %v869 = vunpack.c.h.b16 %v714
    %v870 = vunpack.c.l.b16 %v715
    %v871 = vunpack.c.h.b16 %v715
    %v872 = vunpack.c.l.b16 %v716
    %v873 = vunpack.c.h.b16 %v716
    %v874 = vunpack.c.l.b16 %v717
    %v875 = vunpack.c.h.b16 %v717
    %v876 = vunpack.c.l.b16 %v718
    %v877 = vunpack.c.h.b16 %v718
    %v878 = vunpack.c.l.b16 %v719
    %v879 = vunpack.c.h.b16 %v719
    %v880 = vunpack.c.l.b16 %v720
    %v881 = vunpack.c.h.b16 %v720
    %v882 = vunpack.c.l.b16 %v721
    %v883 = vunpack.c.h.b16 %v721
    %v884 = vunpack.c.l.b16 %v722
    %v885 = vunpack.c.h.b16 %v722
    %v886 = vunpack.c.l.b16 %v723
    %v887 = vunpack.c.h.b16 %v723
    %v888 = vunpack.c.l.b16 %v724
    %v889 = vunpack.c.h.b16 %v724
    %v890 = vunpack.c.l.b16 %v725
    %v891 = vunpack.c.h.b16 %v725
    %v892 = vunpack.c.l.b16 %v726
    %v893 = vunpack.c.h.b16 %v726
    %v894 = vunpack.c.l.b16 %v727
    %v895 = vunpack.c.h.b16 %v727
    %v896 = vunpack.c.l.b16 %v728
    %v897 = vunpack.c.h.b16 %v728
    %v898 = vunpack.c.l.b16 %v729
    %v899 = vunpack.c.h.b16 %v729
    %v900 = vunpack.c.l.b16 %v730
    %v901 = vunpack.c.h.b16 %v730
    %v902 = vunpack.c.l.b16 %v731
    %v903 = vunpack.c.h.b16 %v731
    %v904 = vunpack.c.l.b16 %v732
    %v905 = vunpack.c.h.b16 %v732
    %v906 = vunpack.c.l.b16 %v733
    %v907 = vunpack.c.h.b16 %v733
    %v908 = vunpack.c.l.b16 %v734
    %v909 = vunpack.c.h.b16 %v734
    %v910 = vunpack.c.l.b16 %v735
    %v911 = vunpack.c.h.b16 %v735
    %v912 = vunpack.c.l.b16 %v736
    %v913 = vunpack.c.h.b16 %v736
    %v914 = vunpack.c.l.b16 %v737
    %v915 = vunpack.c.h.b16 %v737
    %v916 = vunpack.c.l.b16 %v738
    %v917 = vunpack.c.h.b16 %v738
    %v918 = vunpack.c.l.b16 %v739
    %v919 = vunpack.c.h.b16 %v739
    %v920 = vunpack.c.l.b16 %v740
    %v921 = vunpack.c.h.b16 %v740
    %v922 = vunpack.c.l.b16 %v741
    %v923 = vunpack.c.h.b16 %v741
    %v924 = vunpack.c.l.b16 %v742
    %v925 = vunpack.c.h.b16 %v742
    %v926 = vunpack.c.l.b16 %v743
    %v927 = vunpack.c.h.b16 %v743
    %v928 = vunpack.c.l.b16 %v744
    %v929 = vunpack.c.h.b16 %v744
    %v930 = vunpack.c.l.b16 %v745
    %v931 = vunpack.c.h.b16 %v745
    %v932 = vunpack.c.l.b16 %v746
    %v933 = vunpack.c.h.b16 %v746
    %v934 = vunpack.c.l.b16 %v747
    %v935 = vunpack.c.h.b16 %v747
    %v936 = vunpack.c.l.b16 %v748
    %v937 = vunpack.c.h.b16 %v748
    %v938 = vunpack.c.l.b16 %v749
    %v939 = vunpack.c.h.b16 %v749
    %v940 = vunpack.c.l.b16 %v750
    %v941 = vunpack.c.h.b16 %v750
    %v942 = vunpack.c.l.b16 %v751
    %v943 = vunpack.c.h.b16 %v751
    %v944 = vpack.c.b16 %v820, %v816
    %v945 = vpack.c.b16 %v821, %v817
    %v946 = vpack.c.b16 %v822, %v818
    %v947 = vpack.c.b16 %v823, %v819
    %v948 = vpack.c.b16 %v828, %v824
    %v949 = vpack.c.b16 %v829, %v825
    %v950 = vpack.c.b16 %v830, %v826
    %v951 = vpack.c.b16 %v831, %v827
    %v952 = vpack.c.b16 %v836, %v832
    %v953 = vpack.c.b16 %v837, %v833
    %v954 = vpack.c.b16 %v838, %v834
    %v955 = vpack.c.b16 %v839, %v835
    %v956 = vpack.c.b16 %v844, %v840
    %v957 = vpack.c.b16 %v845, %v841
    %v958 = vpack.c.b16 %v846, %v842
    %v959 = vpack.c.b16 %v847, %v843
    %v960 = vpack.c.b16 %v852, %v848
    %v961 = vpack.c.b16 %v853, %v849
    %v962 = vpack.c.b16 %v854, %v850
    %v963 = vpack.c.b16 %v855, %v851
    %v964 = vpack.c.b16 %v860, %v856
    %v965 = vpack.c.b16 %v861, %v857
    %v966 = vpack.c.b16 %v862, %v858
    %v967 = vpack.c.b16 %v863, %v859
    %v968 = vpack.c.b16 %v868, %v864
    %v969 = vpack.c.b16 %v869, %v865
    %v970 = vpack.c.b16 %v870, %v866
    %v971 = vpack.c.b16 %v871, %v867
    %v972 = vpack.c.b16 %v876, %v872
    %v973 = vpack.c.b16 %v877, %v873
    %v974 = vpack.c.b16 %v878, %v874
    %v975 = vpack.c.b16 %v879, %v875
    %v976 = vpack.c.b16 %v884, %v880
    %v977 = vpack.c.b16 %v885, %v881
    %v978 = vpack.c.b16 %v886, %v882
    %v979 = vpack.c.b16 %v887, %v883
    %v980 = vpack.c.b16 %v892, %v888
    %v981 = vpack.c.b16 %v893, %v889
    %v982 = vpack.c.b16 %v894, %v890
    %v983 = vpack.c.b16 %v895, %v891
    %v984 = vpack.c.b16 %v900, %v896
    %v985 = vpack.c.b16 %v901, %v897
    %v986 = vpack.c.b16 %v902, %v898
    %v987 = vpack.c.b16 %v903, %v899
    %v988 = vpack.c.b16 %v908, %v904
    %v989 = vpack.c.b16 %v909, %v905
    %v990 = vpack.c.b16 %v910, %v906
    %v991 = vpack.c.b16 %v911, %v907
    %v992 = vpack.c.b16 %v916, %v912
    %v993 = vpack.c.b16 %v917, %v913
    %v994 = vpack.c.b16 %v918, %v914
    %v995 = vpack.c.b16 %v919, %v915
    %v996 = vpack.c.b16 %v924, %v920
    %v997 = vpack.c.b16 %v925, %v921
    %v998 = vpack.c.b16 %v926, %v922
    %v999 = vpack.c.b16 %v927, %v923
    %v1000 = vpack.c.b16 %v932, %v928
    %v1001 = vpack.c.b16 %v933, %v929
    %v1002 = vpack.c.b16 %v934, %v930
    %v1003 = vpack.c.b16 %v935, %v931
    %v1004 = vpack.c.b16 %v940, %v936
    %v1005 = vpack.c.b16 %v941, %v937
    %v1006 = vpack.c.b16 %v942, %v938
    %v1007 = vpack.c.b16 %v943, %v939
    %1072 = vmatprep.subr.bf16.mxu0 %v973
    %1073 = vmatpush1.bf16.msra.mxu0 %v972
    %1074 = vmatprep.subr.bf16.mxu0 %v969
    %1075 = vmatpush1.bf16.msra.mxu0 %v968
    %1076 = vmatprep.subr.bf16.mxu0 %v965
    %1077 = vmatpush1.bf16.msra.mxu0 %v964
    %1078 = vmatprep.subr.bf16.mxu0 %v961
    %1079 = vmatpush1.bf16.msra.mxu0 %v960
    %1080 = vmatprep.subr.bf16.mxu0 %v957
    %1081 = vmatpush1.bf16.msra.mxu0 %v956
    %1082 = vmatprep.subr.bf16.mxu0 %v953
    %1083 = vmatpush1.bf16.msra.mxu0 %v952
    %1084 = vmatprep.subr.bf16.mxu0 %v949
    %1085 = vmatpush1.bf16.msra.mxu0 %v948
    %1086 = vmatprep.subr.bf16.mxu0 %v945
    %1087 = vmatpush1.bf16.msra.mxu0 %v944
    %1088 = vmatprep.subr.bf16.mxu0 %v1005
    %1089 = vmatpush2.bf16.msra.mxu0 %v1004
    %1090 = vmatprep.subr.bf16.mxu0 %v1001
    %1091 = vmatpush2.bf16.msra.mxu0 %v1000
    %1092 = vmatprep.subr.bf16.mxu0 %v997
    %1093 = vmatpush2.bf16.msra.mxu0 %v996
    %1094 = vmatprep.subr.bf16.mxu0 %v993
    %1095 = vmatpush2.bf16.msra.mxu0 %v992
    %1096 = vmatprep.subr.bf16.mxu0 %v989
    %1097 = vmatpush2.bf16.msra.mxu0 %v988
    %1098 = vmatprep.subr.bf16.mxu0 %v985
    %1099 = vmatpush2.bf16.msra.mxu0 %v984
    %1100 = vmatprep.subr.bf16.mxu0 %v981
    %1101 = vmatpush2.bf16.msra.mxu0 %v980
    %1102 = vmatprep.subr.bf16.mxu0 %v977
    %1103 = vmatpush2.bf16.msra.mxu0 %v976
    %1104 = vmatprep.mubr.bf16.mxu0 %v687
    %1105 = vmatmul.mubr.bf16.gmra.mxu0 %v686
    %v1106 = vpop.f32.mrf.mxu0
    %v1107 = vadd.f32 %v363, %v1106
    %v1108 = vpop.f32.mrf.mxu0
    %v1109 = vadd.f32 %v367, %v1108
    %v1110 = vpop.f32.mrf.mxu0
    %v1111 = vpop.f32.mrf.mxu0
    %1112 = vdwg.mxu0
    %1113 = vmatprep.subr.bf16.mxu0 %v975
    %1114 = vmatpush1.bf16.msra.mxu0 %v974
    %1115 = vmatprep.subr.bf16.mxu0 %v971
    %1116 = vmatpush1.bf16.msra.mxu0 %v970
    %1117 = vmatprep.subr.bf16.mxu0 %v967
    %1118 = vmatpush1.bf16.msra.mxu0 %v966
    %1119 = vmatprep.subr.bf16.mxu0 %v963
    %1120 = vmatpush1.bf16.msra.mxu0 %v962
    %1121 = vmatprep.subr.bf16.mxu0 %v959
    %1122 = vmatpush1.bf16.msra.mxu0 %v958
    %1123 = vmatprep.subr.bf16.mxu0 %v955
    %1124 = vmatpush1.bf16.msra.mxu0 %v954
    %1125 = vmatprep.subr.bf16.mxu0 %v951
    %1126 = vmatpush1.bf16.msra.mxu0 %v950
    %1127 = vmatprep.subr.bf16.mxu0 %v947
    %1128 = vmatpush1.bf16.msra.mxu0 %v946
    %1129 = vmatprep.subr.bf16.mxu0 %v1007
    %1130 = vmatpush2.bf16.msra.mxu0 %v1006
    %1131 = vmatprep.subr.bf16.mxu0 %v1003
    %1132 = vmatpush2.bf16.msra.mxu0 %v1002
    %1133 = vmatprep.subr.bf16.mxu0 %v999
    %1134 = vmatpush2.bf16.msra.mxu0 %v998
    %1135 = vmatprep.subr.bf16.mxu0 %v995
    %1136 = vmatpush2.bf16.msra.mxu0 %v994
    %1137 = vmatprep.subr.bf16.mxu0 %v991
    %1138 = vmatpush2.bf16.msra.mxu0 %v990
    %1139 = vmatprep.subr.bf16.mxu0 %v987
    %1140 = vmatpush2.bf16.msra.mxu0 %v986
    %1141 = vmatprep.subr.bf16.mxu0 %v983
    %1142 = vmatpush2.bf16.msra.mxu0 %v982
    %1143 = vmatprep.subr.bf16.mxu0 %v979
    %1144 = vmatpush2.bf16.msra.mxu0 %v978
    %1145 = vmatprep.mubr.bf16.mxu0 %v687
    %1146 = vmatmul.mubr.bf16.gmra.mxu0 %v686
    %v1147 = vpop.f32.mrf.mxu0
    %v1148 = vadd.f32 %v371, %v1147
    %v1149 = vpop.f32.mrf.mxu0
    %v1150 = vadd.f32 %v375, %v1149
    %v1151 = vpop.f32.mrf.mxu0
    %v1152 = vpop.f32.mrf.mxu0
    %1153 = vdwg.mxu0
    %v1154 = vxor.u32 %v1107, 2147483648
    %v1155 = vmul.f32 %v1154, 1.442695
    %v1156 = vpow.pop %v1155
    %v1157 = vadd.f32 %v1156, 1.0
    %v1158 = vrcp.pop %v1157
    %v1159 = vmul.f32 1.0, %v1158
    %v1160 = vxor.u32 %v1109, 2147483648
    %v1161 = vmul.f32 %v1160, 1.442695
    %v1162 = vpow.pop %v1161
    %v1163 = vadd.f32 %v1162, 1.0
    %v1164 = vrcp.pop %v1163
    %v1165 = vmul.f32 1.0, %v1164
    %v1166 = vtanh.pop %v1148
    %v1167 = vxor.u32 %v1150, 2147483648
    %v1168 = vmul.f32 %v1167, 1.442695
    %v1169 = vpow.pop %v1168
    %v1170 = vadd.f32 %v1169, 1.0
    %v1171 = vrcp.pop %v1170
    %v1172 = vmul.f32 1.0, %v1171
    %v1173 = vmul.f32 %v1165, 0.0
    %v1174 = vmul.f32 %v1159, %v1166
    %v1175 = vadd.f32 %v1173, %v1174
    %v1176 = vtanh.pop %v1175
    %v1177 = vmul.f32 %v1172, %v1176
    %v1178 = vld [vmem:[#allocation2 + $0x20] sm:$0xff]
    %v1179 = vld [vmem:[#allocation2 + $0x28] sm:$0xff]
    %v1180 = vld [vmem:[#allocation2 + $0x30] sm:$0xff]
    %v1181 = vld [vmem:[#allocation2 + $0x38] sm:$0xff]
    %1182 = vmatprep.subr.bf16.mxu0 %v541
    %1183 = vmatpush1.bf16.msra.mxu0 %v540
    %1184 = vmatprep.subr.bf16.mxu0 %v537
    %1185 = vmatpush1.bf16.msra.mxu0 %v536
    %1186 = vmatprep.subr.bf16.mxu0 %v533
    %1187 = vmatpush1.bf16.msra.mxu0 %v532
    %1188 = vmatprep.subr.bf16.mxu0 %v529
    %1189 = vmatpush1.bf16.msra.mxu0 %v528
    %1190 = vmatprep.subr.bf16.mxu0 %v525
    %1191 = vmatpush1.bf16.msra.mxu0 %v524
    %1192 = vmatprep.subr.bf16.mxu0 %v521
    %1193 = vmatpush1.bf16.msra.mxu0 %v520
    %1194 = vmatprep.subr.bf16.mxu0 %v517
    %1195 = vmatpush1.bf16.msra.mxu0 %v516
    %1196 = vmatprep.subr.bf16.mxu0 %v513
    %1197 = vmatpush1.bf16.msra.mxu0 %v512
    %1198 = vmatprep.subr.bf16.mxu0 0
    %1199 = vmatpush2.bf16.msra.mxu0 0
    %1200 = vmatprep.subr.bf16.mxu0 0
    %1201 = vmatpush2.bf16.msra.mxu0 0
    %1202 = vmatprep.subr.bf16.mxu0 0
    %1203 = vmatpush2.bf16.msra.mxu0 0
    %1204 = vmatprep.subr.bf16.mxu0 0
    %1205 = vmatpush2.bf16.msra.mxu0 0
    %1206 = vmatprep.subr.bf16.mxu0 0
    %1207 = vmatpush2.bf16.msra.mxu0 0
    %1208 = vmatprep.subr.bf16.mxu0 0
    %1209 = vmatpush2.bf16.msra.mxu0 0
    %1210 = vmatprep.subr.bf16.mxu0 0
    %1211 = vmatpush2.bf16.msra.mxu0 0
    %1212 = vmatprep.subr.bf16.mxu0 0
    %1213 = vmatpush2.bf16.msra.mxu0 0
    %1214 = vmatprep.mubr.bf16.mxu0 0
    %1215 = vmatmul.mubr.bf16.gmra.mxu0 %v686
    %v1216 = vpop.f32.mrf.mxu0
    %v1217 = vadd.f32 0.0, %v1216
    %v1218 = vpop.f32.mrf.mxu0
    %v1219 = vadd.f32 0.0, %v1218
    %v1220 = vpop.f32.mrf.mxu0
    %v1221 = vpop.f32.mrf.mxu0
    %1222 = vdwg.mxu0
    %1223 = vmatprep.subr.bf16.mxu0 %v543
    %1224 = vmatpush1.bf16.msra.mxu0 %v542
    %1225 = vmatprep.subr.bf16.mxu0 %v539
    %1226 = vmatpush1.bf16.msra.mxu0 %v538
    %1227 = vmatprep.subr.bf16.mxu0 %v535
    %1228 = vmatpush1.bf16.msra.mxu0 %v534
    %1229 = vmatprep.subr.bf16.mxu0 %v531
    %1230 = vmatpush1.bf16.msra.mxu0 %v530
    %1231 = vmatprep.subr.bf16.mxu0 %v527
    %1232 = vmatpush1.bf16.msra.mxu0 %v526
    %1233 = vmatprep.subr.bf16.mxu0 %v523
    %1234 = vmatpush1.bf16.msra.mxu0 %v522
    %1235 = vmatprep.subr.bf16.mxu0 %v519
    %1236 = vmatpush1.bf16.msra.mxu0 %v518
    %1237 = vmatprep.subr.bf16.mxu0 %v515
    %1238 = vmatpush1.bf16.msra.mxu0 %v514
    %1239 = vmatprep.subr.bf16.mxu0 0
    %1240 = vmatpush2.bf16.msra.mxu0 0
    %1241 = vmatprep.subr.bf16.mxu0 0
    %1242 = vmatpush2.bf16.msra.mxu0 0
    %1243 = vmatprep.subr.bf16.mxu0 0
    %1244 = vmatpush2.bf16.msra.mxu0 0
    %1245 = vmatprep.subr.bf16.mxu0 0
    %1246 = vmatpush2.bf16.msra.mxu0 0
    %1247 = vmatprep.subr.bf16.mxu0 0
    %1248 = vmatpush2.bf16.msra.mxu0 0
    %1249 = vmatprep.subr.bf16.mxu0 0
    %1250 = vmatpush2.bf16.msra.mxu0 0
    %1251 = vmatprep.subr.bf16.mxu0 0
    %1252 = vmatpush2.bf16.msra.mxu0 0
    %1253 = vmatprep.subr.bf16.mxu0 0
    %1254 = vmatpush2.bf16.msra.mxu0 0
    %1255 = vmatprep.mubr.bf16.mxu0 0
    %1256 = vmatmul.mubr.bf16.gmra.mxu0 %v686
    %v1257 = vpop.f32.mrf.mxu0
    %v1258 = vadd.f32 0.0, %v1257
    %v1259 = vpop.f32.mrf.mxu0
    %v1260 = vadd.f32 0.0, %v1259
    %v1261 = vpop.f32.mrf.mxu0
    %v1262 = vpop.f32.mrf.mxu0
    %1263 = vdwg.mxu0
    %v1264 = vadd.f32 %v1178, %v1217
    %v1265 = vadd.f32 %v1179, %v1219
    %v1266 = vadd.f32 %v1180, %v1258
    %v1267 = vadd.f32 %v1181, %v1260
    %v1268 = vxor.u32 %v1264, 2147483648
    %v1269 = vmul.f32 %v1268, 1.442695
    %v1270 = vpow.pop %v1269
    %v1271 = vadd.f32 %v1270, 1.0
    %v1272 = vrcp.pop %v1271
    %v1273 = vmul.f32 1.0, %v1272
    %v1274 = vxor.u32 %v1265, 2147483648
    %v1275 = vmul.f32 %v1274, 1.442695
    %v1276 = vpow.pop %v1275
    %v1277 = vadd.f32 %v1276, 1.0
    %v1278 = vrcp.pop %v1277
    %v1279 = vmul.f32 1.0, %v1278
    %v1280 = vtanh.pop %v1266
    %v1281 = vxor.u32 %v1267, 2147483648
    %v1282 = vmul.f32 %v1281, 1.442695
    %v1283 = vpow.pop %v1282
    %v1284 = vadd.f32 %v1283, 1.0
    %v1285 = vrcp.pop %v1284
    %v1286 = vmul.f32 1.0, %v1285
    %v1287 = vmul.f32 %v1279, %v683
    %v1288 = vmul.f32 %v1273, %v1280
    %v1289 = vadd.f32 %v1287, %v1288
    %v1290 = vtanh.pop %v1289
    %v1291 = vmul.f32 %v1286, %v1290
    %v1292 = vpack.c.bf16 %v1291, %v1291
    %v1293 = vpack.c.bf16 %v1177, %v1177
    %1294 = vmatprep.subr.bf16.mxu0 %v973
    %1295 = vmatpush1.bf16.msra.mxu0 %v972
    %1296 = vmatprep.subr.bf16.mxu0 %v969
    %1297 = vmatpush1.bf16.msra.mxu0 %v968
    %1298 = vmatprep.subr.bf16.mxu0 %v965
    %1299 = vmatpush1.bf16.msra.mxu0 %v964
    %1300 = vmatprep.subr.bf16.mxu0 %v961
    %1301 = vmatpush1.bf16.msra.mxu0 %v960
    %1302 = vmatprep.subr.bf16.mxu0 %v957
    %1303 = vmatpush1.bf16.msra.mxu0 %v956
    %1304 = vmatprep.subr.bf16.mxu0 %v953
    %1305 = vmatpush1.bf16.msra.mxu0 %v952
    %1306 = vmatprep.subr.bf16.mxu0 %v949
    %1307 = vmatpush1.bf16.msra.mxu0 %v948
    %1308 = vmatprep.subr.bf16.mxu0 %v945
    %1309 = vmatpush1.bf16.msra.mxu0 %v944
    %1310 = vmatprep.subr.bf16.mxu0 %v1005
    %1311 = vmatpush2.bf16.msra.mxu0 %v1004
    %1312 = vmatprep.subr.bf16.mxu0 %v1001
    %1313 = vmatpush2.bf16.msra.mxu0 %v1000
    %1314 = vmatprep.subr.bf16.mxu0 %v997
    %1315 = vmatpush2.bf16.msra.mxu0 %v996
    %1316 = vmatprep.subr.bf16.mxu0 %v993
    %1317 = vmatpush2.bf16.msra.mxu0 %v992
    %1318 = vmatprep.subr.bf16.mxu0 %v989
    %1319 = vmatpush2.bf16.msra.mxu0 %v988
    %1320 = vmatprep.subr.bf16.mxu0 %v985
    %1321 = vmatpush2.bf16.msra.mxu0 %v984
    %1322 = vmatprep.subr.bf16.mxu0 %v981
    %1323 = vmatpush2.bf16.msra.mxu0 %v980
    %1324 = vmatprep.subr.bf16.mxu0 %v977
    %1325 = vmatpush2.bf16.msra.mxu0 %v976
    %1326 = vmatprep.mubr.bf16.mxu0 %v1293
    %1327 = vmatmul.mubr.bf16.gmra.mxu0 %v1292
    %v1328 = vpop.f32.mrf.mxu0
    %v1329 = vadd.f32 %v363, %v1328
    %v1330 = vpop.f32.mrf.mxu0
    %v1331 = vadd.f32 %v367, %v1330
    %v1332 = vpop.f32.mrf.mxu0
    %v1333 = vpop.f32.mrf.mxu0
    %1334 = vdwg.mxu0
    %1335 = vmatprep.subr.bf16.mxu0 %v975
    %1336 = vmatpush1.bf16.msra.mxu0 %v974
    %1337 = vmatprep.subr.bf16.mxu0 %v971
    %1338 = vmatpush1.bf16.msra.mxu0 %v970
    %1339 = vmatprep.subr.bf16.mxu0 %v967
    %1340 = vmatpush1.bf16.msra.mxu0 %v966
    %1341 = vmatprep.subr.bf16.mxu0 %v963
    %1342 = vmatpush1.bf16.msra.mxu0 %v962
    %1343 = vmatprep.subr.bf16.mxu0 %v959
    %1344 = vmatpush1.bf16.msra.mxu0 %v958
    %1345 = vmatprep.subr.bf16.mxu0 %v955
    %1346 = vmatpush1.bf16.msra.mxu0 %v954
    %1347 = vmatprep.subr.bf16.mxu0 %v951
    %1348 = vmatpush1.bf16.msra.mxu0 %v950
    %1349 = vmatprep.subr.bf16.mxu0 %v947
    %1350 = vmatpush1.bf16.msra.mxu0 %v946
    %1351 = vmatprep.subr.bf16.mxu0 %v1007
    %1352 = vmatpush2.bf16.msra.mxu0 %v1006
    %1353 = vmatprep.subr.bf16.mxu0 %v1003
    %1354 = vmatpush2.bf16.msra.mxu0 %v1002
    %1355 = vmatprep.subr.bf16.mxu0 %v999
    %1356 = vmatpush2.bf16.msra.mxu0 %v998
    %1357 = vmatprep.subr.bf16.mxu0 %v995
    %1358 = vmatpush2.bf16.msra.mxu0 %v994
    %1359 = vmatprep.subr.bf16.mxu0 %v991
    %1360 = vmatpush2.bf16.msra.mxu0 %v990
    %1361 = vmatprep.subr.bf16.mxu0 %v987
    %1362 = vmatpush2.bf16.msra.mxu0 %v986
    %1363 = vmatprep.subr.bf16.mxu0 %v983
    %1364 = vmatpush2.bf16.msra.mxu0 %v982
    %1365 = vmatprep.subr.bf16.mxu0 %v979
    %1366 = vmatpush2.bf16.msra.mxu0 %v978
    %1367 = vmatprep.mubr.bf16.mxu0 %v1293
    %1368 = vmatmul.mubr.bf16.gmra.mxu0 %v1292
    %v1369 = vpop.f32.mrf.mxu0
    %v1370 = vadd.f32 %v371, %v1369
    %v1371 = vpop.f32.mrf.mxu0
    %v1372 = vadd.f32 %v375, %v1371
    %v1373 = vpop.f32.mrf.mxu0
    %v1374 = vpop.f32.mrf.mxu0
    %1375 = vdwg.mxu0
    %v1376 = vxor.u32 %v1329, 2147483648
    %v1377 = vmul.f32 %v1376, 1.442695
    %v1378 = vpow.pop %v1377
    %v1379 = vadd.f32 %v1378, 1.0
    %v1380 = vrcp.pop %v1379
    %v1381 = vmul.f32 1.0, %v1380
    %v1382 = vxor.u32 %v1331, 2147483648
    %v1383 = vmul.f32 %v1382, 1.442695
    %v1384 = vpow.pop %v1383
    %v1385 = vadd.f32 %v1384, 1.0
    %v1386 = vrcp.pop %v1385
    %v1387 = vmul.f32 1.0, %v1386
    %v1388 = vtanh.pop %v1370
    %v1389 = vxor.u32 %v1372, 2147483648
    %v1390 = vmul.f32 %v1389, 1.442695
    %v1391 = vpow.pop %v1390
    %v1392 = vadd.f32 %v1391, 1.0
    %v1393 = vrcp.pop %v1392
    %v1394 = vmul.f32 1.0, %v1393
    %v1395 = vmul.f32 %v1387, %v1175
    %v1396 = vmul.f32 %v1381, %v1388
    %v1397 = vadd.f32 %v1395, %v1396
    %v1398 = vtanh.pop %v1397
    %v1399 = vmul.f32 %v1394, %v1398
    %v1400 = vld [vmem:[#allocation2 + $0x40] sm:$0xff]
    %v1401 = vld [vmem:[#allocation2 + $0x48] sm:$0xff]
    %v1402 = vld [vmem:[#allocation2 + $0x50] sm:$0xff]
    %v1403 = vld [vmem:[#allocation2 + $0x58] sm:$0xff]
    %1404 = vmatprep.subr.bf16.mxu0 %v541
    %1405 = vmatpush1.bf16.msra.mxu0 %v540
    %1406 = vmatprep.subr.bf16.mxu0 %v537
    %1407 = vmatpush1.bf16.msra.mxu0 %v536
    %1408 = vmatprep.subr.bf16.mxu0 %v533
    %1409 = vmatpush1.bf16.msra.mxu0 %v532
    %1410 = vmatprep.subr.bf16.mxu0 %v529
    %1411 = vmatpush1.bf16.msra.mxu0 %v528
    %1412 = vmatprep.subr.bf16.mxu0 %v525
    %1413 = vmatpush1.bf16.msra.mxu0 %v524
    %1414 = vmatprep.subr.bf16.mxu0 %v521
    %1415 = vmatpush1.bf16.msra.mxu0 %v520
    %1416 = vmatprep.subr.bf16.mxu0 %v517
    %1417 = vmatpush1.bf16.msra.mxu0 %v516
    %1418 = vmatprep.subr.bf16.mxu0 %v513
    %1419 = vmatpush1.bf16.msra.mxu0 %v512
    %1420 = vmatprep.subr.bf16.mxu0 0
    %1421 = vmatpush2.bf16.msra.mxu0 0
    %1422 = vmatprep.subr.bf16.mxu0 0
    %1423 = vmatpush2.bf16.msra.mxu0 0
    %1424 = vmatprep.subr.bf16.mxu0 0
    %1425 = vmatpush2.bf16.msra.mxu0 0
    %1426 = vmatprep.subr.bf16.mxu0 0
    %1427 = vmatpush2.bf16.msra.mxu0 0
    %1428 = vmatprep.subr.bf16.mxu0 0
    %1429 = vmatpush2.bf16.msra.mxu0 0
    %1430 = vmatprep.subr.bf16.mxu0 0
    %1431 = vmatpush2.bf16.msra.mxu0 0
    %1432 = vmatprep.subr.bf16.mxu0 0
    %1433 = vmatpush2.bf16.msra.mxu0 0
    %1434 = vmatprep.subr.bf16.mxu0 0
    %1435 = vmatpush2.bf16.msra.mxu0 0
    %1436 = vmatprep.mubr.bf16.mxu0 0
    %1437 = vmatmul.mubr.bf16.gmra.mxu0 %v1292
    %v1438 = vpop.f32.mrf.mxu0
    %v1439 = vadd.f32 0.0, %v1438
    %v1440 = vpop.f32.mrf.mxu0
    %v1441 = vadd.f32 0.0, %v1440
    %v1442 = vpop.f32.mrf.mxu0
    %v1443 = vpop.f32.mrf.mxu0
    %1444 = vdwg.mxu0
    %1445 = vmatprep.subr.bf16.mxu0 %v543
    %1446 = vmatpush1.bf16.msra.mxu0 %v542
    %1447 = vmatprep.subr.bf16.mxu0 %v539
    %1448 = vmatpush1.bf16.msra.mxu0 %v538
    %1449 = vmatprep.subr.bf16.mxu0 %v535
    %1450 = vmatpush1.bf16.msra.mxu0 %v534
    %1451 = vmatprep.subr.bf16.mxu0 %v531
    %1452 = vmatpush1.bf16.msra.mxu0 %v530
    %1453 = vmatprep.subr.bf16.mxu0 %v527
    %1454 = vmatpush1.bf16.msra.mxu0 %v526
    %1455 = vmatprep.subr.bf16.mxu0 %v523
    %1456 = vmatpush1.bf16.msra.mxu0 %v522
    %1457 = vmatprep.subr.bf16.mxu0 %v519
    %1458 = vmatpush1.bf16.msra.mxu0 %v518
    %1459 = vmatprep.subr.bf16.mxu0 %v515
    %1460 = vmatpush1.bf16.msra.mxu0 %v514
    %1461 = vmatprep.subr.bf16.mxu0 0
    %1462 = vmatpush2.bf16.msra.mxu0 0
    %1463 = vmatprep.subr.bf16.mxu0 0
    %1464 = vmatpush2.bf16.msra.mxu0 0
    %1465 = vmatprep.subr.bf16.mxu0 0
    %1466 = vmatpush2.bf16.msra.mxu0 0
    %1467 = vmatprep.subr.bf16.mxu0 0
    %1468 = vmatpush2.bf16.msra.mxu0 0
    %1469 = vmatprep.subr.bf16.mxu0 0
    %1470 = vmatpush2.bf16.msra.mxu0 0
    %1471 = vmatprep.subr.bf16.mxu0 0
    %1472 = vmatpush2.bf16.msra.mxu0 0
    %1473 = vmatprep.subr.bf16.mxu0 0
    %1474 = vmatpush2.bf16.msra.mxu0 0
    %1475 = vmatprep.subr.bf16.mxu0 0
    %1476 = vmatpush2.bf16.msra.mxu0 0
    %1477 = vmatprep.mubr.bf16.mxu0 0
    %1478 = vmatmul.mubr.bf16.gmra.mxu0 %v1292
    %v1479 = vpop.f32.mrf.mxu0
    %v1480 = vadd.f32 0.0, %v1479
    %v1481 = vpop.f32.mrf.mxu0
    %v1482 = vadd.f32 0.0, %v1481
    %v1483 = vpop.f32.mrf.mxu0
    %v1484 = vpop.f32.mrf.mxu0
    %1485 = vdwg.mxu0
    %v1486 = vadd.f32 %v1400, %v1439
    %v1487 = vadd.f32 %v1401, %v1441
    %v1488 = vadd.f32 %v1402, %v1480
    %v1489 = vadd.f32 %v1403, %v1482
    %v1490 = vxor.u32 %v1486, 2147483648
    %v1491 = vmul.f32 %v1490, 1.442695
    %v1492 = vpow.pop %v1491
    %v1493 = vadd.f32 %v1492, 1.0
    %v1494 = vrcp.pop %v1493
    %v1495 = vmul.f32 1.0, %v1494
    %v1496 = vxor.u32 %v1487, 2147483648
    %v1497 = vmul.f32 %v1496, 1.442695
    %v1498 = vpow.pop %v1497
    %v1499 = vadd.f32 %v1498, 1.0
    %v1500 = vrcp.pop %v1499
    %v1501 = vmul.f32 1.0, %v1500
    %v1502 = vtanh.pop %v1488
    %v1503 = vxor.u32 %v1489, 2147483648
    %v1504 = vmul.f32 %v1503, 1.442695
    %v1505 = vpow.pop %v1504
    %v1506 = vadd.f32 %v1505, 1.0
    %v1507 = vrcp.pop %v1506
    %v1508 = vmul.f32 1.0, %v1507
    %v1509 = vmul.f32 %v1501, %v1289
    %v1510 = vmul.f32 %v1495, %v1502
    %v1511 = vadd.f32 %v1509, %v1510
    %v1512 = vtanh.pop %v1511
    %v1513 = vmul.f32 %v1508, %v1512
    %v1514 = vpack.c.bf16 %v1513, %v1513
    %v1515 = vpack.c.bf16 %v1399, %v1399
    %1516 = vmatprep.subr.bf16.mxu0 %v973
    %1517 = vmatpush1.bf16.msra.mxu0 %v972
    %1518 = vmatprep.subr.bf16.mxu0 %v969
    %1519 = vmatpush1.bf16.msra.mxu0 %v968
    %1520 = vmatprep.subr.bf16.mxu0 %v965
    %1521 = vmatpush1.bf16.msra.mxu0 %v964
    %1522 = vmatprep.subr.bf16.mxu0 %v961
    %1523 = vmatpush1.bf16.msra.mxu0 %v960
    %1524 = vmatprep.subr.bf16.mxu0 %v957
    %1525 = vmatpush1.bf16.msra.mxu0 %v956
    %1526 = vmatprep.subr.bf16.mxu0 %v953
    %1527 = vmatpush1.bf16.msra.mxu0 %v952
    %1528 = vmatprep.subr.bf16.mxu0 %v949
    %1529 = vmatpush1.bf16.msra.mxu0 %v948
    %1530 = vmatprep.subr.bf16.mxu0 %v945
    %1531 = vmatpush1.bf16.msra.mxu0 %v944
    %1532 = vmatprep.subr.bf16.mxu0 %v1005
    %1533 = vmatpush2.bf16.msra.mxu0 %v1004
    %1534 = vmatprep.subr.bf16.mxu0 %v1001
    %1535 = vmatpush2.bf16.msra.mxu0 %v1000
    %1536 = vmatprep.subr.bf16.mxu0 %v997
    %1537 = vmatpush2.bf16.msra.mxu0 %v996
    %1538 = vmatprep.subr.bf16.mxu0 %v993
    %1539 = vmatpush2.bf16.msra.mxu0 %v992
    %1540 = vmatprep.subr.bf16.mxu0 %v989
    %1541 = vmatpush2.bf16.msra.mxu0 %v988
    %1542 = vmatprep.subr.bf16.mxu0 %v985
    %1543 = vmatpush2.bf16.msra.mxu0 %v984
    %1544 = vmatprep.subr.bf16.mxu0 %v981
    %1545 = vmatpush2.bf16.msra.mxu0 %v980
    %1546 = vmatprep.subr.bf16.mxu0 %v977
    %1547 = vmatpush2.bf16.msra.mxu0 %v976
    %1548 = vmatprep.mubr.bf16.mxu0 %v1515
    %1549 = vmatmul.mubr.bf16.gmra.mxu0 %v1514
    %v1550 = vpop.f32.mrf.mxu0
    %v1551 = vadd.f32 %v363, %v1550
    %v1552 = vpop.f32.mrf.mxu0
    %v1553 = vadd.f32 %v367, %v1552
    %v1554 = vpop.f32.mrf.mxu0
    %v1555 = vpop.f32.mrf.mxu0
    %1556 = vdwg.mxu0
    %1557 = vmatprep.subr.bf16.mxu0 %v975
    %1558 = vmatpush1.bf16.msra.mxu0 %v974
    %1559 = vmatprep.subr.bf16.mxu0 %v971
    %1560 = vmatpush1.bf16.msra.mxu0 %v970
    %1561 = vmatprep.subr.bf16.mxu0 %v967
    %1562 = vmatpush1.bf16.msra.mxu0 %v966
    %1563 = vmatprep.subr.bf16.mxu0 %v963
    %1564 = vmatpush1.bf16.msra.mxu0 %v962
    %1565 = vmatprep.subr.bf16.mxu0 %v959
    %1566 = vmatpush1.bf16.msra.mxu0 %v958
    %1567 = vmatprep.subr.bf16.mxu0 %v955
    %1568 = vmatpush1.bf16.msra.mxu0 %v954
    %1569 = vmatprep.subr.bf16.mxu0 %v951
    %1570 = vmatpush1.bf16.msra.mxu0 %v950
    %1571 = vmatprep.subr.bf16.mxu0 %v947
    %1572 = vmatpush1.bf16.msra.mxu0 %v946
    %1573 = vmatprep.subr.bf16.mxu0 %v1007
    %1574 = vmatpush2.bf16.msra.mxu0 %v1006
    %1575 = vmatprep.subr.bf16.mxu0 %v1003
    %1576 = vmatpush2.bf16.msra.mxu0 %v1002
    %1577 = vmatprep.subr.bf16.mxu0 %v999
    %1578 = vmatpush2.bf16.msra.mxu0 %v998
    %1579 = vmatprep.subr.bf16.mxu0 %v995
    %1580 = vmatpush2.bf16.msra.mxu0 %v994
    %1581 = vmatprep.subr.bf16.mxu0 %v991
    %1582 = vmatpush2.bf16.msra.mxu0 %v990
    %1583 = vmatprep.subr.bf16.mxu0 %v987
    %1584 = vmatpush2.bf16.msra.mxu0 %v986
    %1585 = vmatprep.subr.bf16.mxu0 %v983
    %1586 = vmatpush2.bf16.msra.mxu0 %v982
    %1587 = vmatprep.subr.bf16.mxu0 %v979
    %1588 = vmatpush2.bf16.msra.mxu0 %v978
    %1589 = vmatprep.mubr.bf16.mxu0 %v1515
    %1590 = vmatmul.mubr.bf16.gmra.mxu0 %v1514
    %v1591 = vpop.f32.mrf.mxu0
    %v1592 = vadd.f32 %v371, %v1591
    %v1593 = vpop.f32.mrf.mxu0
    %v1594 = vadd.f32 %v375, %v1593
    %v1595 = vpop.f32.mrf.mxu0
    %v1596 = vpop.f32.mrf.mxu0
    %1597 = vdwg.mxu0
    %v1598 = vxor.u32 %v1551, 2147483648
    %v1599 = vmul.f32 %v1598, 1.442695
    %v1600 = vpow.pop %v1599
    %v1601 = vadd.f32 %v1600, 1.0
    %v1602 = vrcp.pop %v1601
    %v1603 = vmul.f32 1.0, %v1602
    %v1604 = vxor.u32 %v1553, 2147483648
    %v1605 = vmul.f32 %v1604, 1.442695
    %v1606 = vpow.pop %v1605
    %v1607 = vadd.f32 %v1606, 1.0
    %v1608 = vrcp.pop %v1607
    %v1609 = vmul.f32 1.0, %v1608
    %v1610 = vtanh.pop %v1592
    %v1611 = vxor.u32 %v1594, 2147483648
    %v1612 = vmul.f32 %v1611, 1.442695
    %v1613 = vpow.pop %v1612
    %v1614 = vadd.f32 %v1613, 1.0
    %v1615 = vrcp.pop %v1614
    %v1616 = vmul.f32 1.0, %v1615
    %v1617 = vmul.f32 %v1609, %v1397
    %v1618 = vmul.f32 %v1603, %v1610
    %v1619 = vadd.f32 %v1617, %v1618
    %v1620 = vtanh.pop %v1619
    %v1621 = vmul.f32 %v1616, %v1620
    %v1622 = vld [vmem:[#allocation2 + $0x60] sm:$0xff]
    %v1623 = vld [vmem:[#allocation2 + $0x68] sm:$0xff]
    %v1624 = vld [vmem:[#allocation2 + $0x70] sm:$0xff]
    %v1625 = vld [vmem:[#allocation2 + $0x78] sm:$0xff]
    %1626 = vmatprep.subr.bf16.mxu0 %v541
    %1627 = vmatpush1.bf16.msra.mxu0 %v540
    %1628 = vmatprep.subr.bf16.mxu0 %v537
    %1629 = vmatpush1.bf16.msra.mxu0 %v536
    %1630 = vmatprep.subr.bf16.mxu0 %v533
    %1631 = vmatpush1.bf16.msra.mxu0 %v532
    %1632 = vmatprep.subr.bf16.mxu0 %v529
    %1633 = vmatpush1.bf16.msra.mxu0 %v528
    %1634 = vmatprep.subr.bf16.mxu0 %v525
    %1635 = vmatpush1.bf16.msra.mxu0 %v524
    %1636 = vmatprep.subr.bf16.mxu0 %v521
    %1637 = vmatpush1.bf16.msra.mxu0 %v520
    %1638 = vmatprep.subr.bf16.mxu0 %v517
    %1639 = vmatpush1.bf16.msra.mxu0 %v516
    %1640 = vmatprep.subr.bf16.mxu0 %v513
    %1641 = vmatpush1.bf16.msra.mxu0 %v512
    %1642 = vmatprep.subr.bf16.mxu0 0
    %1643 = vmatpush2.bf16.msra.mxu0 0
    %1644 = vmatprep.subr.bf16.mxu0 0
    %1645 = vmatpush2.bf16.msra.mxu0 0
    %1646 = vmatprep.subr.bf16.mxu0 0
    %1647 = vmatpush2.bf16.msra.mxu0 0
    %1648 = vmatprep.subr.bf16.mxu0 0
    %1649 = vmatpush2.bf16.msra.mxu0 0
    %1650 = vmatprep.subr.bf16.mxu0 0
    %1651 = vmatpush2.bf16.msra.mxu0 0
    %1652 = vmatprep.subr.bf16.mxu0 0
    %1653 = vmatpush2.bf16.msra.mxu0 0
    %1654 = vmatprep.subr.bf16.mxu0 0
    %1655 = vmatpush2.bf16.msra.mxu0 0
    %1656 = vmatprep.subr.bf16.mxu0 0
    %1657 = vmatpush2.bf16.msra.mxu0 0
    %1658 = vmatprep.mubr.bf16.mxu0 0
    %1659 = vmatmul.mubr.bf16.gmra.mxu0 %v1514
    %v1660 = vpop.f32.mrf.mxu0
    %v1661 = vadd.f32 0.0, %v1660
    %v1662 = vpop.f32.mrf.mxu0
    %v1663 = vadd.f32 0.0, %v1662
    %v1664 = vpop.f32.mrf.mxu0
    %v1665 = vpop.f32.mrf.mxu0
    %1666 = vdwg.mxu0
    %1667 = vmatprep.subr.bf16.mxu0 %v543
    %1668 = vmatpush1.bf16.msra.mxu0 %v542
    %1669 = vmatprep.subr.bf16.mxu0 %v539
    %1670 = vmatpush1.bf16.msra.mxu0 %v538
    %1671 = vmatprep.subr.bf16.mxu0 %v535
    %1672 = vmatpush1.bf16.msra.mxu0 %v534
    %1673 = vmatprep.subr.bf16.mxu0 %v531
    %1674 = vmatpush1.bf16.msra.mxu0 %v530
    %1675 = vmatprep.subr.bf16.mxu0 %v527
    %1676 = vmatpush1.bf16.msra.mxu0 %v526
    %1677 = vmatprep.subr.bf16.mxu0 %v523
    %1678 = vmatpush1.bf16.msra.mxu0 %v522
    %1679 = vmatprep.subr.bf16.mxu0 %v519
    %1680 = vmatpush1.bf16.msra.mxu0 %v518
    %1681 = vmatprep.subr.bf16.mxu0 %v515
    %1682 = vmatpush1.bf16.msra.mxu0 %v514
    %1683 = vmatprep.subr.bf16.mxu0 0
    %1684 = vmatpush2.bf16.msra.mxu0 0
    %1685 = vmatprep.subr.bf16.mxu0 0
    %1686 = vmatpush2.bf16.msra.mxu0 0
    %1687 = vmatprep.subr.bf16.mxu0 0
    %1688 = vmatpush2.bf16.msra.mxu0 0
    %1689 = vmatprep.subr.bf16.mxu0 0
    %1690 = vmatpush2.bf16.msra.mxu0 0
    %1691 = vmatprep.subr.bf16.mxu0 0
    %1692 = vmatpush2.bf16.msra.mxu0 0
    %1693 = vmatprep.subr.bf16.mxu0 0
    %1694 = vmatpush2.bf16.msra.mxu0 0
    %1695 = vmatprep.subr.bf16.mxu0 0
    %1696 = vmatpush2.bf16.msra.mxu0 0
    %1697 = vmatprep.subr.bf16.mxu0 0
    %1698 = vmatpush2.bf16.msra.mxu0 0
    %1699 = vmatprep.mubr.bf16.mxu0 0
    %1700 = vmatmul.mubr.bf16.gmra.mxu0 %v1514
    %v1701 = vpop.f32.mrf.mxu0
    %v1702 = vadd.f32 0.0, %v1701
    %v1703 = vpop.f32.mrf.mxu0
    %v1704 = vadd.f32 0.0, %v1703
    %v1705 = vpop.f32.mrf.mxu0
    %v1706 = vpop.f32.mrf.mxu0
    %1707 = vdwg.mxu0
    %v1708 = vadd.f32 %v1622, %v1661
    %v1709 = vadd.f32 %v1623, %v1663
    %v1710 = vadd.f32 %v1624, %v1702
    %v1711 = vadd.f32 %v1625, %v1704
    %v1712 = vxor.u32 %v1708, 2147483648
    %v1713 = vmul.f32 %v1712, 1.442695
    %v1714 = vpow.pop %v1713
    %v1715 = vadd.f32 %v1714, 1.0
    %v1716 = vrcp.pop %v1715
    %v1717 = vmul.f32 1.0, %v1716
    %v1718 = vxor.u32 %v1709, 2147483648
    %v1719 = vmul.f32 %v1718, 1.442695
    %v1720 = vpow.pop %v1719
    %v1721 = vadd.f32 %v1720, 1.0
    %v1722 = vrcp.pop %v1721
    %v1723 = vmul.f32 1.0, %v1722
    %v1724 = vtanh.pop %v1710
    %v1725 = vxor.u32 %v1711, 2147483648
    %v1726 = vmul.f32 %v1725, 1.442695
    %v1727 = vpow.pop %v1726
    %v1728 = vadd.f32 %v1727, 1.0
    %v1729 = vrcp.pop %v1728
    %v1730 = vmul.f32 1.0, %v1729
    %v1731 = vmul.f32 %v1723, %v1511
    %v1732 = vmul.f32 %v1717, %v1724
    %v1733 = vadd.f32 %v1731, %v1732
    %v1734 = vtanh.pop %v1733
    %v1735 = vmul.f32 %v1730, %v1734
    %v1736 = vpack.c.bf16 %v1735, %v1735
    %v1737 = vpack.c.bf16 %v1621, %v1621
    %1738 = vmatprep.subr.bf16.mxu0 %v973
    %1739 = vmatpush1.bf16.msra.mxu0 %v972
    %1740 = vmatprep.subr.bf16.mxu0 %v969
    %1741 = vmatpush1.bf16.msra.mxu0 %v968
    %1742 = vmatprep.subr.bf16.mxu0 %v965
    %1743 = vmatpush1.bf16.msra.mxu0 %v964
    %1744 = vmatprep.subr.bf16.mxu0 %v961
    %1745 = vmatpush1.bf16.msra.mxu0 %v960
    %1746 = vmatprep.subr.bf16.mxu0 %v957
    %1747 = vmatpush1.bf16.msra.mxu0 %v956
    %1748 = vmatprep.subr.bf16.mxu0 %v953
    %1749 = vmatpush1.bf16.msra.mxu0 %v952
    %1750 = vmatprep.subr.bf16.mxu0 %v949
    %1751 = vmatpush1.bf16.msra.mxu0 %v948
    %1752 = vmatprep.subr.bf16.mxu0 %v945
    %1753 = vmatpush1.bf16.msra.mxu0 %v944
    %1754 = vmatprep.subr.bf16.mxu0 %v1005
    %1755 = vmatpush2.bf16.msra.mxu0 %v1004
    %1756 = vmatprep.subr.bf16.mxu0 %v1001
    %1757 = vmatpush2.bf16.msra.mxu0 %v1000
    %1758 = vmatprep.subr.bf16.mxu0 %v997
    %1759 = vmatpush2.bf16.msra.mxu0 %v996
    %1760 = vmatprep.subr.bf16.mxu0 %v993
    %1761 = vmatpush2.bf16.msra.mxu0 %v992
    %1762 = vmatprep.subr.bf16.mxu0 %v989
    %1763 = vmatpush2.bf16.msra.mxu0 %v988
    %1764 = vmatprep.subr.bf16.mxu0 %v985
    %1765 = vmatpush2.bf16.msra.mxu0 %v984
    %1766 = vmatprep.subr.bf16.mxu0 %v981
    %1767 = vmatpush2.bf16.msra.mxu0 %v980
    %1768 = vmatprep.subr.bf16.mxu0 %v977
    %1769 = vmatpush2.bf16.msra.mxu0 %v976
    %1770 = vmatprep.mubr.bf16.mxu0 %v1737
    %1771 = vmatmul.mubr.bf16.gmra.mxu0 %v1736
    %v1772 = vpop.f32.mrf.mxu0
    %v1773 = vadd.f32 %v363, %v1772
    %v1774 = vpop.f32.mrf.mxu0
    %v1775 = vadd.f32 %v367, %v1774
    %v1776 = vpop.f32.mrf.mxu0
    %v1777 = vpop.f32.mrf.mxu0
    %1778 = vdwg.mxu0
    %1779 = vmatprep.subr.bf16.mxu0 %v975
    %1780 = vmatpush1.bf16.msra.mxu0 %v974
    %1781 = vmatprep.subr.bf16.mxu0 %v971
    %1782 = vmatpush1.bf16.msra.mxu0 %v970
    %1783 = vmatprep.subr.bf16.mxu0 %v967
    %1784 = vmatpush1.bf16.msra.mxu0 %v966
    %1785 = vmatprep.subr.bf16.mxu0 %v963
    %1786 = vmatpush1.bf16.msra.mxu0 %v962
    %1787 = vmatprep.subr.bf16.mxu0 %v959
    %1788 = vmatpush1.bf16.msra.mxu0 %v958
    %1789 = vmatprep.subr.bf16.mxu0 %v955
    %1790 = vmatpush1.bf16.msra.mxu0 %v954
    %1791 = vmatprep.subr.bf16.mxu0 %v951
    %1792 = vmatpush1.bf16.msra.mxu0 %v950
    %1793 = vmatprep.subr.bf16.mxu0 %v947
    %1794 = vmatpush1.bf16.msra.mxu0 %v946
    %1795 = vmatprep.subr.bf16.mxu0 %v1007
    %1796 = vmatpush2.bf16.msra.mxu0 %v1006
    %1797 = vmatprep.subr.bf16.mxu0 %v1003
    %1798 = vmatpush2.bf16.msra.mxu0 %v1002
    %1799 = vmatprep.subr.bf16.mxu0 %v999
    %1800 = vmatpush2.bf16.msra.mxu0 %v998
    %1801 = vmatprep.subr.bf16.mxu0 %v995
    %1802 = vmatpush2.bf16.msra.mxu0 %v994
    %1803 = vmatprep.subr.bf16.mxu0 %v991
    %1804 = vmatpush2.bf16.msra.mxu0 %v990
    %1805 = vmatprep.subr.bf16.mxu0 %v987
    %1806 = vmatpush2.bf16.msra.mxu0 %v986
    %1807 = vmatprep.subr.bf16.mxu0 %v983
    %1808 = vmatpush2.bf16.msra.mxu0 %v982
    %1809 = vmatprep.subr.bf16.mxu0 %v979
    %1810 = vmatpush2.bf16.msra.mxu0 %v978
    %1811 = vmatprep.mubr.bf16.mxu0 %v1737
    %1812 = vmatmul.mubr.bf16.gmra.mxu0 %v1736
    %v1813 = vpop.f32.mrf.mxu0
    %v1814 = vadd.f32 %v371, %v1813
    %v1815 = vpop.f32.mrf.mxu0
    %v1816 = vadd.f32 %v375, %v1815
    %v1817 = vpop.f32.mrf.mxu0
    %v1818 = vpop.f32.mrf.mxu0
    %1819 = vdwg.mxu0
    %v1820 = vxor.u32 %v1773, 2147483648
    %v1821 = vmul.f32 %v1820, 1.442695
    %v1822 = vpow.pop %v1821
    %v1823 = vadd.f32 %v1822, 1.0
    %v1824 = vrcp.pop %v1823
    %v1825 = vmul.f32 1.0, %v1824
    %v1826 = vxor.u32 %v1775, 2147483648
    %v1827 = vmul.f32 %v1826, 1.442695
    %v1828 = vpow.pop %v1827
    %v1829 = vadd.f32 %v1828, 1.0
    %v1830 = vrcp.pop %v1829
    %v1831 = vmul.f32 1.0, %v1830
    %v1832 = vtanh.pop %v1814
    %v1833 = vxor.u32 %v1816, 2147483648
    %v1834 = vmul.f32 %v1833, 1.442695
    %v1835 = vpow.pop %v1834
    %v1836 = vadd.f32 %v1835, 1.0
    %v1837 = vrcp.pop %v1836
    %v1838 = vmul.f32 1.0, %v1837
    %v1839 = vmul.f32 %v1831, %v1619
    %v1840 = vmul.f32 %v1825, %v1832
    %v1841 = vadd.f32 %v1839, %v1840
    %v1842 = vtanh.pop %v1841
    %v1843 = vmul.f32 %v1838, %v1842
    %v1844 = vld [vmem:[#allocation2 + $0x80] sm:$0xff]
    %v1845 = vld [vmem:[#allocation2 + $0x88] sm:$0xff]
    %v1846 = vld [vmem:[#allocation2 + $0x90] sm:$0xff]
    %v1847 = vld [vmem:[#allocation2 + $0x98] sm:$0xff]
    %1848 = vmatprep.subr.bf16.mxu0 %v541
    %1849 = vmatpush1.bf16.msra.mxu0 %v540
    %1850 = vmatprep.subr.bf16.mxu0 %v537
    %1851 = vmatpush1.bf16.msra.mxu0 %v536
    %1852 = vmatprep.subr.bf16.mxu0 %v533
    %1853 = vmatpush1.bf16.msra.mxu0 %v532
    %1854 = vmatprep.subr.bf16.mxu0 %v529
    %1855 = vmatpush1.bf16.msra.mxu0 %v528
    %1856 = vmatprep.subr.bf16.mxu0 %v525
    %1857 = vmatpush1.bf16.msra.mxu0 %v524
    %1858 = vmatprep.subr.bf16.mxu0 %v521
    %1859 = vmatpush1.bf16.msra.mxu0 %v520
    %1860 = vmatprep.subr.bf16.mxu0 %v517
    %1861 = vmatpush1.bf16.msra.mxu0 %v516
    %1862 = vmatprep.subr.bf16.mxu0 %v513
    %1863 = vmatpush1.bf16.msra.mxu0 %v512
    %1864 = vmatprep.subr.bf16.mxu0 0
    %1865 = vmatpush2.bf16.msra.mxu0 0
    %1866 = vmatprep.subr.bf16.mxu0 0
    %1867 = vmatpush2.bf16.msra.mxu0 0
    %1868 = vmatprep.subr.bf16.mxu0 0
    %1869 = vmatpush2.bf16.msra.mxu0 0
    %1870 = vmatprep.subr.bf16.mxu0 0
    %1871 = vmatpush2.bf16.msra.mxu0 0
    %1872 = vmatprep.subr.bf16.mxu0 0
    %1873 = vmatpush2.bf16.msra.mxu0 0
    %1874 = vmatprep.subr.bf16.mxu0 0
    %1875 = vmatpush2.bf16.msra.mxu0 0
    %1876 = vmatprep.subr.bf16.mxu0 0
    %1877 = vmatpush2.bf16.msra.mxu0 0
    %1878 = vmatprep.subr.bf16.mxu0 0
    %1879 = vmatpush2.bf16.msra.mxu0 0
    %1880 = vmatprep.mubr.bf16.mxu0 0
    %1881 = vmatmul.mubr.bf16.gmra.mxu0 %v1736
    %v1882 = vpop.f32.mrf.mxu0
    %v1883 = vadd.f32 0.0, %v1882
    %v1884 = vpop.f32.mrf.mxu0
    %v1885 = vadd.f32 0.0, %v1884
    %v1886 = vpop.f32.mrf.mxu0
    %v1887 = vpop.f32.mrf.mxu0
    %1888 = vdwg.mxu0
    %1889 = vmatprep.subr.bf16.mxu0 %v543
    %1890 = vmatpush1.bf16.msra.mxu0 %v542
    %1891 = vmatprep.subr.bf16.mxu0 %v539
    %1892 = vmatpush1.bf16.msra.mxu0 %v538
    %1893 = vmatprep.subr.bf16.mxu0 %v535
    %1894 = vmatpush1.bf16.msra.mxu0 %v534
    %1895 = vmatprep.subr.bf16.mxu0 %v531
    %1896 = vmatpush1.bf16.msra.mxu0 %v530
    %1897 = vmatprep.subr.bf16.mxu0 %v527
    %1898 = vmatpush1.bf16.msra.mxu0 %v526
    %1899 = vmatprep.subr.bf16.mxu0 %v523
    %1900 = vmatpush1.bf16.msra.mxu0 %v522
    %1901 = vmatprep.subr.bf16.mxu0 %v519
    %1902 = vmatpush1.bf16.msra.mxu0 %v518
    %1903 = vmatprep.subr.bf16.mxu0 %v515
    %1904 = vmatpush1.bf16.msra.mxu0 %v514
    %1905 = vmatprep.subr.bf16.mxu0 0
    %1906 = vmatpush2.bf16.msra.mxu0 0
    %1907 = vmatprep.subr.bf16.mxu0 0
    %1908 = vmatpush2.bf16.msra.mxu0 0
    %1909 = vmatprep.subr.bf16.mxu0 0
    %1910 = vmatpush2.bf16.msra.mxu0 0
    %1911 = vmatprep.subr.bf16.mxu0 0
    %1912 = vmatpush2.bf16.msra.mxu0 0
    %1913 = vmatprep.subr.bf16.mxu0 0
    %1914 = vmatpush2.bf16.msra.mxu0 0
    %1915 = vmatprep.subr.bf16.mxu0 0
    %1916 = vmatpush2.bf16.msra.mxu0 0
    %1917 = vmatprep.subr.bf16.mxu0 0
    %1918 = vmatpush2.bf16.msra.mxu0 0
    %1919 = vmatprep.subr.bf16.mxu0 0
    %1920 = vmatpush2.bf16.msra.mxu0 0
    %1921 = vmatprep.mubr.bf16.mxu0 0
    %1922 = vmatmul.mubr.bf16.gmra.mxu0 %v1736
    %v1923 = vpop.f32.mrf.mxu0
    %v1924 = vadd.f32 0.0, %v1923
    %v1925 = vpop.f32.mrf.mxu0
    %v1926 = vadd.f32 0.0, %v1925
    %v1927 = vpop.f32.mrf.mxu0
    %v1928 = vpop.f32.mrf.mxu0
    %1929 = vdwg.mxu0
    %v1930 = vadd.f32 %v1844, %v1883
    %v1931 = vadd.f32 %v1845, %v1885
    %v1932 = vadd.f32 %v1846, %v1924
    %v1933 = vadd.f32 %v1847, %v1926
    %v1934 = vxor.u32 %v1930, 2147483648
    %v1935 = vmul.f32 %v1934, 1.442695
    %v1936 = vpow.pop %v1935
    %v1937 = vadd.f32 %v1936, 1.0
    %v1938 = vrcp.pop %v1937
    %v1939 = vmul.f32 1.0, %v1938
    %v1940 = vxor.u32 %v1931, 2147483648
    %v1941 = vmul.f32 %v1940, 1.442695
    %v1942 = vpow.pop %v1941
    %v1943 = vadd.f32 %v1942, 1.0
    %v1944 = vrcp.pop %v1943
    %v1945 = vmul.f32 1.0, %v1944
    %v1946 = vtanh.pop %v1932
    %v1947 = vxor.u32 %v1933, 2147483648
    %v1948 = vmul.f32 %v1947, 1.442695
    %v1949 = vpow.pop %v1948
    %v1950 = vadd.f32 %v1949, 1.0
    %v1951 = vrcp.pop %v1950
    %v1952 = vmul.f32 1.0, %v1951
    %v1953 = vmul.f32 %v1945, %v1733
    %v1954 = vmul.f32 %v1939, %v1946
    %v1955 = vadd.f32 %v1953, %v1954
    %v1956 = vtanh.pop %v1955
    %v1957 = vmul.f32 %v1952, %v1956
    %v1958 = vpack.c.bf16 %v1957, %v1957
    %v1959 = vpack.c.bf16 %v1843, %v1843
    %1960 = vmatprep.subr.bf16.mxu0 %v973
    %1961 = vmatpush1.bf16.msra.mxu0 %v972
    %1962 = vmatprep.subr.bf16.mxu0 %v969
    %1963 = vmatpush1.bf16.msra.mxu0 %v968
    %1964 = vmatprep.subr.bf16.mxu0 %v965
    %1965 = vmatpush1.bf16.msra.mxu0 %v964
    %1966 = vmatprep.subr.bf16.mxu0 %v961
    %1967 = vmatpush1.bf16.msra.mxu0 %v960
    %1968 = vmatprep.subr.bf16.mxu0 %v957
    %1969 = vmatpush1.bf16.msra.mxu0 %v956
    %1970 = vmatprep.subr.bf16.mxu0 %v953
    %1971 = vmatpush1.bf16.msra.mxu0 %v952
    %1972 = vmatprep.subr.bf16.mxu0 %v949
    %1973 = vmatpush1.bf16.msra.mxu0 %v948
    %1974 = vmatprep.subr.bf16.mxu0 %v945
    %1975 = vmatpush1.bf16.msra.mxu0 %v944
    %1976 = vmatprep.subr.bf16.mxu0 %v1005
    %1977 = vmatpush2.bf16.msra.mxu0 %v1004
    %1978 = vmatprep.subr.bf16.mxu0 %v1001
    %1979 = vmatpush2.bf16.msra.mxu0 %v1000
    %1980 = vmatprep.subr.bf16.mxu0 %v997
    %1981 = vmatpush2.bf16.msra.mxu0 %v996
    %1982 = vmatprep.subr.bf16.mxu0 %v993
    %1983 = vmatpush2.bf16.msra.mxu0 %v992
    %1984 = vmatprep.subr.bf16.mxu0 %v989
    %1985 = vmatpush2.bf16.msra.mxu0 %v988
    %1986 = vmatprep.subr.bf16.mxu0 %v985
    %1987 = vmatpush2.bf16.msra.mxu0 %v984
    %1988 = vmatprep.subr.bf16.mxu0 %v981
    %1989 = vmatpush2.bf16.msra.mxu0 %v980
    %1990 = vmatprep.subr.bf16.mxu0 %v977
    %1991 = vmatpush2.bf16.msra.mxu0 %v976
    %1992 = vmatprep.mubr.bf16.mxu0 %v1959
    %1993 = vmatmul.mubr.bf16.gmra.mxu0 %v1958
    %v1994 = vpop.f32.mrf.mxu0
    %v1995 = vadd.f32 %v363, %v1994
    %v1996 = vpop.f32.mrf.mxu0
    %v1997 = vadd.f32 %v367, %v1996
    %v1998 = vpop.f32.mrf.mxu0
    %v1999 = vpop.f32.mrf.mxu0
    %2000 = vdwg.mxu0
    %2001 = vmatprep.subr.bf16.mxu0 %v975
    %2002 = vmatpush1.bf16.msra.mxu0 %v974
    %2003 = vmatprep.subr.bf16.mxu0 %v971
    %2004 = vmatpush1.bf16.msra.mxu0 %v970
    %2005 = vmatprep.subr.bf16.mxu0 %v967
    %2006 = vmatpush1.bf16.msra.mxu0 %v966
    %2007 = vmatprep.subr.bf16.mxu0 %v963
    %2008 = vmatpush1.bf16.msra.mxu0 %v962
    %2009 = vmatprep.subr.bf16.mxu0 %v959
    %2010 = vmatpush1.bf16.msra.mxu0 %v958
    %2011 = vmatprep.subr.bf16.mxu0 %v955
    %2012 = vmatpush1.bf16.msra.mxu0 %v954
    %2013 = vmatprep.subr.bf16.mxu0 %v951
    %2014 = vmatpush1.bf16.msra.mxu0 %v950
    %2015 = vmatprep.subr.bf16.mxu0 %v947
    %2016 = vmatpush1.bf16.msra.mxu0 %v946
    %2017 = vmatprep.subr.bf16.mxu0 %v1007
    %2018 = vmatpush2.bf16.msra.mxu0 %v1006
    %2019 = vmatprep.subr.bf16.mxu0 %v1003
    %2020 = vmatpush2.bf16.msra.mxu0 %v1002
    %2021 = vmatprep.subr.bf16.mxu0 %v999
    %2022 = vmatpush2.bf16.msra.mxu0 %v998
    %2023 = vmatprep.subr.bf16.mxu0 %v995
    %2024 = vmatpush2.bf16.msra.mxu0 %v994
    %2025 = vmatprep.subr.bf16.mxu0 %v991
    %2026 = vmatpush2.bf16.msra.mxu0 %v990
    %2027 = vmatprep.subr.bf16.mxu0 %v987
    %2028 = vmatpush2.bf16.msra.mxu0 %v986
    %2029 = vmatprep.subr.bf16.mxu0 %v983
    %2030 = vmatpush2.bf16.msra.mxu0 %v982
    %2031 = vmatprep.subr.bf16.mxu0 %v979
    %2032 = vmatpush2.bf16.msra.mxu0 %v978
    %2033 = vmatprep.mubr.bf16.mxu0 %v1959
    %2034 = vmatmul.mubr.bf16.gmra.mxu0 %v1958
    %v2035 = vpop.f32.mrf.mxu0
    %v2036 = vadd.f32 %v371, %v2035
    %v2037 = vpop.f32.mrf.mxu0
    %v2038 = vadd.f32 %v375, %v2037
    %v2039 = vpop.f32.mrf.mxu0
    %v2040 = vpop.f32.mrf.mxu0
    %2041 = vdwg.mxu0
    %v2042 = vxor.u32 %v1995, 2147483648
    %v2043 = vmul.f32 %v2042, 1.442695
    %v2044 = vpow.pop %v2043
    %v2045 = vadd.f32 %v2044, 1.0
    %v2046 = vrcp.pop %v2045
    %v2047 = vmul.f32 1.0, %v2046
    %v2048 = vxor.u32 %v1997, 2147483648
    %v2049 = vmul.f32 %v2048, 1.442695
    %v2050 = vpow.pop %v2049
    %v2051 = vadd.f32 %v2050, 1.0
    %v2052 = vrcp.pop %v2051
    %v2053 = vmul.f32 1.0, %v2052
    %v2054 = vtanh.pop %v2036
    %v2055 = vxor.u32 %v2038, 2147483648
    %v2056 = vmul.f32 %v2055, 1.442695
    %v2057 = vpow.pop %v2056
    %v2058 = vadd.f32 %v2057, 1.0
    %v2059 = vrcp.pop %v2058
    %v2060 = vmul.f32 1.0, %v2059
    %v2061 = vmul.f32 %v2053, %v1841
    %v2062 = vmul.f32 %v2047, %v2054
    %v2063 = vadd.f32 %v2061, %v2062
    %v2064 = vtanh.pop %v2063
    %v2065 = vmul.f32 %v2060, %v2064
    %v2066 = vld [vmem:[#allocation2 + $0xa0] sm:$0xff]
    %v2067 = vld [vmem:[#allocation2 + $0xa8] sm:$0xff]
    %v2068 = vld [vmem:[#allocation2 + $0xb0] sm:$0xff]
    %v2069 = vld [vmem:[#allocation2 + $0xb8] sm:$0xff]
    %2070 = vmatprep.subr.bf16.mxu0 %v541
    %2071 = vmatpush1.bf16.msra.mxu0 %v540
    %2072 = vmatprep.subr.bf16.mxu0 %v537
    %2073 = vmatpush1.bf16.msra.mxu0 %v536
    %2074 = vmatprep.subr.bf16.mxu0 %v533
    %2075 = vmatpush1.bf16.msra.mxu0 %v532
    %2076 = vmatprep.subr.bf16.mxu0 %v529
    %2077 = vmatpush1.bf16.msra.mxu0 %v528
    %2078 = vmatprep.subr.bf16.mxu0 %v525
    %2079 = vmatpush1.bf16.msra.mxu0 %v524
    %2080 = vmatprep.subr.bf16.mxu0 %v521
    %2081 = vmatpush1.bf16.msra.mxu0 %v520
    %2082 = vmatprep.subr.bf16.mxu0 %v517
    %2083 = vmatpush1.bf16.msra.mxu0 %v516
    %2084 = vmatprep.subr.bf16.mxu0 %v513
    %2085 = vmatpush1.bf16.msra.mxu0 %v512
    %2086 = vmatprep.subr.bf16.mxu0 0
    %2087 = vmatpush2.bf16.msra.mxu0 0
    %2088 = vmatprep.subr.bf16.mxu0 0
    %2089 = vmatpush2.bf16.msra.mxu0 0
    %2090 = vmatprep.subr.bf16.mxu0 0
    %2091 = vmatpush2.bf16.msra.mxu0 0
    %2092 = vmatprep.subr.bf16.mxu0 0
    %2093 = vmatpush2.bf16.msra.mxu0 0
    %2094 = vmatprep.subr.bf16.mxu0 0
    %2095 = vmatpush2.bf16.msra.mxu0 0
    %2096 = vmatprep.subr.bf16.mxu0 0
    %2097 = vmatpush2.bf16.msra.mxu0 0
    %2098 = vmatprep.subr.bf16.mxu0 0
    %2099 = vmatpush2.bf16.msra.mxu0 0
    %2100 = vmatprep.subr.bf16.mxu0 0
    %2101 = vmatpush2.bf16.msra.mxu0 0
    %2102 = vmatprep.mubr.bf16.mxu0 0
    %2103 = vmatmul.mubr.bf16.gmra.mxu0 %v1958
    %v2104 = vpop.f32.mrf.mxu0
    %v2105 = vadd.f32 0.0, %v2104
    %v2106 = vpop.f32.mrf.mxu0
    %v2107 = vadd.f32 0.0, %v2106
    %v2108 = vpop.f32.mrf.mxu0
    %v2109 = vpop.f32.mrf.mxu0
    %2110 = vdwg.mxu0
    %2111 = vmatprep.subr.bf16.mxu0 %v543
    %2112 = vmatpush1.bf16.msra.mxu0 %v542
    %2113 = vmatprep.subr.bf16.mxu0 %v539
    %2114 = vmatpush1.bf16.msra.mxu0 %v538
    %2115 = vmatprep.subr.bf16.mxu0 %v535
    %2116 = vmatpush1.bf16.msra.mxu0 %v534
    %2117 = vmatprep.subr.bf16.mxu0 %v531
    %2118 = vmatpush1.bf16.msra.mxu0 %v530
    %2119 = vmatprep.subr.bf16.mxu0 %v527
    %2120 = vmatpush1.bf16.msra.mxu0 %v526
    %2121 = vmatprep.subr.bf16.mxu0 %v523
    %2122 = vmatpush1.bf16.msra.mxu0 %v522
    %2123 = vmatprep.subr.bf16.mxu0 %v519
    %2124 = vmatpush1.bf16.msra.mxu0 %v518
    %2125 = vmatprep.subr.bf16.mxu0 %v515
    %2126 = vmatpush1.bf16.msra.mxu0 %v514
    %2127 = vmatprep.subr.bf16.mxu0 0
    %2128 = vmatpush2.bf16.msra.mxu0 0
    %2129 = vmatprep.subr.bf16.mxu0 0
    %2130 = vmatpush2.bf16.msra.mxu0 0
    %2131 = vmatprep.subr.bf16.mxu0 0
    %2132 = vmatpush2.bf16.msra.mxu0 0
    %2133 = vmatprep.subr.bf16.mxu0 0
    %2134 = vmatpush2.bf16.msra.mxu0 0
    %2135 = vmatprep.subr.bf16.mxu0 0
    %2136 = vmatpush2.bf16.msra.mxu0 0
    %2137 = vmatprep.subr.bf16.mxu0 0
    %2138 = vmatpush2.bf16.msra.mxu0 0
    %2139 = vmatprep.subr.bf16.mxu0 0
    %2140 = vmatpush2.bf16.msra.mxu0 0
    %2141 = vmatprep.subr.bf16.mxu0 0
    %2142 = vmatpush2.bf16.msra.mxu0 0
    %2143 = vmatprep.mubr.bf16.mxu0 0
    %2144 = vmatmul.mubr.bf16.gmra.mxu0 %v1958
    %v2145 = vpop.f32.mrf.mxu0
    %v2146 = vadd.f32 0.0, %v2145
    %v2147 = vpop.f32.mrf.mxu0
    %v2148 = vadd.f32 0.0, %v2147
    %v2149 = vpop.f32.mrf.mxu0
    %v2150 = vpop.f32.mrf.mxu0
    %2151 = vdwg.mxu0
    %v2152 = vadd.f32 %v2066, %v2105
    %v2153 = vadd.f32 %v2067, %v2107
    %v2154 = vadd.f32 %v2068, %v2146
    %v2155 = vadd.f32 %v2069, %v2148
    %v2156 = vxor.u32 %v2152, 2147483648
    %v2157 = vmul.f32 %v2156, 1.442695
    %v2158 = vpow.pop %v2157
    %v2159 = vadd.f32 %v2158, 1.0
    %v2160 = vrcp.pop %v2159
    %v2161 = vmul.f32 1.0, %v2160
    %v2162 = vxor.u32 %v2153, 2147483648
    %v2163 = vmul.f32 %v2162, 1.442695
    %v2164 = vpow.pop %v2163
    %v2165 = vadd.f32 %v2164, 1.0
    %v2166 = vrcp.pop %v2165
    %v2167 = vmul.f32 1.0, %v2166
    %v2168 = vtanh.pop %v2154
    %v2169 = vxor.u32 %v2155, 2147483648
    %v2170 = vmul.f32 %v2169, 1.442695
    %v2171 = vpow.pop %v2170
    %v2172 = vadd.f32 %v2171, 1.0
    %v2173 = vrcp.pop %v2172
    %v2174 = vmul.f32 1.0, %v2173
    %v2175 = vmul.f32 %v2167, %v1955
    %v2176 = vmul.f32 %v2161, %v2168
    %v2177 = vadd.f32 %v2175, %v2176
    %v2178 = vtanh.pop %v2177
    %v2179 = vmul.f32 %v2174, %v2178
    %v2180 = vpack.c.bf16 %v2179, %v2179
    %v2181 = vpack.c.bf16 %v2065, %v2065
    %2182 = vmatprep.subr.bf16.mxu0 %v973
    %2183 = vmatpush1.bf16.msra.mxu0 %v972
    %2184 = vmatprep.subr.bf16.mxu0 %v969
    %2185 = vmatpush1.bf16.msra.mxu0 %v968
    %2186 = vmatprep.subr.bf16.mxu0 %v965
    %2187 = vmatpush1.bf16.msra.mxu0 %v964
    %2188 = vmatprep.subr.bf16.mxu0 %v961
    %2189 = vmatpush1.bf16.msra.mxu0 %v960
    %2190 = vmatprep.subr.bf16.mxu0 %v957
    %2191 = vmatpush1.bf16.msra.mxu0 %v956
    %2192 = vmatprep.subr.bf16.mxu0 %v953
    %2193 = vmatpush1.bf16.msra.mxu0 %v952
    %2194 = vmatprep.subr.bf16.mxu0 %v949
    %2195 = vmatpush1.bf16.msra.mxu0 %v948
    %2196 = vmatprep.subr.bf16.mxu0 %v945
    %2197 = vmatpush1.bf16.msra.mxu0 %v944
    %2198 = vmatprep.subr.bf16.mxu0 %v1005
    %2199 = vmatpush2.bf16.msra.mxu0 %v1004
    %2200 = vmatprep.subr.bf16.mxu0 %v1001
    %2201 = vmatpush2.bf16.msra.mxu0 %v1000
    %2202 = vmatprep.subr.bf16.mxu0 %v997
    %2203 = vmatpush2.bf16.msra.mxu0 %v996
    %2204 = vmatprep.subr.bf16.mxu0 %v993
    %2205 = vmatpush2.bf16.msra.mxu0 %v992
    %2206 = vmatprep.subr.bf16.mxu0 %v989
    %2207 = vmatpush2.bf16.msra.mxu0 %v988
    %2208 = vmatprep.subr.bf16.mxu0 %v985
    %2209 = vmatpush2.bf16.msra.mxu0 %v984
    %2210 = vmatprep.subr.bf16.mxu0 %v981
    %2211 = vmatpush2.bf16.msra.mxu0 %v980
    %2212 = vmatprep.subr.bf16.mxu0 %v977
    %2213 = vmatpush2.bf16.msra.mxu0 %v976
    %2214 = vmatprep.mubr.bf16.mxu0 %v2181
    %2215 = vmatmul.mubr.bf16.gmra.mxu0 %v2180
    %v2216 = vpop.f32.mrf.mxu0
    %v2217 = vadd.f32 %v363, %v2216
    %v2218 = vpop.f32.mrf.mxu0
    %v2219 = vadd.f32 %v367, %v2218
    %v2220 = vpop.f32.mrf.mxu0
    %v2221 = vpop.f32.mrf.mxu0
    %2222 = vdwg.mxu0
    %2223 = vmatprep.subr.bf16.mxu0 %v975
    %2224 = vmatpush1.bf16.msra.mxu0 %v974
    %2225 = vmatprep.subr.bf16.mxu0 %v971
    %2226 = vmatpush1.bf16.msra.mxu0 %v970
    %2227 = vmatprep.subr.bf16.mxu0 %v967
    %2228 = vmatpush1.bf16.msra.mxu0 %v966
    %2229 = vmatprep.subr.bf16.mxu0 %v963
    %2230 = vmatpush1.bf16.msra.mxu0 %v962
    %2231 = vmatprep.subr.bf16.mxu0 %v959
    %2232 = vmatpush1.bf16.msra.mxu0 %v958
    %2233 = vmatprep.subr.bf16.mxu0 %v955
    %2234 = vmatpush1.bf16.msra.mxu0 %v954
    %2235 = vmatprep.subr.bf16.mxu0 %v951
    %2236 = vmatpush1.bf16.msra.mxu0 %v950
    %2237 = vmatprep.subr.bf16.mxu0 %v947
    %2238 = vmatpush1.bf16.msra.mxu0 %v946
    %2239 = vmatprep.subr.bf16.mxu0 %v1007
    %2240 = vmatpush2.bf16.msra.mxu0 %v1006
    %2241 = vmatprep.subr.bf16.mxu0 %v1003
    %2242 = vmatpush2.bf16.msra.mxu0 %v1002
    %2243 = vmatprep.subr.bf16.mxu0 %v999
    %2244 = vmatpush2.bf16.msra.mxu0 %v998
    %2245 = vmatprep.subr.bf16.mxu0 %v995
    %2246 = vmatpush2.bf16.msra.mxu0 %v994
    %2247 = vmatprep.subr.bf16.mxu0 %v991
    %2248 = vmatpush2.bf16.msra.mxu0 %v990
    %2249 = vmatprep.subr.bf16.mxu0 %v987
    %2250 = vmatpush2.bf16.msra.mxu0 %v986
    %2251 = vmatprep.subr.bf16.mxu0 %v983
    %2252 = vmatpush2.bf16.msra.mxu0 %v982
    %2253 = vmatprep.subr.bf16.mxu0 %v979
    %2254 = vmatpush2.bf16.msra.mxu0 %v978
    %2255 = vmatprep.mubr.bf16.mxu0 %v2181
    %2256 = vmatmul.mubr.bf16.gmra.mxu0 %v2180
    %v2257 = vpop.f32.mrf.mxu0
    %v2258 = vadd.f32 %v371, %v2257
    %v2259 = vpop.f32.mrf.mxu0
    %v2260 = vadd.f32 %v375, %v2259
    %v2261 = vpop.f32.mrf.mxu0
    %v2262 = vpop.f32.mrf.mxu0
    %2263 = vdwg.mxu0
    %v2264 = vxor.u32 %v2217, 2147483648
    %v2265 = vmul.f32 %v2264, 1.442695
    %v2266 = vpow.pop %v2265
    %v2267 = vadd.f32 %v2266, 1.0
    %v2268 = vrcp.pop %v2267
    %v2269 = vmul.f32 1.0, %v2268
    %v2270 = vxor.u32 %v2219, 2147483648
    %v2271 = vmul.f32 %v2270, 1.442695
    %v2272 = vpow.pop %v2271
    %v2273 = vadd.f32 %v2272, 1.0
    %v2274 = vrcp.pop %v2273
    %v2275 = vmul.f32 1.0, %v2274
    %v2276 = vtanh.pop %v2258
    %v2277 = vxor.u32 %v2260, 2147483648
    %v2278 = vmul.f32 %v2277, 1.442695
    %v2279 = vpow.pop %v2278
    %v2280 = vadd.f32 %v2279, 1.0
    %v2281 = vrcp.pop %v2280
    %v2282 = vmul.f32 1.0, %v2281
    %v2283 = vmul.f32 %v2275, %v2063
    %v2284 = vmul.f32 %v2269, %v2276
    %v2285 = vadd.f32 %v2283, %v2284
    %v2286 = vtanh.pop %v2285
    %v2287 = vmul.f32 %v2282, %v2286
    %v2288 = vld [vmem:[#allocation2 + $0xc0] sm:$0xff]
    %v2289 = vld [vmem:[#allocation2 + $0xc8] sm:$0xff]
    %v2290 = vld [vmem:[#allocation2 + $0xd0] sm:$0xff]
    %v2291 = vld [vmem:[#allocation2 + $0xd8] sm:$0xff]
    %2292 = vmatprep.subr.bf16.mxu0 %v541
    %2293 = vmatpush1.bf16.msra.mxu0 %v540
    %2294 = vmatprep.subr.bf16.mxu0 %v537
    %2295 = vmatpush1.bf16.msra.mxu0 %v536
    %2296 = vmatprep.subr.bf16.mxu0 %v533
    %2297 = vmatpush1.bf16.msra.mxu0 %v532
    %2298 = vmatprep.subr.bf16.mxu0 %v529
    %2299 = vmatpush1.bf16.msra.mxu0 %v528
    %2300 = vmatprep.subr.bf16.mxu0 %v525
    %2301 = vmatpush1.bf16.msra.mxu0 %v524
    %2302 = vmatprep.subr.bf16.mxu0 %v521
    %2303 = vmatpush1.bf16.msra.mxu0 %v520
    %2304 = vmatprep.subr.bf16.mxu0 %v517
    %2305 = vmatpush1.bf16.msra.mxu0 %v516
    %2306 = vmatprep.subr.bf16.mxu0 %v513
    %2307 = vmatpush1.bf16.msra.mxu0 %v512
    %2308 = vmatprep.subr.bf16.mxu0 0
    %2309 = vmatpush2.bf16.msra.mxu0 0
    %2310 = vmatprep.subr.bf16.mxu0 0
    %2311 = vmatpush2.bf16.msra.mxu0 0
    %2312 = vmatprep.subr.bf16.mxu0 0
    %2313 = vmatpush2.bf16.msra.mxu0 0
    %2314 = vmatprep.subr.bf16.mxu0 0
    %2315 = vmatpush2.bf16.msra.mxu0 0
    %2316 = vmatprep.subr.bf16.mxu0 0
    %2317 = vmatpush2.bf16.msra.mxu0 0
    %2318 = vmatprep.subr.bf16.mxu0 0
    %2319 = vmatpush2.bf16.msra.mxu0 0
    %2320 = vmatprep.subr.bf16.mxu0 0
    %2321 = vmatpush2.bf16.msra.mxu0 0
    %2322 = vmatprep.subr.bf16.mxu0 0
    %2323 = vmatpush2.bf16.msra.mxu0 0
    %2324 = vmatprep.mubr.bf16.mxu0 0
    %2325 = vmatmul.mubr.bf16.gmra.mxu0 %v2180
    %v2326 = vpop.f32.mrf.mxu0
    %v2327 = vadd.f32 0.0, %v2326
    %v2328 = vpop.f32.mrf.mxu0
    %v2329 = vadd.f32 0.0, %v2328
    %v2330 = vpop.f32.mrf.mxu0
    %v2331 = vpop.f32.mrf.mxu0
    %2332 = vdwg.mxu0
    %2333 = vmatprep.subr.bf16.mxu0 %v543
    %2334 = vmatpush1.bf16.msra.mxu0 %v542
    %2335 = vmatprep.subr.bf16.mxu0 %v539
    %2336 = vmatpush1.bf16.msra.mxu0 %v538
    %2337 = vmatprep.subr.bf16.mxu0 %v535
    %2338 = vmatpush1.bf16.msra.mxu0 %v534
    %2339 = vmatprep.subr.bf16.mxu0 %v531
    %2340 = vmatpush1.bf16.msra.mxu0 %v530
    %2341 = vmatprep.subr.bf16.mxu0 %v527
    %2342 = vmatpush1.bf16.msra.mxu0 %v526
    %2343 = vmatprep.subr.bf16.mxu0 %v523
    %2344 = vmatpush1.bf16.msra.mxu0 %v522
    %2345 = vmatprep.subr.bf16.mxu0 %v519
    %2346 = vmatpush1.bf16.msra.mxu0 %v518
    %2347 = vmatprep.subr.bf16.mxu0 %v515
    %2348 = vmatpush1.bf16.msra.mxu0 %v514
    %2349 = vmatprep.subr.bf16.mxu0 0
    %2350 = vmatpush2.bf16.msra.mxu0 0
    %2351 = vmatprep.subr.bf16.mxu0 0
    %2352 = vmatpush2.bf16.msra.mxu0 0
    %2353 = vmatprep.subr.bf16.mxu0 0
    %2354 = vmatpush2.bf16.msra.mxu0 0
    %2355 = vmatprep.subr.bf16.mxu0 0
    %2356 = vmatpush2.bf16.msra.mxu0 0
    %2357 = vmatprep.subr.bf16.mxu0 0
    %2358 = vmatpush2.bf16.msra.mxu0 0
    %2359 = vmatprep.subr.bf16.mxu0 0
    %2360 = vmatpush2.bf16.msra.mxu0 0
    %2361 = vmatprep.subr.bf16.mxu0 0
    %2362 = vmatpush2.bf16.msra.mxu0 0
    %2363 = vmatprep.subr.bf16.mxu0 0
    %2364 = vmatpush2.bf16.msra.mxu0 0
    %2365 = vmatprep.mubr.bf16.mxu0 0
    %2366 = vmatmul.mubr.bf16.gmra.mxu0 %v2180
    %v2367 = vpop.f32.mrf.mxu0
    %v2368 = vadd.f32 0.0, %v2367
    %v2369 = vpop.f32.mrf.mxu0
    %v2370 = vadd.f32 0.0, %v2369
    %v2371 = vpop.f32.mrf.mxu0
    %v2372 = vpop.f32.mrf.mxu0
    %2373 = vdwg.mxu0
    %v2374 = vadd.f32 %v2288, %v2327
    %v2375 = vadd.f32 %v2289, %v2329
    %v2376 = vadd.f32 %v2290, %v2368
    %v2377 = vadd.f32 %v2291, %v2370
    %v2378 = vxor.u32 %v2374, 2147483648
    %v2379 = vmul.f32 %v2378, 1.442695
    %v2380 = vpow.pop %v2379
    %v2381 = vadd.f32 %v2380, 1.0
    %v2382 = vrcp.pop %v2381
    %v2383 = vmul.f32 1.0, %v2382
    %v2384 = vxor.u32 %v2375, 2147483648
    %v2385 = vmul.f32 %v2384, 1.442695
    %v2386 = vpow.pop %v2385
    %v2387 = vadd.f32 %v2386, 1.0
    %v2388 = vrcp.pop %v2387
    %v2389 = vmul.f32 1.0, %v2388
    %v2390 = vtanh.pop %v2376
    %v2391 = vxor.u32 %v2377, 2147483648
    %v2392 = vmul.f32 %v2391, 1.442695
    %v2393 = vpow.pop %v2392
    %v2394 = vadd.f32 %v2393, 1.0
    %v2395 = vrcp.pop %v2394
    %v2396 = vmul.f32 1.0, %v2395
    %v2397 = vmul.f32 %v2389, %v2177
    %v2398 = vmul.f32 %v2383, %v2390
    %v2399 = vadd.f32 %v2397, %v2398
    %v2400 = vtanh.pop %v2399
    %v2401 = vmul.f32 %v2396, %v2400
    %v2402 = vpack.c.bf16 %v2401, %v2401
    %v2403 = vpack.c.bf16 %v2287, %v2287
    %2404 = vmatprep.subr.bf16.mxu0 %v973
    %2405 = vmatpush1.bf16.msra.mxu0 %v972
    %2406 = vmatprep.subr.bf16.mxu0 %v969
    %2407 = vmatpush1.bf16.msra.mxu0 %v968
    %2408 = vmatprep.subr.bf16.mxu0 %v965
    %2409 = vmatpush1.bf16.msra.mxu0 %v964
    %2410 = vmatprep.subr.bf16.mxu0 %v961
    %2411 = vmatpush1.bf16.msra.mxu0 %v960
    %2412 = vmatprep.subr.bf16.mxu0 %v957
    %2413 = vmatpush1.bf16.msra.mxu0 %v956
    %2414 = vmatprep.subr.bf16.mxu0 %v953
    %2415 = vmatpush1.bf16.msra.mxu0 %v952
    %2416 = vmatprep.subr.bf16.mxu0 %v949
    %2417 = vmatpush1.bf16.msra.mxu0 %v948
    %2418 = vmatprep.subr.bf16.mxu0 %v945
    %2419 = vmatpush1.bf16.msra.mxu0 %v944
    %2420 = vmatprep.subr.bf16.mxu0 %v1005
    %2421 = vmatpush2.bf16.msra.mxu0 %v1004
    %2422 = vmatprep.subr.bf16.mxu0 %v1001
    %2423 = vmatpush2.bf16.msra.mxu0 %v1000
    %2424 = vmatprep.subr.bf16.mxu0 %v997
    %2425 = vmatpush2.bf16.msra.mxu0 %v996
    %2426 = vmatprep.subr.bf16.mxu0 %v993
    %2427 = vmatpush2.bf16.msra.mxu0 %v992
    %2428 = vmatprep.subr.bf16.mxu0 %v989
    %2429 = vmatpush2.bf16.msra.mxu0 %v988
    %2430 = vmatprep.subr.bf16.mxu0 %v985
    %2431 = vmatpush2.bf16.msra.mxu0 %v984
    %2432 = vmatprep.subr.bf16.mxu0 %v981
    %2433 = vmatpush2.bf16.msra.mxu0 %v980
    %2434 = vmatprep.subr.bf16.mxu0 %v977
    %2435 = vmatpush2.bf16.msra.mxu0 %v976
    %2436 = vmatprep.mubr.bf16.mxu0 %v2403
    %2437 = vmatmul.mubr.bf16.gmra.mxu0 %v2402
    %v2438 = vpop.f32.mrf.mxu0
    %v2439 = vadd.f32 %v363, %v2438
    %v2440 = vpop.f32.mrf.mxu0
    %v2441 = vadd.f32 %v367, %v2440
    %v2442 = vpop.f32.mrf.mxu0
    %v2443 = vpop.f32.mrf.mxu0
    %2444 = vdwg.mxu0
    %2445 = vmatprep.subr.bf16.mxu0 %v975
    %2446 = vmatpush1.bf16.msra.mxu0 %v974
    %2447 = vmatprep.subr.bf16.mxu0 %v971
    %2448 = vmatpush1.bf16.msra.mxu0 %v970
    %2449 = vmatprep.subr.bf16.mxu0 %v967
    %2450 = vmatpush1.bf16.msra.mxu0 %v966
    %2451 = vmatprep.subr.bf16.mxu0 %v963
    %2452 = vmatpush1.bf16.msra.mxu0 %v962
    %2453 = vmatprep.subr.bf16.mxu0 %v959
    %2454 = vmatpush1.bf16.msra.mxu0 %v958
    %2455 = vmatprep.subr.bf16.mxu0 %v955
    %2456 = vmatpush1.bf16.msra.mxu0 %v954
    %2457 = vmatprep.subr.bf16.mxu0 %v951
    %2458 = vmatpush1.bf16.msra.mxu0 %v950
    %2459 = vmatprep.subr.bf16.mxu0 %v947
    %2460 = vmatpush1.bf16.msra.mxu0 %v946
    %2461 = vmatprep.subr.bf16.mxu0 %v1007
    %2462 = vmatpush2.bf16.msra.mxu0 %v1006
    %2463 = vmatprep.subr.bf16.mxu0 %v1003
    %2464 = vmatpush2.bf16.msra.mxu0 %v1002
    %2465 = vmatprep.subr.bf16.mxu0 %v999
    %2466 = vmatpush2.bf16.msra.mxu0 %v998
    %2467 = vmatprep.subr.bf16.mxu0 %v995
    %2468 = vmatpush2.bf16.msra.mxu0 %v994
    %2469 = vmatprep.subr.bf16.mxu0 %v991
    %2470 = vmatpush2.bf16.msra.mxu0 %v990
    %2471 = vmatprep.subr.bf16.mxu0 %v987
    %2472 = vmatpush2.bf16.msra.mxu0 %v986
    %2473 = vmatprep.subr.bf16.mxu0 %v983
    %2474 = vmatpush2.bf16.msra.mxu0 %v982
    %2475 = vmatprep.subr.bf16.mxu0 %v979
    %2476 = vmatpush2.bf16.msra.mxu0 %v978
    %2477 = vmatprep.mubr.bf16.mxu0 %v2403
    %2478 = vmatmul.mubr.bf16.gmra.mxu0 %v2402
    %v2479 = vpop.f32.mrf.mxu0
    %v2480 = vadd.f32 %v371, %v2479
    %v2481 = vpop.f32.mrf.mxu0
    %v2482 = vadd.f32 %v375, %v2481
    %v2483 = vpop.f32.mrf.mxu0
    %v2484 = vpop.f32.mrf.mxu0
    %2485 = vdwg.mxu0
    %v2486 = vxor.u32 %v2439, 2147483648
    %v2487 = vmul.f32 %v2486, 1.442695
    %v2488 = vpow.pop %v2487
    %v2489 = vadd.f32 %v2488, 1.0
    %v2490 = vrcp.pop %v2489
    %v2491 = vmul.f32 1.0, %v2490
    %v2492 = vxor.u32 %v2441, 2147483648
    %v2493 = vmul.f32 %v2492, 1.442695
    %v2494 = vpow.pop %v2493
    %v2495 = vadd.f32 %v2494, 1.0
    %v2496 = vrcp.pop %v2495
    %v2497 = vmul.f32 1.0, %v2496
    %v2498 = vtanh.pop %v2480
    %v2499 = vxor.u32 %v2482, 2147483648
    %v2500 = vmul.f32 %v2499, 1.442695
    %v2501 = vpow.pop %v2500
    %v2502 = vadd.f32 %v2501, 1.0
    %v2503 = vrcp.pop %v2502
    %v2504 = vmul.f32 1.0, %v2503
    %v2505 = vmul.f32 %v2497, %v2285
    %v2506 = vmul.f32 %v2491, %v2498
    %v2507 = vadd.f32 %v2505, %v2506
    %v2508 = vtanh.pop %v2507
    %v2509 = vmul.f32 %v2504, %v2508
    %v2510 = vld [vmem:[#allocation2 + $0xe0] sm:$0xff]
    %v2511 = vld [vmem:[#allocation2 + $0xe8] sm:$0xff]
    %v2512 = vld [vmem:[#allocation2 + $0xf0] sm:$0xff]
    %v2513 = vld [vmem:[#allocation2 + $0xf8] sm:$0xff]
    %2514 = vmatprep.subr.bf16.mxu0 %v541
    %2515 = vmatpush1.bf16.msra.mxu0 %v540
    %2516 = vmatprep.subr.bf16.mxu0 %v537
    %2517 = vmatpush1.bf16.msra.mxu0 %v536
    %2518 = vmatprep.subr.bf16.mxu0 %v533
    %2519 = vmatpush1.bf16.msra.mxu0 %v532
    %2520 = vmatprep.subr.bf16.mxu0 %v529
    %2521 = vmatpush1.bf16.msra.mxu0 %v528
    %2522 = vmatprep.subr.bf16.mxu0 %v525
    %2523 = vmatpush1.bf16.msra.mxu0 %v524
    %2524 = vmatprep.subr.bf16.mxu0 %v521
    %2525 = vmatpush1.bf16.msra.mxu0 %v520
    %2526 = vmatprep.subr.bf16.mxu0 %v517
    %2527 = vmatpush1.bf16.msra.mxu0 %v516
    %2528 = vmatprep.subr.bf16.mxu0 %v513
    %2529 = vmatpush1.bf16.msra.mxu0 %v512
    %2530 = vmatprep.subr.bf16.mxu0 0
    %2531 = vmatpush2.bf16.msra.mxu0 0
    %2532 = vmatprep.subr.bf16.mxu0 0
    %2533 = vmatpush2.bf16.msra.mxu0 0
    %2534 = vmatprep.subr.bf16.mxu0 0
    %2535 = vmatpush2.bf16.msra.mxu0 0
    %2536 = vmatprep.subr.bf16.mxu0 0
    %2537 = vmatpush2.bf16.msra.mxu0 0
    %2538 = vmatprep.subr.bf16.mxu0 0
    %2539 = vmatpush2.bf16.msra.mxu0 0
    %2540 = vmatprep.subr.bf16.mxu0 0
    %2541 = vmatpush2.bf16.msra.mxu0 0
    %2542 = vmatprep.subr.bf16.mxu0 0
    %2543 = vmatpush2.bf16.msra.mxu0 0
    %2544 = vmatprep.subr.bf16.mxu0 0
    %2545 = vmatpush2.bf16.msra.mxu0 0
    %2546 = vmatprep.mubr.bf16.mxu0 0
    %2547 = vmatmul.mubr.bf16.gmra.mxu0 %v2402
    %v2548 = vpop.f32.mrf.mxu0
    %v2549 = vadd.f32 0.0, %v2548
    %v2550 = vpop.f32.mrf.mxu0
    %v2551 = vadd.f32 0.0, %v2550
    %v2552 = vpop.f32.mrf.mxu0
    %v2553 = vpop.f32.mrf.mxu0
    %2554 = vdwg.mxu0
    %2555 = vmatprep.subr.bf16.mxu0 %v543
    %2556 = vmatpush1.bf16.msra.mxu0 %v542
    %2557 = vmatprep.subr.bf16.mxu0 %v539
    %2558 = vmatpush1.bf16.msra.mxu0 %v538
    %2559 = vmatprep.subr.bf16.mxu0 %v535
    %2560 = vmatpush1.bf16.msra.mxu0 %v534
    %2561 = vmatprep.subr.bf16.mxu0 %v531
    %2562 = vmatpush1.bf16.msra.mxu0 %v530
    %2563 = vmatprep.subr.bf16.mxu0 %v527
    %2564 = vmatpush1.bf16.msra.mxu0 %v526
    %2565 = vmatprep.subr.bf16.mxu0 %v523
    %2566 = vmatpush1.bf16.msra.mxu0 %v522
    %2567 = vmatprep.subr.bf16.mxu0 %v519
    %2568 = vmatpush1.bf16.msra.mxu0 %v518
    %2569 = vmatprep.subr.bf16.mxu0 %v515
    %2570 = vmatpush1.bf16.msra.mxu0 %v514
    %2571 = vmatprep.subr.bf16.mxu0 0
    %2572 = vmatpush2.bf16.msra.mxu0 0
    %2573 = vmatprep.subr.bf16.mxu0 0
    %2574 = vmatpush2.bf16.msra.mxu0 0
    %2575 = vmatprep.subr.bf16.mxu0 0
    %2576 = vmatpush2.bf16.msra.mxu0 0
    %2577 = vmatprep.subr.bf16.mxu0 0
    %2578 = vmatpush2.bf16.msra.mxu0 0
    %2579 = vmatprep.subr.bf16.mxu0 0
    %2580 = vmatpush2.bf16.msra.mxu0 0
    %2581 = vmatprep.subr.bf16.mxu0 0
    %2582 = vmatpush2.bf16.msra.mxu0 0
    %2583 = vmatprep.subr.bf16.mxu0 0
    %2584 = vmatpush2.bf16.msra.mxu0 0
    %2585 = vmatprep.subr.bf16.mxu0 0
    %2586 = vmatpush2.bf16.msra.mxu0 0
    %2587 = vmatprep.mubr.bf16.mxu0 0
    %2588 = vmatmul.mubr.bf16.gmra.mxu0 %v2402
    %v2589 = vpop.f32.mrf.mxu0
    %v2590 = vadd.f32 0.0, %v2589
    %v2591 = vpop.f32.mrf.mxu0
    %v2592 = vadd.f32 0.0, %v2591
    %v2593 = vpop.f32.mrf.mxu0
    %v2594 = vpop.f32.mrf.mxu0
    %2595 = vdwg.mxu0
    %v2596 = vadd.f32 %v2510, %v2549
    %v2597 = vadd.f32 %v2511, %v2551
    %v2598 = vadd.f32 %v2512, %v2590
    %v2599 = vadd.f32 %v2513, %v2592
    %v2600 = vxor.u32 %v2596, 2147483648
    %v2601 = vmul.f32 %v2600, 1.442695
    %v2602 = vpow.pop %v2601
    %v2603 = vadd.f32 %v2602, 1.0
    %v2604 = vrcp.pop %v2603
    %v2605 = vmul.f32 1.0, %v2604
    %v2606 = vxor.u32 %v2597, 2147483648
    %v2607 = vmul.f32 %v2606, 1.442695
    %v2608 = vpow.pop %v2607
    %v2609 = vadd.f32 %v2608, 1.0
    %v2610 = vrcp.pop %v2609
    %v2611 = vmul.f32 1.0, %v2610
    %v2612 = vtanh.pop %v2598
    %v2613 = vxor.u32 %v2599, 2147483648
    %v2614 = vmul.f32 %v2613, 1.442695
    %v2615 = vpow.pop %v2614
    %v2616 = vadd.f32 %v2615, 1.0
    %v2617 = vrcp.pop %v2616
    %v2618 = vmul.f32 1.0, %v2617
    %v2619 = vmul.f32 %v2611, %v2399
    %v2620 = vmul.f32 %v2605, %v2612
    %v2621 = vadd.f32 %v2619, %v2620
    %v2622 = vtanh.pop %v2621
    %v2623 = vmul.f32 %v2618, %v2622
    %v2624 = vpack.c.bf16 %v2623, %v2623
    %v2625 = vpack.c.bf16 %v2509, %v2509
    %2626 = vmatprep.subr.bf16.mxu0 %v973
    %2627 = vmatpush1.bf16.msra.mxu0 %v972
    %2628 = vmatprep.subr.bf16.mxu0 %v969
    %2629 = vmatpush1.bf16.msra.mxu0 %v968
    %2630 = vmatprep.subr.bf16.mxu0 %v965
    %2631 = vmatpush1.bf16.msra.mxu0 %v964
    %2632 = vmatprep.subr.bf16.mxu0 %v961
    %2633 = vmatpush1.bf16.msra.mxu0 %v960
    %2634 = vmatprep.subr.bf16.mxu0 %v957
    %2635 = vmatpush1.bf16.msra.mxu0 %v956
    %2636 = vmatprep.subr.bf16.mxu0 %v953
    %2637 = vmatpush1.bf16.msra.mxu0 %v952
    %2638 = vmatprep.subr.bf16.mxu0 %v949
    %2639 = vmatpush1.bf16.msra.mxu0 %v948
    %2640 = vmatprep.subr.bf16.mxu0 %v945
    %2641 = vmatpush1.bf16.msra.mxu0 %v944
    %2642 = vmatprep.subr.bf16.mxu0 %v1005
    %2643 = vmatpush2.bf16.msra.mxu0 %v1004
    %2644 = vmatprep.subr.bf16.mxu0 %v1001
    %2645 = vmatpush2.bf16.msra.mxu0 %v1000
    %2646 = vmatprep.subr.bf16.mxu0 %v997
    %2647 = vmatpush2.bf16.msra.mxu0 %v996
    %2648 = vmatprep.subr.bf16.mxu0 %v993
    %2649 = vmatpush2.bf16.msra.mxu0 %v992
    %2650 = vmatprep.subr.bf16.mxu0 %v989
    %2651 = vmatpush2.bf16.msra.mxu0 %v988
    %2652 = vmatprep.subr.bf16.mxu0 %v985
    %2653 = vmatpush2.bf16.msra.mxu0 %v984
    %2654 = vmatprep.subr.bf16.mxu0 %v981
    %2655 = vmatpush2.bf16.msra.mxu0 %v980
    %2656 = vmatprep.subr.bf16.mxu0 %v977
    %2657 = vmatpush2.bf16.msra.mxu0 %v976
    %2658 = vmatprep.mubr.bf16.mxu0 %v2625
    %2659 = vmatmul.mubr.bf16.gmra.mxu0 %v2624
    %v2660 = vpop.f32.mrf.mxu0
    %v2661 = vadd.f32 %v363, %v2660
    %v2662 = vpop.f32.mrf.mxu0
    %v2663 = vadd.f32 %v367, %v2662
    %v2664 = vpop.f32.mrf.mxu0
    %v2665 = vpop.f32.mrf.mxu0
    %2666 = vdwg.mxu0
    %2667 = vmatprep.subr.bf16.mxu0 %v975
    %2668 = vmatpush1.bf16.msra.mxu0 %v974
    %2669 = vmatprep.subr.bf16.mxu0 %v971
    %2670 = vmatpush1.bf16.msra.mxu0 %v970
    %2671 = vmatprep.subr.bf16.mxu0 %v967
    %2672 = vmatpush1.bf16.msra.mxu0 %v966
    %2673 = vmatprep.subr.bf16.mxu0 %v963
    %2674 = vmatpush1.bf16.msra.mxu0 %v962
    %2675 = vmatprep.subr.bf16.mxu0 %v959
    %2676 = vmatpush1.bf16.msra.mxu0 %v958
    %2677 = vmatprep.subr.bf16.mxu0 %v955
    %2678 = vmatpush1.bf16.msra.mxu0 %v954
    %2679 = vmatprep.subr.bf16.mxu0 %v951
    %2680 = vmatpush1.bf16.msra.mxu0 %v950
    %2681 = vmatprep.subr.bf16.mxu0 %v947
    %2682 = vmatpush1.bf16.msra.mxu0 %v946
    %2683 = vmatprep.subr.bf16.mxu0 %v1007
    %2684 = vmatpush2.bf16.msra.mxu0 %v1006
    %2685 = vmatprep.subr.bf16.mxu0 %v1003
    %2686 = vmatpush2.bf16.msra.mxu0 %v1002
    %2687 = vmatprep.subr.bf16.mxu0 %v999
    %2688 = vmatpush2.bf16.msra.mxu0 %v998
    %2689 = vmatprep.subr.bf16.mxu0 %v995
    %2690 = vmatpush2.bf16.msra.mxu0 %v994
    %2691 = vmatprep.subr.bf16.mxu0 %v991
    %2692 = vmatpush2.bf16.msra.mxu0 %v990
    %2693 = vmatprep.subr.bf16.mxu0 %v987
    %2694 = vmatpush2.bf16.msra.mxu0 %v986
    %2695 = vmatprep.subr.bf16.mxu0 %v983
    %2696 = vmatpush2.bf16.msra.mxu0 %v982
    %2697 = vmatprep.subr.bf16.mxu0 %v979
    %2698 = vmatpush2.bf16.msra.mxu0 %v978
    %2699 = vmatprep.mubr.bf16.mxu0 %v2625
    %2700 = vmatmul.mubr.bf16.gmra.mxu0 %v2624
    %v2701 = vpop.f32.mrf.mxu0
    %v2702 = vadd.f32 %v371, %v2701
    %v2703 = vpop.f32.mrf.mxu0
    %v2704 = vadd.f32 %v375, %v2703
    %v2705 = vpop.f32.mrf.mxu0
    %v2706 = vpop.f32.mrf.mxu0
    %2707 = vdwg.mxu0
    %v2708 = vxor.u32 %v2661, 2147483648
    %v2709 = vmul.f32 %v2708, 1.442695
    %v2710 = vpow.pop %v2709
    %v2711 = vadd.f32 %v2710, 1.0
    %v2712 = vrcp.pop %v2711
    %v2713 = vmul.f32 1.0, %v2712
    %v2714 = vxor.u32 %v2663, 2147483648
    %v2715 = vmul.f32 %v2714, 1.442695
    %v2716 = vpow.pop %v2715
    %v2717 = vadd.f32 %v2716, 1.0
    %v2718 = vrcp.pop %v2717
    %v2719 = vmul.f32 1.0, %v2718
    %v2720 = vtanh.pop %v2702
    %v2721 = vxor.u32 %v2704, 2147483648
    %v2722 = vmul.f32 %v2721, 1.442695
    %v2723 = vpow.pop %v2722
    %v2724 = vadd.f32 %v2723, 1.0
    %v2725 = vrcp.pop %v2724
    %v2726 = vmul.f32 1.0, %v2725
    %v2727 = vmul.f32 %v2719, %v2507
    %v2728 = vmul.f32 %v2713, %v2720
    %v2729 = vadd.f32 %v2727, %v2728
    %v2730 = vtanh.pop %v2729
    %v2731 = vmul.f32 %v2726, %v2730
    %v2732 = vpack.c.bf16 %v2731, %v2731
    %v2733 = vld [vmem:[#allocation8] sm:$0xf]
    %v2734 = vld [vmem:[#allocation8 + $0x4] sm:$0xf]
    %v2735 = vld [vmem:[#allocation8 + $0x8] sm:$0xf]
    %v2736 = vld [vmem:[#allocation8 + $0xc] sm:$0xf]
    %v2737 = vld [vmem:[#allocation8 + $0x10] sm:$0xf]
    %v2738 = vld [vmem:[#allocation8 + $0x14] sm:$0xf]
    %v2739 = vld [vmem:[#allocation8 + $0x18] sm:$0xf]
    %v2740 = vld [vmem:[#allocation8 + $0x1c] sm:$0xf]
    %v2741 = vld [vmem:[#allocation8 + $0x20] sm:$0xf]
    %v2742 = vld [vmem:[#allocation8 + $0x24] sm:$0xf]
    %v2743 = vld [vmem:[#allocation8 + $0x28] sm:$0xf]
    %v2744 = vld [vmem:[#allocation8 + $0x2c] sm:$0xf]
    %v2745 = vld [vmem:[#allocation8 + $0x30] sm:$0xf]
    %v2746 = vld [vmem:[#allocation8 + $0x34] sm:$0xf]
    %v2747 = vld [vmem:[#allocation8 + $0x38] sm:$0xf]
    %v2748 = vld [vmem:[#allocation8 + $0x3c] sm:$0xf]
    %v2749 = vld [vmem:[%s7] sm:$0x1]
    %v2751 = vlaneseq
    %v2752 = vshrl.u32 %v2751, 7
    %v2753 = vsub.s32 0, %v2752
    %v2754 = vrot.slane %v2749, %v2753
    %v2772 = vunpack.c.l.b16 %v2733
    %v2773 = vunpack.c.l.b16 %v2734
    %v2774 = vunpack.c.l.b16 %v2735
    %v2775 = vunpack.c.l.b16 %v2736
    %v2776 = vunpack.c.l.b16 %v2737
    %v2777 = vunpack.c.l.b16 %v2738
    %v2778 = vunpack.c.l.b16 %v2739
    %v2779 = vunpack.c.l.b16 %v2740
    %v2780 = vunpack.c.l.b16 %v2741
    %v2781 = vunpack.c.l.b16 %v2742
    %v2782 = vunpack.c.l.b16 %v2743
    %v2783 = vunpack.c.l.b16 %v2744
    %v2784 = vunpack.c.l.b16 %v2745
    %v2785 = vunpack.c.l.b16 %v2746
    %v2786 = vunpack.c.l.b16 %v2747
    %v2787 = vunpack.c.l.b16 %v2748
    %v2788 = vpack.c.b16 %v2773, %v2772
    %v2789 = vpack.c.b16 %v2775, %v2774
    %v2790 = vpack.c.b16 %v2777, %v2776
    %v2791 = vpack.c.b16 %v2779, %v2778
    %v2792 = vpack.c.b16 %v2781, %v2780
    %v2793 = vpack.c.b16 %v2783, %v2782
    %v2794 = vpack.c.b16 %v2785, %v2784
    %v2795 = vpack.c.b16 %v2787, %v2786
    %2804 = vmatprep.subr.bf16.mxu0 0
    %2805 = vmatpush1.bf16.msra.mxu0 %v2795
    %2806 = vmatprep.subr.bf16.mxu0 0
    %2807 = vmatpush1.bf16.msra.mxu0 %v2794
    %2808 = vmatprep.subr.bf16.mxu0 0
    %2809 = vmatpush1.bf16.msra.mxu0 %v2793
    %2810 = vmatprep.subr.bf16.mxu0 0
    %2811 = vmatpush1.bf16.msra.mxu0 %v2792
    %2812 = vmatprep.subr.bf16.mxu0 0
    %2813 = vmatpush1.bf16.msra.mxu0 %v2791
    %2814 = vmatprep.subr.bf16.mxu0 0
    %2815 = vmatpush1.bf16.msra.mxu0 %v2790
    %2816 = vmatprep.subr.bf16.mxu0 0
    %2817 = vmatpush1.bf16.msra.mxu0 %v2789
    %2818 = vmatprep.subr.bf16.mxu0 0
    %2819 = vmatpush1.bf16.msra.mxu0 %v2788
    %2820 = vmatprep.subr.bf16.mxu0 0
    %2821 = vmatpush2.bf16.msra.mxu0 0
    %2822 = vmatprep.subr.bf16.mxu0 0
    %2823 = vmatpush2.bf16.msra.mxu0 0
    %2824 = vmatprep.subr.bf16.mxu0 0
    %2825 = vmatpush2.bf16.msra.mxu0 0
    %2826 = vmatprep.subr.bf16.mxu0 0
    %2827 = vmatpush2.bf16.msra.mxu0 0
    %2828 = vmatprep.subr.bf16.mxu0 0
    %2829 = vmatpush2.bf16.msra.mxu0 0
    %2830 = vmatprep.subr.bf16.mxu0 0
    %2831 = vmatpush2.bf16.msra.mxu0 0
    %2832 = vmatprep.subr.bf16.mxu0 0
    %2833 = vmatpush2.bf16.msra.mxu0 0
    %2834 = vmatprep.subr.bf16.mxu0 0
    %2835 = vmatpush2.bf16.msra.mxu0 0
    %2836 = vmatprep.mubr.bf16.mxu0 0
    %2837 = vmatmul.mubr.bf16.gmra.mxu0 %v2732
    %v2838 = vpop.f32.mrf.mxu0
    %v2839 = vadd.f32 %v2754, %v2838
    %v2840 = vpop.f32.mrf.mxu0
    %v2841 = vpop.f32.mrf.mxu0
    %v2842 = vpop.f32.mrf.mxu0
    %2843 = vdwg.mxu0
    %v2844 = vmax.f32 %v2839, 0.0
    %v2845 = vpack.c.bf16 %v2844, %v2844
    %v2846 = vld [vmem:[#allocation10] sm:$0xf]
    %v2847 = vld [vmem:[#allocation10 + $0x4] sm:$0xf]
    %v2848 = vld [vmem:[#allocation10 + $0x8] sm:$0xf]
    %v2849 = vld [vmem:[#allocation10 + $0xc] sm:$0xf]
    %v2850 = vld [vmem:[#allocation10 + $0x10] sm:$0xf]
    %v2851 = vld [vmem:[#allocation10 + $0x14] sm:$0xf]
    %v2852 = vld [vmem:[#allocation10 + $0x18] sm:$0xf]
    %v2853 = vld [vmem:[#allocation10 + $0x1c] sm:$0xf]
    %v2854 = vld [vmem:[#allocation10 + $0x20] sm:$0xf]
    %v2855 = vld [vmem:[#allocation10 + $0x24] sm:$0xf]
    %v2856 = vld [vmem:[#allocation10 + $0x28] sm:$0xf]
    %v2857 = vld [vmem:[#allocation10 + $0x2c] sm:$0xf]
    %v2858 = vld [vmem:[#allocation10 + $0x30] sm:$0xf]
    %v2859 = vld [vmem:[#allocation10 + $0x34] sm:$0xf]
    %v2860 = vld [vmem:[#allocation10 + $0x38] sm:$0xf]
    %v2861 = vld [vmem:[#allocation10 + $0x3c] sm:$0xf]
    %v2862 = vld [vmem:[%s9] sm:$0x1]
    %v2864 = vlaneseq
    %v2865 = vshrl.u32 %v2864, 7
    %v2866 = vsub.s32 0, %v2865
    %v2867 = vrot.slane %v2862, %v2866
    %v2885 = vunpack.c.l.b16 %v2846
    %v2886 = vunpack.c.l.b16 %v2847
    %v2887 = vunpack.c.l.b16 %v2848
    %v2888 = vunpack.c.l.b16 %v2849
    %v2889 = vunpack.c.l.b16 %v2850
    %v2890 = vunpack.c.l.b16 %v2851
    %v2891 = vunpack.c.l.b16 %v2852
    %v2892 = vunpack.c.l.b16 %v2853
    %v2893 = vunpack.c.l.b16 %v2854
    %v2894 = vunpack.c.l.b16 %v2855
    %v2895 = vunpack.c.l.b16 %v2856
    %v2896 = vunpack.c.l.b16 %v2857
    %v2897 = vunpack.c.l.b16 %v2858
    %v2898 = vunpack.c.l.b16 %v2859
    %v2899 = vunpack.c.l.b16 %v2860
    %v2900 = vunpack.c.l.b16 %v2861
    %v2901 = vpack.c.b16 %v2886, %v2885
    %v2902 = vpack.c.b16 %v2888, %v2887
    %v2903 = vpack.c.b16 %v2890, %v2889
    %v2904 = vpack.c.b16 %v2892, %v2891
    %v2905 = vpack.c.b16 %v2894, %v2893
    %v2906 = vpack.c.b16 %v2896, %v2895
    %v2907 = vpack.c.b16 %v2898, %v2897
    %v2908 = vpack.c.b16 %v2900, %v2899
    %2917 = vmatprep.subr.bf16.mxu0 0
    %2918 = vmatpush1.bf16.msra.mxu0 %v2908
    %2919 = vmatprep.subr.bf16.mxu0 0
    %2920 = vmatpush1.bf16.msra.mxu0 %v2907
    %2921 = vmatprep.subr.bf16.mxu0 0
    %2922 = vmatpush1.bf16.msra.mxu0 %v2906
    %2923 = vmatprep.subr.bf16.mxu0 0
    %2924 = vmatpush1.bf16.msra.mxu0 %v2905
    %2925 = vmatprep.subr.bf16.mxu0 0
    %2926 = vmatpush1.bf16.msra.mxu0 %v2904
    %2927 = vmatprep.subr.bf16.mxu0 0
    %2928 = vmatpush1.bf16.msra.mxu0 %v2903
    %2929 = vmatprep.subr.bf16.mxu0 0
    %2930 = vmatpush1.bf16.msra.mxu0 %v2902
    %2931 = vmatprep.subr.bf16.mxu0 0
    %2932 = vmatpush1.bf16.msra.mxu0 %v2901
    %2933 = vmatprep.subr.bf16.mxu0 0
    %2934 = vmatpush2.bf16.msra.mxu0 0
    %2935 = vmatprep.subr.bf16.mxu0 0
    %2936 = vmatpush2.bf16.msra.mxu0 0
    %2937 = vmatprep.subr.bf16.mxu0 0
    %2938 = vmatpush2.bf16.msra.mxu0 0
    %2939 = vmatprep.subr.bf16.mxu0 0
    %2940 = vmatpush2.bf16.msra.mxu0 0
    %2941 = vmatprep.subr.bf16.mxu0 0
    %2942 = vmatpush2.bf16.msra.mxu0 0
    %2943 = vmatprep.subr.bf16.mxu0 0
    %2944 = vmatpush2.bf16.msra.mxu0 0
    %2945 = vmatprep.subr.bf16.mxu0 0
    %2946 = vmatpush2.bf16.msra.mxu0 0
    %2947 = vmatprep.subr.bf16.mxu0 0
    %2948 = vmatpush2.bf16.msra.mxu0 0
    %2949 = vmatprep.mubr.bf16.mxu0 0
    %2950 = vmatmul.mubr.bf16.gmra.mxu0 %v2845
    %v2951 = vpop.f32.mrf.mxu0
    %v2952 = vadd.f32 %v2867, %v2951
    %v2953 = vpop.f32.mrf.mxu0
    %v2954 = vpop.f32.mrf.mxu0
    %v2955 = vpop.f32.mrf.mxu0
    %2956 = vdwg.mxu0
    %v2957 = vmax.f32 %v2952, 0.0
    %v2958 = vpack.c.bf16 %v2957, %v2957
    %v2959 = vld [vmem:[%s10] sm:$0xf]
    %v2960 = vld [vmem:[%s10 + $0x4] sm:$0xf]
    %v2961 = vld [vmem:[%s10 + $0x8] sm:$0xf]
    %v2962 = vld [vmem:[%s10 + $0xc] sm:$0xf]
    %v2963 = vld [vmem:[%s10 + $0x10] sm:$0xf]
    %v2964 = vld [vmem:[%s10 + $0x14] sm:$0xf]
    %v2965 = vld [vmem:[%s10 + $0x18] sm:$0xf]
    %v2966 = vld [vmem:[%s10 + $0x1c] sm:$0xf]
    %v2967 = vld [vmem:[%s10 + $0x20] sm:$0xf]
    %v2968 = vld [vmem:[%s10 + $0x24] sm:$0xf]
    %v2969 = vld [vmem:[%s10 + $0x28] sm:$0xf]
    %v2970 = vld [vmem:[%s10 + $0x2c] sm:$0xf]
    %v2971 = vld [vmem:[%s10 + $0x30] sm:$0xf]
    %v2972 = vld [vmem:[%s10 + $0x34] sm:$0xf]
    %v2973 = vld [vmem:[%s10 + $0x38] sm:$0xf]
    %v2974 = vld [vmem:[%s10 + $0x3c] sm:$0xf]
    %v2975 = vld [vmem:[%s11] sm:$0x1]
    %v2977 = vlaneseq
    %v2978 = vshrl.u32 %v2977, 7
    %v2979 = vsub.s32 0, %v2978
    %v2980 = vrot.slane %v2975, %v2979
    %v2998 = vunpack.c.l.b16 %v2959
    %v2999 = vunpack.c.l.b16 %v2960
    %v3000 = vunpack.c.l.b16 %v2961
    %v3001 = vunpack.c.l.b16 %v2962
    %v3002 = vunpack.c.l.b16 %v2963
    %v3003 = vunpack.c.l.b16 %v2964
    %v3004 = vunpack.c.l.b16 %v2965
    %v3005 = vunpack.c.l.b16 %v2966
    %v3006 = vunpack.c.l.b16 %v2967
    %v3007 = vunpack.c.l.b16 %v2968
    %v3008 = vunpack.c.l.b16 %v2969
    %v3009 = vunpack.c.l.b16 %v2970
    %v3010 = vunpack.c.l.b16 %v2971
    %v3011 = vunpack.c.l.b16 %v2972
    %v3012 = vunpack.c.l.b16 %v2973
    %v3013 = vunpack.c.l.b16 %v2974
    %v3014 = vpack.c.b16 %v2999, %v2998
    %v3015 = vpack.c.b16 %v3001, %v3000
    %v3016 = vpack.c.b16 %v3003, %v3002
    %v3017 = vpack.c.b16 %v3005, %v3004
    %v3018 = vpack.c.b16 %v3007, %v3006
    %v3019 = vpack.c.b16 %v3009, %v3008
    %v3020 = vpack.c.b16 %v3011, %v3010
    %v3021 = vpack.c.b16 %v3013, %v3012
    %3030 = vmatprep.subr.bf16.mxu0 0
    %3031 = vmatpush1.bf16.msra.mxu0 %v3021
    %3032 = vmatprep.subr.bf16.mxu0 0
    %3033 = vmatpush1.bf16.msra.mxu0 %v3020
    %3034 = vmatprep.subr.bf16.mxu0 0
    %3035 = vmatpush1.bf16.msra.mxu0 %v3019
    %3036 = vmatprep.subr.bf16.mxu0 0
    %3037 = vmatpush1.bf16.msra.mxu0 %v3018
    %3038 = vmatprep.subr.bf16.mxu0 0
    %3039 = vmatpush1.bf16.msra.mxu0 %v3017
    %3040 = vmatprep.subr.bf16.mxu0 0
    %3041 = vmatpush1.bf16.msra.mxu0 %v3016
    %3042 = vmatprep.subr.bf16.mxu0 0
    %3043 = vmatpush1.bf16.msra.mxu0 %v3015
    %3044 = vmatprep.subr.bf16.mxu0 0
    %3045 = vmatpush1.bf16.msra.mxu0 %v3014
    %3046 = vmatprep.subr.bf16.mxu0 0
    %3047 = vmatpush2.bf16.msra.mxu0 0
    %3048 = vmatprep.subr.bf16.mxu0 0
    %3049 = vmatpush2.bf16.msra.mxu0 0
    %3050 = vmatprep.subr.bf16.mxu0 0
    %3051 = vmatpush2.bf16.msra.mxu0 0
    %3052 = vmatprep.subr.bf16.mxu0 0
    %3053 = vmatpush2.bf16.msra.mxu0 0
    %3054 = vmatprep.subr.bf16.mxu0 0
    %3055 = vmatpush2.bf16.msra.mxu0 0
    %3056 = vmatprep.subr.bf16.mxu0 0
    %3057 = vmatpush2.bf16.msra.mxu0 0
    %3058 = vmatprep.subr.bf16.mxu0 0
    %3059 = vmatpush2.bf16.msra.mxu0 0
    %3060 = vmatprep.subr.bf16.mxu0 0
    %3061 = vmatpush2.bf16.msra.mxu0 0
    %3062 = vmatprep.mubr.bf16.mxu0 0
    %3063 = vmatmul.mubr.bf16.gmra.mxu0 %v2958
    %v3064 = vpop.f32.mrf.mxu0
    %v3065 = vadd.f32 %v2980, %v3064
    %v3066 = vpop.f32.mrf.mxu0
    %v3067 = vpop.f32.mrf.mxu0
    %v3068 = vpop.f32.mrf.mxu0
    %3069 = vdwg.mxu0
    %vm3070 = vcmask 31744
    %3071 = vst.msk [vmem:[%s12] sm:$0xff] %vm3070, %v3065
    // Predicated region
    $region70: #{tpu_custom_call.1} parent=1 // pred_check
      _
    $region71: #{tpu_custom_call.1} parent=1 // pred_check_branch
      %3073 = sbr.rel (0) target = $region73
    $region72: #{tpu_custom_call.1} parent=1 // pred_region
      _
    $region73: #{tpu_custom_call.1} parent=1 // pred_fallthru
      _
    // Predicated region
    $region74: #{tpu_custom_call.1} parent=1 // pred_check
      _
    $region75: #{tpu_custom_call.1} parent=1 // pred_check_branch
      %3075 = sbr.rel (0) target = $region77
    $region76: #{tpu_custom_call.1} parent=1 // pred_region
      _
    $region77: #{tpu_custom_call.1} parent=1 // pred_fallthru
      _
    %3076 = vsyncpa [#allocation4], 1
    %3077 = vsyncpa [#allocation6], 1
    %3078 = vsyncpa [#allocation9], 1

</llo_original>
